<compile_context>
chip_gen: v6e
topology: v6e:2x2x1
jax: 0.10.0
libtpu: 0.0.40
codegen_flags: <defaults>
</compile_context>

<pallas_src>
import numpy as np
import jax
import jax.numpy as jnp
from jax import lax
from jax.experimental import pallas as pl
from jax.experimental.pallas import tpu as pltpu

# ---- small, module-consistent shapes ----
N = 16          # number of graph nodes
IN_DIM = 16     # in_dim
H = 8           # h_dim
Z = 8           # z_dim
EDGE_DIM = 4    # edge_dim
EDGE_HID = 8    # hidden width of the nn4 edge MLP
T = 3           # number of snapshots (len(eis))
E = 32          # edges per snapshot (padded equal)

ROW_STRIDE = 8                  # rows per node in the node-major layout (>= T, one sublane tile)
TN8 = N * ROW_STRIDE            # 128 padded node-major rows (row = node*8 + t)
TE = T * E                      # 96 stacked edges (edge row = t*E + e)
E_SHIFT = 5                     # log2(E)
RS_SHIFT = 3                    # log2(ROW_STRIDE)
assert (1 << E_SHIFT) == E and (1 << RS_SHIFT) == ROW_STRIDE and H == ROW_STRIDE


def _r8(n):                     # round rows up to a sublane multiple
    return -(-n // 8) * 8


# ---- row offsets inside the single packed parameter slab (all 8-aligned, 128 lanes) ----
OFF_KRON  = 0                         # (N*H, N*Z) = (128,128) kron(I_N, Wlin^T)
OFF_BLIN  = OFF_KRON + N * H          # (1, N*Z)
OFF_W1    = OFF_BLIN + _r8(1)         # (IN_DIM, H)
OFF_B1    = OFF_W1 + _r8(IN_DIM)      # (1, H)
OFF_WA    = OFF_B1 + _r8(1)           # (EDGE_DIM, EDGE_HID)
OFF_BA    = OFF_WA + _r8(EDGE_DIM)    # (1, EDGE_HID)
OFF_WB    = OFF_BA + _r8(1)           # (EDGE_HID, H*H)
OFF_BB    = OFF_WB + _r8(EDGE_HID)    # (1, H*H)
OFF_WROOT = OFF_BB + _r8(1)           # (H, H)
OFF_BNN   = OFF_WROOT + _r8(H)        # (1, H)
OFF_WIH   = OFF_BNN + _r8(1)          # (H, 3H)
OFF_WHH   = OFF_WIH + _r8(H)          # (H, 3H)
OFF_BIH   = OFF_WHH + _r8(H)          # (1, 3H)
OFF_BHH   = OFF_BIH + _r8(1)          # (1, 3H)
P_ROWS    = OFF_BHH + _r8(1)          # 240
P_COLS    = 128


# --------------------------------------------------------------------------------------
# Fused kernel: graph-op construction + all T snapshots + GRU over nodes + Linear head.
# --------------------------------------------------------------------------------------
def argus_kernel(x_ref, src_ref, tgt_ref, ea_ref, par_ref, out_ref, hcat_ref):
    f32 = jnp.float32
    i32 = jnp.int32

    # ---- unpack the packed parameter slab (static, 8-aligned row slices) ----
    w1    = par_ref[OFF_W1:OFF_W1 + IN_DIM,   0:H]
    b1    = par_ref[OFF_B1:OFF_B1 + 1,        0:H]
    wa    = par_ref[OFF_WA:OFF_WA + EDGE_DIM, 0:EDGE_HID]
    ba    = par_ref[OFF_BA:OFF_BA + 1,        0:EDGE_HID]
    wb    = par_ref[OFF_WB:OFF_WB + EDGE_HID, 0:H * H]
    bb    = par_ref[OFF_BB:OFF_BB + 1,        0:H * H]
    wroot = par_ref[OFF_WROOT:OFF_WROOT + H,  0:H]
    bnn   = par_ref[OFF_BNN:OFF_BNN + 1,      0:H]
    wih   = par_ref[OFF_WIH:OFF_WIH + H,      0:3 * H]
    whh   = par_ref[OFF_WHH:OFF_WHH + H,      0:3 * H]
    bih   = par_ref[OFF_BIH:OFF_BIH + 1,      0:3 * H]
    bhh   = par_ref[OFF_BHH:OFF_BHH + 1,      0:3 * H]

    # ---- in-kernel graph construction, node-major stride-8 layout (row = node*8 + t) ----
    src_col = src_ref[...]                                                  # (TE, 1) int32
    tgt_row = tgt_ref[...]                                                  # (1, TE) int32
    t_col = jnp.right_shift(lax.broadcasted_iota(i32, (TE, 1), 0), E_SHIFT)
    t_row = jnp.right_shift(lax.broadcasted_iota(i32, (1, TE), 1), E_SHIFT)
    gsrc = src_col * ROW_STRIDE + t_col                                     # global src row id
    gtgt = tgt_row * ROW_STRIDE + t_row                                     # global tgt row id

    one_src   = (lax.broadcasted_iota(i32, (TE, TN8), 1) == gsrc).astype(f32)   # (96,128)
    one_tgt_t = (lax.broadcasted_iota(i32, (TN8, TE), 0) == gtgt).astype(f32)   # (128,96)

    # block adjacency A[i, j] = #edges j -> i per snapshot (exact 0/1 operands -> bf16-safe)
    a_cnt = jnp.dot(one_tgt_t.astype(jnp.bfloat16), one_src.astype(jnp.bfloat16),
                    preferred_element_type=f32)                                  # (128,128)
    eye = (lax.broadcasted_iota(i32, (TN8, TN8), 0)
           == lax.broadcasted_iota(i32, (TN8, TN8), 1)).astype(f32)
    diag_a   = jnp.sum(a_cnt * eye, axis=1, keepdims=True)                       # (128,1)
    loop_add = jnp.where(diag_a == 0.0, 1.0, 0.0)            # add_remaining_self_loops
    deg  = jnp.sum(a_cnt, axis=1, keepdims=True) + loop_add                      # (128,1), >= 1
    dinv = lax.rsqrt(deg)

    # ---- GCNConv -> ReLU (dropout = identity in eval), all snapshots at once ----
    xw  = jnp.dot(x_ref[...], w1, preferred_element_type=f32)                    # (N, H)
    rep = (jnp.right_shift(lax.broadcasted_iota(i32, (TN8, N), 0), RS_SHIFT)
           == lax.broadcasted_iota(i32, (TN8, N), 1)).astype(f32)                # repeat rows x8
    xwt = jnp.dot(rep, xw, preferred_element_type=f32)                           # (128, H)
    u   = dinv * xwt
    z1  = jnp.maximum(
        dinv * (jnp.dot(a_cnt, u, preferred_element_type=f32) + loop_add * u) + b1, 0.0)

    # ---- NNConv: edge MLP -> per-edge weight contraction -> mean scatter -> Tanh ----
    eh    = jnp.maximum(jnp.dot(ea_ref[...], wa, preferred_element_type=f32) + ba, 0.0)  # (96,8)
    theta = jnp.dot(eh, wb, preferred_element_type=f32) + bb                             # (96,64)

    # constant selectors built in-kernel: replicate each lane x8 / strided lane-sum
    r_sel = (lax.broadcasted_iota(i32, (H, H * H), 0)
             == jnp.right_shift(lax.broadcasted_iota(i32, (H, H * H), 1), RS_SHIFT)).astype(f32)
    s_sel = (jnp.bitwise_and(lax.broadcasted_iota(i32, (H * H, H), 0), H - 1)
             == lax.broadcasted_iota(i32, (H * H, H), 1)).astype(f32)

    xsrc = jnp.dot(one_src, z1, preferred_element_type=f32)                       # (96, H)
    xrep = jnp.dot(xsrc, r_sel, preferred_element_type=f32)                       # (96, H*H)
    msg  = jnp.dot(xrep * theta, s_sel, preferred_element_type=f32)               # (96, H)

    indeg  = jnp.sum(one_tgt_t, axis=1, keepdims=True)                            # (128,1)
    inv_in = pl.reciprocal(jnp.maximum(indeg, 1.0))
    agg    = inv_in * jnp.dot(one_tgt_t, msg, preferred_element_type=f32)         # (128, H)
    z2 = jnp.tanh(agg + jnp.dot(z1, wroot, preferred_element_type=f32) + bnn)     # (128, H)

    # ---- GRU input projection for all nodes/snapshots at once (node-major tiles) ----
    gi_all = jnp.dot(z2, wih, preferred_element_type=f32) + bih                   # (128, 3H)

    # ---- node-serial GRU (seq = N, batch = T, h0 = zeros); pad rows 3..7 are inert ----
    h = jnp.zeros((ROW_STRIDE, H), f32)
    for n in range(N):
        gi = gi_all[n * ROW_STRIDE:(n + 1) * ROW_STRIDE, :]                       # aligned (8,3H)
        gh = jnp.dot(h, whh, preferred_element_type=f32) + bhh                    # (8, 3H)
        rz = jax.nn.sigmoid(gi[:, 0:2 * H] + gh[:, 0:2 * H])
        r  = rz[:, 0:H]
        zg = rz[:, H:2 * H]
        ng = jnp.tanh(gi[:, 2 * H:3 * H] + r * gh[:, 2 * H:3 * H])
        h  = (1.0 - zg) * ng + zg * h
        hcat_ref[:, n * H:(n + 1) * H] = h                                        # masked store

    # ---- hoisted output Linear: one lane-dense (8,128) @ (128,128) matmul ----
    kron = par_ref[OFF_KRON:OFF_KRON + N * H, :]                                  # (128,128)
    blin = par_ref[OFF_BLIN:OFF_BLIN + 1, :]                                      # (1,128)
    res = jnp.dot(hcat_ref[...], kron, preferred_element_type=f32) + blin         # (8, N*Z)
    out_ref[...] = res[0:T, :]                                                    # (T, N*Z)


# --------------------------------------------------------------------------------------
# Glue: parameter packing, full forward (wrapper does free reshapes only), JAX reference.
# --------------------------------------------------------------------------------------
def pack_params(gcn_nn_params, gru_params):
    """Pack all weights/biases (+ block-diagonal output Linear) into ONE (240,128) slab."""
    w1, b1, wa, ba, wb, bb, wroot, bnn = gcn_nn_params
    wih_t, whh_t, bih, bhh, wlin_t, blin = gru_params

    p = jnp.zeros((P_ROWS, P_COLS), jnp.float32)
    p = p.at[OFF_KRON:OFF_KRON + N * H, :].set(
        jnp.kron(jnp.eye(N, dtype=jnp.float32), wlin_t))                 # block-diag Wlin
    p = p.at[OFF_BLIN:OFF_BLIN + 1, :].set(jnp.tile(blin, (1, N)))
    for off, arr in ((OFF_W1, w1), (OFF_B1, b1), (OFF_WA, wa), (OFF_BA, ba),
                     (OFF_WB, wb), (OFF_BB, bb), (OFF_WROOT, wroot), (OFF_BNN, bnn),
                     (OFF_WIH, wih_t), (OFF_WHH, whh_t), (OFF_BIH, bih), (OFF_BHH, bhh)):
        r, c = arr.shape
        p = p.at[off:off + r, 0:c].set(arr)
    return p


@jax.jit
def argus_forward(x, src, tgt, eattr, params):
    # only free (metadata) reshapes before the kernel — all real work happens in-kernel
    src_col = src.reshape(T * E, 1)
    tgt_row = tgt.reshape(1, T * E)
    ea_flat = eattr.reshape(T * E, EDGE_DIM)
    out_flat = pl.pallas_call(
        argus_kernel,
        out_shape=jax.ShapeDtypeStruct((T, N * Z), jnp.float32),
        scratch_shapes=[pltpu.VMEM((ROW_STRIDE, N * H), jnp.float32)],
    )(x, src_col, tgt_row, ea_flat, params)
    return out_flat.reshape(T, N, Z)                             # matches out.transpose(1, 0)


def build_graph_ops(src, tgt):
    one_src = jax.nn.one_hot(src, N, dtype=jnp.float32)          # (E, N)
    one_tgt = jax.nn.one_hot(tgt, N, dtype=jnp.float32)          # (E, N)
    A = one_tgt.T @ one_src                                      # A[i, j] = #edges j -> i
    diag = jnp.diag(A)
    A_sl = A + jnp.diag(jnp.where(diag == 0, 1.0, 0.0))          # add_remaining_self_loops
    deg = A_sl.sum(axis=1)
    dinv = jnp.where(deg > 0, 1.0 / jnp.sqrt(deg), 0.0)
    A_hat = dinv[:, None] * A_sl * dinv[None, :]
    indeg = one_tgt.sum(axis=0)                                  # NNConv 'mean' (no self loops)
    S_mean = (one_tgt / jnp.maximum(indeg, 1.0)[None, :]).T      # (N, E), zero rows if indeg=0
    return A_hat, one_src, S_mean


def argus_reference(x, src, tgt, eattr, gcn_nn_params, gru_params):
    (w1, b1, wa, ba, wb, bb, wroot, bnn) = gcn_nn_params
    (wih_t, whh_t, bih, bhh, wlin_t, blin) = gru_params
    zs = []
    for t in range(T):
        A_hat, G_src, S_mean = build_graph_ops(src[t], tgt[t])
        z1 = jnp.maximum(A_hat @ (x @ w1) + b1, 0.0)
        theta = (jnp.maximum(eattr[t] @ wa + ba, 0.0) @ wb + bb).reshape(E, H, H)
        msg = jnp.einsum('ed,edk->ek', G_src @ z1, theta)
        z2 = jnp.tanh(S_mean @ msg + z1 @ wroot + bnn)
        zs.append(z2)
    zs = jnp.stack(zs, axis=1)                                   # (N, T, H)
    h = jnp.zeros((T, H), jnp.float32)
    outs = []
    for n in range(N):
        gi = zs[n] @ wih_t + bih
        gh = h @ whh_t + bhh
        r = jax.nn.sigmoid(gi[:, :H] + gh[:, :H])
        zg = jax.nn.sigmoid(gi[:, H:2 * H] + gh[:, H:2 * H])
        ng = jnp.tanh(gi[:, 2 * H:] + r * gh[:, 2 * H:])
        h = (1.0 - zg) * ng + zg * h
        outs.append(h @ wlin_t + blin)
    return jnp.transpose(jnp.stack(outs), (1, 0, 2))             # (T, N, Z)


if __name__ == "__main__":
    key = jax.random.PRNGKey(0)
    keys = jax.random.split(key, 20)

    def init(k, shape, scale=0.2):
        return jax.random.normal(k, shape, jnp.float32) * scale

    # parameters (deterministic synthetic init; shapes follow the module __init__)
    w1 = init(keys[0], (IN_DIM, H));          b1 = init(keys[1], (1, H))          # GCNConv
    wa = init(keys[2], (EDGE_DIM, EDGE_HID)); ba = init(keys[3], (1, EDGE_HID))   # nn4 layer 1
    wb = init(keys[4], (EDGE_HID, H * H));    bb = init(keys[5], (1, H * H))      # nn4 layer 2
    wroot = init(keys[6], (H, H));            bnn = init(keys[7], (1, H))         # NNConv root + bias
    wih = init(keys[8], (3 * H, H));          whh = init(keys[9], (3 * H, H))     # GRU (PyTorch layout)
    bih = init(keys[10], (1, 3 * H));         bhh = init(keys[11], (1, 3 * H))
    wlin = init(keys[12], (Z, H));            blin = init(keys[13], (1, Z))       # GRU head Linear

    gcn_nn_params = (w1, b1, wa, ba, wb, bb, wroot, bnn)
    gru_params = (wih.T, whh.T, bih, bhh, wlin.T, blin)

    # inputs: node features, T snapshots of E directed edges (no self loops) + edge attrs
    x = init(keys[14], (N, IN_DIM), scale=1.0)
    src = jax.random.randint(keys[15], (T, E), 0, N, dtype=jnp.int32)
    off = jax.random.randint(keys[16], (T, E), 1, N, dtype=jnp.int32)
    tgt = (src + off) % N
    eattr = init(keys[17], (T, E, EDGE_DIM), scale=1.0)

    params = pack_params(gcn_nn_params, gru_params)

    out = jax.block_until_ready(argus_forward(x, src, tgt, eattr, params))
    ref = jax.block_until_ready(argus_reference(x, src, tgt, eattr, gcn_nn_params, gru_params))

    assert out.shape == (T, N, Z), out.shape
    np.testing.assert_allclose(np.asarray(out), np.asarray(ref), rtol=1e-3, atol=5e-4)
    print("KERNEL_OK")
</pallas_src>

<mosaic_0001>
module attributes {stable_mosaic.version = 11 : i64} {
  func.func @argus_kernel(%arg0: memref<16x16xf32, #tpu.memory_space<vmem>>, %arg1: memref<96x1xi32, #tpu.memory_space<vmem>>, %arg2: memref<1x96xi32, #tpu.memory_space<vmem>>, %arg3: memref<96x4xf32, #tpu.memory_space<vmem>>, %arg4: memref<240x128xf32, #tpu.memory_space<vmem>>, %arg5: memref<3x128xf32, #tpu.memory_space<vmem>>, %arg6: memref<8x128xf32, #tpu.memory_space<vmem>>) attributes {dimension_semantics = [], scalar_prefetch = 0 : i64, scratch_operands = 1 : i64, tpu.core_type = #tpu.core_type<tc>} {
    %c136 = arith.constant 136 : index
    %c0 = arith.constant 0 : index
    %0 = vector.load %arg4[%c136, %c0] : memref<240x128xf32, #tpu.memory_space<vmem>>, vector<16x8xf32>
    %c152 = arith.constant 152 : index
    %c0_0 = arith.constant 0 : index
    %1 = vector.load %arg4[%c152, %c0_0] : memref<240x128xf32, #tpu.memory_space<vmem>>, vector<1x8xf32>
    %c160 = arith.constant 160 : index
    %c0_1 = arith.constant 0 : index
    %2 = vector.load %arg4[%c160, %c0_1] : memref<240x128xf32, #tpu.memory_space<vmem>>, vector<4x8xf32>
    %c168 = arith.constant 168 : index
    %c0_2 = arith.constant 0 : index
    %3 = vector.load %arg4[%c168, %c0_2] : memref<240x128xf32, #tpu.memory_space<vmem>>, vector<1x8xf32>
    %c176 = arith.constant 176 : index
    %c0_3 = arith.constant 0 : index
    %4 = vector.load %arg4[%c176, %c0_3] : memref<240x128xf32, #tpu.memory_space<vmem>>, vector<8x64xf32>
    %c184 = arith.constant 184 : index
    %c0_4 = arith.constant 0 : index
    %5 = vector.load %arg4[%c184, %c0_4] : memref<240x128xf32, #tpu.memory_space<vmem>>, vector<1x64xf32>
    %c192 = arith.constant 192 : index
    %c0_5 = arith.constant 0 : index
    %6 = vector.load %arg4[%c192, %c0_5] : memref<240x128xf32, #tpu.memory_space<vmem>>, vector<8x8xf32>
    %c200 = arith.constant 200 : index
    %c0_6 = arith.constant 0 : index
    %7 = vector.load %arg4[%c200, %c0_6] : memref<240x128xf32, #tpu.memory_space<vmem>>, vector<1x8xf32>
    %c208 = arith.constant 208 : index
    %c0_7 = arith.constant 0 : index
    %8 = vector.load %arg4[%c208, %c0_7] : memref<240x128xf32, #tpu.memory_space<vmem>>, vector<8x24xf32>
    %c216 = arith.constant 216 : index
    %c0_8 = arith.constant 0 : index
    %9 = vector.load %arg4[%c216, %c0_8] : memref<240x128xf32, #tpu.memory_space<vmem>>, vector<8x24xf32>
    %c224 = arith.constant 224 : index
    %c0_9 = arith.constant 0 : index
    %10 = vector.load %arg4[%c224, %c0_9] : memref<240x128xf32, #tpu.memory_space<vmem>>, vector<1x24xf32>
    %c232 = arith.constant 232 : index
    %c0_10 = arith.constant 0 : index
    %11 = vector.load %arg4[%c232, %c0_10] : memref<240x128xf32, #tpu.memory_space<vmem>>, vector<1x24xf32>
    %c0_11 = arith.constant 0 : index
    %c0_12 = arith.constant 0 : index
    %12 = vector.load %arg1[%c0_11, %c0_12] : memref<96x1xi32, #tpu.memory_space<vmem>>, vector<96x1xi32>
    %c0_13 = arith.constant 0 : index
    %c0_14 = arith.constant 0 : index
    %13 = vector.load %arg2[%c0_13, %c0_14] : memref<1x96xi32, #tpu.memory_space<vmem>>, vector<1x96xi32>
    %14 = tpu.iota {dimensions = array<i32: 0>} : vector<96x1xi32>
    %c5_i32 = arith.constant 5 : i32
    %15 = vector.broadcast %c5_i32 : i32 to vector<96x1xi32>
    %16 = arith.shrsi %14, %15 : vector<96x1xi32>
    %17 = tpu.iota {dimensions = array<i32: 1>} : vector<1x96xi32>
    %c5_i32_15 = arith.constant 5 : i32
    %18 = vector.broadcast %c5_i32_15 : i32 to vector<1x96xi32>
    %19 = arith.shrsi %17, %18 : vector<1x96xi32>
    %c8_i32 = arith.constant 8 : i32
    %20 = vector.broadcast %c8_i32 : i32 to vector<96x1xi32>
    %21 = arith.muli %12, %20 : vector<96x1xi32>
    %22 = arith.addi %21, %16 : vector<96x1xi32>
    %c8_i32_16 = arith.constant 8 : i32
    %23 = vector.broadcast %c8_i32_16 : i32 to vector<1x96xi32>
    %24 = arith.muli %13, %23 : vector<1x96xi32>
    %25 = arith.addi %24, %19 : vector<1x96xi32>
    %26 = tpu.iota {dimensions = array<i32: 1>} : vector<96x128xi32>
    %27 = vector.broadcast %22 : vector<96x1xi32> to vector<96x128xi32>
    %28 = arith.cmpi eq, %26, %27 : vector<96x128xi32>
    %29 = arith.extui %28 : vector<96x128xi1> to vector<96x128xi32>
    %30 = arith.sitofp %29 : vector<96x128xi32> to vector<96x128xf32>
    %31 = tpu.iota {dimensions = array<i32: 0>} : vector<128x96xi32>
    %32 = vector.broadcast %25 : vector<1x96xi32> to vector<128x96xi32>
    %33 = arith.cmpi eq, %31, %32 : vector<128x96xi32>
    %34 = arith.extui %33 : vector<128x96xi1> to vector<128x96xi32>
    %35 = arith.sitofp %34 : vector<128x96xi32> to vector<128x96xf32>
    %36 = arith.truncf %35 : vector<128x96xf32> to vector<128x96xbf16>
    %37 = arith.truncf %30 : vector<96x128xf32> to vector<96x128xbf16>
    %cst = arith.constant dense<0.000000e+00> : vector<128x128xf32>
    %38 = tpu.matmul %36, %37, %cst {dimension_numbers = #tpu.dot_dimension_numbers<[1], [0], [0], [1], [0, 0, 1, 1], [], []>} : vector<128x96xbf16>, vector<96x128xbf16>, vector<128x128xf32> -> vector<128x128xf32>
    %39 = tpu.iota {dimensions = array<i32: 0>} : vector<128x128xi32>
    %40 = tpu.iota {dimensions = array<i32: 1>} : vector<128x128xi32>
    %41 = arith.cmpi eq, %39, %40 : vector<128x128xi32>
    %42 = arith.extui %41 : vector<128x128xi1> to vector<128x128xi32>
    %43 = arith.sitofp %42 : vector<128x128xi32> to vector<128x128xf32>
    %44 = arith.mulf %38, %43 : vector<128x128xf32>
    %cst_17 = arith.constant dense<0.000000e+00> : vector<128xf32>
    %45 = vector.multi_reduction <add>, %44, %cst_17 [1] : vector<128x128xf32> to vector<128xf32>
    %46 = vector.shape_cast %45 : vector<128xf32> to vector<128x1xf32>
    %cst_18 = arith.constant 0.000000e+00 : f32
    %47 = vector.broadcast %cst_18 : f32 to vector<128x1xf32>
    %48 = arith.cmpf oeq, %46, %47 : vector<128x1xf32>
    %cst_19 = arith.constant 1.000000e+00 : f32
    %cst_20 = arith.constant 0.000000e+00 : f32
    %49 = vector.broadcast %cst_19 : f32 to vector<128x1xf32>
    %50 = vector.broadcast %cst_20 : f32 to vector<128x1xf32>
    %51 = arith.select %48, %49, %50 : vector<128x1xi1>, vector<128x1xf32>
    %cst_21 = arith.constant dense<0.000000e+00> : vector<128xf32>
    %52 = vector.multi_reduction <add>, %38, %cst_21 [1] : vector<128x128xf32> to vector<128xf32>
    %53 = vector.shape_cast %52 : vector<128xf32> to vector<128x1xf32>
    %54 = arith.addf %53, %51 : vector<128x1xf32>
    %55 = math.rsqrt %54 : vector<128x1xf32>
    %c0_22 = arith.constant 0 : index
    %c0_23 = arith.constant 0 : index
    %56 = vector.load %arg0[%c0_22, %c0_23] : memref<16x16xf32, #tpu.memory_space<vmem>>, vector<16x16xf32>
    %cst_24 = arith.constant dense<0.000000e+00> : vector<16x8xf32>
    %57 = tpu.matmul %56, %0, %cst_24 {dimension_numbers = #tpu.dot_dimension_numbers<[1], [0], [0], [1], [0, 0, 1, 1], [], []>} : vector<16x16xf32>, vector<16x8xf32>, vector<16x8xf32> -> vector<16x8xf32>
    %58 = tpu.iota {dimensions = array<i32: 0>} : vector<128x16xi32>
    %c3_i32 = arith.constant 3 : i32
    %59 = vector.broadcast %c3_i32 : i32 to vector<128x16xi32>
    %60 = arith.shrsi %58, %59 : vector<128x16xi32>
    %61 = tpu.iota {dimensions = array<i32: 1>} : vector<128x16xi32>
    %62 = arith.cmpi eq, %60, %61 : vector<128x16xi32>
    %63 = arith.extui %62 : vector<128x16xi1> to vector<128x16xi32>
    %64 = arith.sitofp %63 : vector<128x16xi32> to vector<128x16xf32>
    %cst_25 = arith.constant dense<0.000000e+00> : vector<128x8xf32>
    %65 = tpu.matmul %64, %57, %cst_25 {dimension_numbers = #tpu.dot_dimension_numbers<[1], [0], [0], [1], [0, 0, 1, 1], [], []>} : vector<128x16xf32>, vector<16x8xf32>, vector<128x8xf32> -> vector<128x8xf32>
    %66 = vector.broadcast %55 : vector<128x1xf32> to vector<128x8xf32>
    %67 = arith.mulf %66, %65 : vector<128x8xf32>
    %cst_26 = arith.constant dense<0.000000e+00> : vector<128x8xf32>
    %68 = tpu.matmul %38, %67, %cst_26 {dimension_numbers = #tpu.dot_dimension_numbers<[1], [0], [0], [1], [0, 0, 1, 1], [], []>} : vector<128x128xf32>, vector<128x8xf32>, vector<128x8xf32> -> vector<128x8xf32>
    %69 = vector.broadcast %51 : vector<128x1xf32> to vector<128x8xf32>
    %70 = arith.mulf %69, %67 : vector<128x8xf32>
    %71 = arith.addf %68, %70 : vector<128x8xf32>
    %72 = vector.broadcast %55 : vector<128x1xf32> to vector<128x8xf32>
    %73 = arith.mulf %72, %71 : vector<128x8xf32>
    %74 = vector.broadcast %1 : vector<1x8xf32> to vector<128x8xf32>
    %75 = arith.addf %73, %74 : vector<128x8xf32>
    %cst_27 = arith.constant 0.000000e+00 : f32
    %76 = vector.broadcast %cst_27 : f32 to vector<128x8xf32>
    %77 = arith.maximumf %75, %76 : vector<128x8xf32>
    %c0_28 = arith.constant 0 : index
    %c0_29 = arith.constant 0 : index
    %78 = vector.load %arg3[%c0_28, %c0_29] : memref<96x4xf32, #tpu.memory_space<vmem>>, vector<96x4xf32>
    %cst_30 = arith.constant dense<0.000000e+00> : vector<96x8xf32>
    %79 = tpu.matmul %78, %2, %cst_30 {dimension_numbers = #tpu.dot_dimension_numbers<[1], [0], [0], [1], [0, 0, 1, 1], [], []>} : vector<96x4xf32>, vector<4x8xf32>, vector<96x8xf32> -> vector<96x8xf32>
    %80 = vector.broadcast %3 : vector<1x8xf32> to vector<96x8xf32>
    %81 = arith.addf %79, %80 : vector<96x8xf32>
    %cst_31 = arith.constant 0.000000e+00 : f32
    %82 = vector.broadcast %cst_31 : f32 to vector<96x8xf32>
    %83 = arith.maximumf %81, %82 : vector<96x8xf32>
    %cst_32 = arith.constant dense<0.000000e+00> : vector<96x64xf32>
    %84 = tpu.matmul %83, %4, %cst_32 {dimension_numbers = #tpu.dot_dimension_numbers<[1], [0], [0], [1], [0, 0, 1, 1], [], []>} : vector<96x8xf32>, vector<8x64xf32>, vector<96x64xf32> -> vector<96x64xf32>
    %85 = vector.broadcast %5 : vector<1x64xf32> to vector<96x64xf32>
    %86 = arith.addf %84, %85 : vector<96x64xf32>
    %87 = tpu.iota {dimensions = array<i32: 0>} : vector<8x64xi32>
    %88 = tpu.iota {dimensions = array<i32: 1>} : vector<8x64xi32>
    %c3_i32_33 = arith.constant 3 : i32
    %89 = vector.broadcast %c3_i32_33 : i32 to vector<8x64xi32>
    %90 = arith.shrsi %88, %89 : vector<8x64xi32>
    %91 = arith.cmpi eq, %87, %90 : vector<8x64xi32>
    %92 = arith.extui %91 : vector<8x64xi1> to vector<8x64xi32>
    %93 = arith.sitofp %92 : vector<8x64xi32> to vector<8x64xf32>
    %94 = tpu.iota {dimensions = array<i32: 0>} : vector<64x8xi32>
    %c7_i32 = arith.constant 7 : i32
    %95 = vector.broadcast %c7_i32 : i32 to vector<64x8xi32>
    %96 = arith.andi %94, %95 : vector<64x8xi32>
    %97 = tpu.iota {dimensions = array<i32: 1>} : vector<64x8xi32>
    %98 = arith.cmpi eq, %96, %97 : vector<64x8xi32>
    %99 = arith.extui %98 : vector<64x8xi1> to vector<64x8xi32>
    %100 = arith.sitofp %99 : vector<64x8xi32> to vector<64x8xf32>
    %cst_34 = arith.constant dense<0.000000e+00> : vector<96x8xf32>
    %101 = tpu.matmul %30, %77, %cst_34 {dimension_numbers = #tpu.dot_dimension_numbers<[1], [0], [0], [1], [0, 0, 1, 1], [], []>} : vector<96x128xf32>, vector<128x8xf32>, vector<96x8xf32> -> vector<96x8xf32>
    %cst_35 = arith.constant dense<0.000000e+00> : vector<96x64xf32>
    %102 = tpu.matmul %101, %93, %cst_35 {dimension_numbers = #tpu.dot_dimension_numbers<[1], [0], [0], [1], [0, 0, 1, 1], [], []>} : vector<96x8xf32>, vector<8x64xf32>, vector<96x64xf32> -> vector<96x64xf32>
    %103 = arith.mulf %102, %86 : vector<96x64xf32>
    %cst_36 = arith.constant dense<0.000000e+00> : vector<96x8xf32>
    %104 = tpu.matmul %103, %100, %cst_36 {dimension_numbers = #tpu.dot_dimension_numbers<[1], [0], [0], [1], [0, 0, 1, 1], [], []>} : vector<96x64xf32>, vector<64x8xf32>, vector<96x8xf32> -> vector<96x8xf32>
    %cst_37 = arith.constant dense<0.000000e+00> : vector<128xf32>
    %105 = vector.multi_reduction <add>, %35, %cst_37 [1] : vector<128x96xf32> to vector<128xf32>
    %106 = vector.shape_cast %105 : vector<128xf32> to vector<128x1xf32>
    %cst_38 = arith.constant 1.000000e+00 : f32
    %107 = vector.broadcast %cst_38 : f32 to vector<128x1xf32>
    %108 = arith.maximumf %106, %107 : vector<128x1xf32>
    %109 = tpu.reciprocal %108 : vector<128x1xf32> -> vector<128x1xf32>
    %cst_39 = arith.constant dense<0.000000e+00> : vector<128x8xf32>
    %110 = tpu.matmul %35, %104, %cst_39 {dimension_numbers = #tpu.dot_dimension_numbers<[1], [0], [0], [1], [0, 0, 1, 1], [], []>} : vector<128x96xf32>, vector<96x8xf32>, vector<128x8xf32> -> vector<128x8xf32>
    %111 = vector.broadcast %109 : vector<128x1xf32> to vector<128x8xf32>
    %112 = arith.mulf %111, %110 : vector<128x8xf32>
    %cst_40 = arith.constant dense<0.000000e+00> : vector<128x8xf32>
    %113 = tpu.matmul %77, %6, %cst_40 {dimension_numbers = #tpu.dot_dimension_numbers<[1], [0], [0], [1], [0, 0, 1, 1], [], []>} : vector<128x8xf32>, vector<8x8xf32>, vector<128x8xf32> -> vector<128x8xf32>
    %114 = arith.addf %112, %113 : vector<128x8xf32>
    %115 = vector.broadcast %7 : vector<1x8xf32> to vector<128x8xf32>
    %116 = arith.addf %114, %115 : vector<128x8xf32>
    %117 = math.tanh %116 : vector<128x8xf32>
    %cst_41 = arith.constant dense<0.000000e+00> : vector<128x24xf32>
    %118 = tpu.matmul %117, %8, %cst_41 {dimension_numbers = #tpu.dot_dimension_numbers<[1], [0], [0], [1], [0, 0, 1, 1], [], []>} : vector<128x8xf32>, vector<8x24xf32>, vector<128x24xf32> -> vector<128x24xf32>
    %119 = vector.broadcast %10 : vector<1x24xf32> to vector<128x24xf32>
    %120 = arith.addf %118, %119 : vector<128x24xf32>
    %cst_42 = arith.constant 0.000000e+00 : f32
    %121 = vector.broadcast %cst_42 : f32 to vector<8x8xf32>
    %122 = vector.extract_strided_slice %120 {offsets = [0, 0], sizes = [8, 24], strides = [1, 1]} : vector<128x24xf32> to vector<8x24xf32>
    %cst_43 = arith.constant dense<0.000000e+00> : vector<8x24xf32>
    %123 = tpu.matmul %121, %9, %cst_43 {dimension_numbers = #tpu.dot_dimension_numbers<[1], [0], [0], [1], [0, 0, 1, 1], [], []>} : vector<8x8xf32>, vector<8x24xf32>, vector<8x24xf32> -> vector<8x24xf32>
    %124 = vector.broadcast %11 : vector<1x24xf32> to vector<8x24xf32>
    %125 = arith.addf %123, %124 : vector<8x24xf32>
    %126 = vector.extract_strided_slice %122 {offsets = [0, 0], sizes = [8, 16], strides = [1, 1]} : vector<8x24xf32> to vector<8x16xf32>
    %127 = vector.extract_strided_slice %125 {offsets = [0, 0], sizes = [8, 16], strides = [1, 1]} : vector<8x24xf32> to vector<8x16xf32>
    %128 = arith.addf %126, %127 : vector<8x16xf32>
    %129 = arith.negf %128 : vector<8x16xf32>
    %130 = math.exp %129 : vector<8x16xf32>
    %cst_44 = arith.constant 1.000000e+00 : f32
    %131 = vector.broadcast %cst_44 : f32 to vector<8x16xf32>
    %132 = arith.addf %131, %130 : vector<8x16xf32>
    %133 = arith.divf %131, %132 : vector<8x16xf32>
    %134 = vector.extract_strided_slice %133 {offsets = [0, 0], sizes = [8, 8], strides = [1, 1]} : vector<8x16xf32> to vector<8x8xf32>
    %135 = vector.extract_strided_slice %133 {offsets = [0, 8], sizes = [8, 8], strides = [1, 1]} : vector<8x16xf32> to vector<8x8xf32>
    %136 = vector.extract_strided_slice %122 {offsets = [0, 16], sizes = [8, 8], strides = [1, 1]} : vector<8x24xf32> to vector<8x8xf32>
    %137 = vector.extract_strided_slice %125 {offsets = [0, 16], sizes = [8, 8], strides = [1, 1]} : vector<8x24xf32> to vector<8x8xf32>
    %138 = arith.mulf %134, %137 : vector<8x8xf32>
    %139 = arith.addf %136, %138 : vector<8x8xf32>
    %140 = math.tanh %139 : vector<8x8xf32>
    %cst_45 = arith.constant 1.000000e+00 : f32
    %141 = vector.broadcast %cst_45 : f32 to vector<8x8xf32>
    %142 = arith.subf %141, %135 : vector<8x8xf32>
    %143 = arith.mulf %142, %140 : vector<8x8xf32>
    %144 = arith.mulf %135, %121 : vector<8x8xf32>
    %145 = arith.addf %143, %144 : vector<8x8xf32>
    %c0_46 = arith.constant 0 : index
    %c0_47 = arith.constant 0 : index
    %146 = vector.load %arg6[%c0_46, %c0_47] : memref<8x128xf32, #tpu.memory_space<vmem>>, vector<8x8xf32>
    tpu.vector_store %arg6[%c0_46, %c0_47], %145 {strides = array<i32>} : memref<8x128xf32, #tpu.memory_space<vmem>>, vector<8x8xf32>,
    %147 = vector.extract_strided_slice %120 {offsets = [8, 0], sizes = [8, 24], strides = [1, 1]} : vector<128x24xf32> to vector<8x24xf32>
    %cst_48 = arith.constant dense<0.000000e+00> : vector<8x24xf32>
    %148 = tpu.matmul %145, %9, %cst_48 {dimension_numbers = #tpu.dot_dimension_numbers<[1], [0], [0], [1], [0, 0, 1, 1], [], []>} : vector<8x8xf32>, vector<8x24xf32>, vector<8x24xf32> -> vector<8x24xf32>
    %149 = vector.broadcast %11 : vector<1x24xf32> to vector<8x24xf32>
    %150 = arith.addf %148, %149 : vector<8x24xf32>
    %151 = vector.extract_strided_slice %147 {offsets = [0, 0], sizes = [8, 16], strides = [1, 1]} : vector<8x24xf32> to vector<8x16xf32>
    %152 = vector.extract_strided_slice %150 {offsets = [0, 0], sizes = [8, 16], strides = [1, 1]} : vector<8x24xf32> to vector<8x16xf32>
    %153 = arith.addf %151, %152 : vector<8x16xf32>
    %154 = arith.negf %153 : vector<8x16xf32>
    %155 = math.exp %154 : vector<8x16xf32>
    %cst_49 = arith.constant 1.000000e+00 : f32
    %156 = vector.broadcast %cst_49 : f32 to vector<8x16xf32>
    %157 = arith.addf %156, %155 : vector<8x16xf32>
    %158 = arith.divf %156, %157 : vector<8x16xf32>
    %159 = vector.extract_strided_slice %158 {offsets = [0, 0], sizes = [8, 8], strides = [1, 1]} : vector<8x16xf32> to vector<8x8xf32>
    %160 = vector.extract_strided_slice %158 {offsets = [0, 8], sizes = [8, 8], strides = [1, 1]} : vector<8x16xf32> to vector<8x8xf32>
    %161 = vector.extract_strided_slice %147 {offsets = [0, 16], sizes = [8, 8], strides = [1, 1]} : vector<8x24xf32> to vector<8x8xf32>
    %162 = vector.extract_strided_slice %150 {offsets = [0, 16], sizes = [8, 8], strides = [1, 1]} : vector<8x24xf32> to vector<8x8xf32>
    %163 = arith.mulf %159, %162 : vector<8x8xf32>
    %164 = arith.addf %161, %163 : vector<8x8xf32>
    %165 = math.tanh %164 : vector<8x8xf32>
    %cst_50 = arith.constant 1.000000e+00 : f32
    %166 = vector.broadcast %cst_50 : f32 to vector<8x8xf32>
    %167 = arith.subf %166, %160 : vector<8x8xf32>
    %168 = arith.mulf %167, %165 : vector<8x8xf32>
    %169 = arith.mulf %160, %145 : vector<8x8xf32>
    %170 = arith.addf %168, %169 : vector<8x8xf32>
    %c0_51 = arith.constant 0 : index
    %c8 = arith.constant 8 : index
    %171 = vector.load %arg6[%c0_51, %c8] : memref<8x128xf32, #tpu.memory_space<vmem>>, vector<8x8xf32>
    tpu.vector_store %arg6[%c0_51, %c8], %170 {strides = array<i32>} : memref<8x128xf32, #tpu.memory_space<vmem>>, vector<8x8xf32>,
    %172 = vector.extract_strided_slice %120 {offsets = [16, 0], sizes = [8, 24], strides = [1, 1]} : vector<128x24xf32> to vector<8x24xf32>
    %cst_52 = arith.constant dense<0.000000e+00> : vector<8x24xf32>
    %173 = tpu.matmul %170, %9, %cst_52 {dimension_numbers = #tpu.dot_dimension_numbers<[1], [0], [0], [1], [0, 0, 1, 1], [], []>} : vector<8x8xf32>, vector<8x24xf32>, vector<8x24xf32> -> vector<8x24xf32>
    %174 = vector.broadcast %11 : vector<1x24xf32> to vector<8x24xf32>
    %175 = arith.addf %173, %174 : vector<8x24xf32>
    %176 = vector.extract_strided_slice %172 {offsets = [0, 0], sizes = [8, 16], strides = [1, 1]} : vector<8x24xf32> to vector<8x16xf32>
    %177 = vector.extract_strided_slice %175 {offsets = [0, 0], sizes = [8, 16], strides = [1, 1]} : vector<8x24xf32> to vector<8x16xf32>
    %178 = arith.addf %176, %177 : vector<8x16xf32>
    %179 = arith.negf %178 : vector<8x16xf32>
    %180 = math.exp %179 : vector<8x16xf32>
    %cst_53 = arith.constant 1.000000e+00 : f32
    %181 = vector.broadcast %cst_53 : f32 to vector<8x16xf32>
    %182 = arith.addf %181, %180 : vector<8x16xf32>
    %183 = arith.divf %181, %182 : vector<8x16xf32>
    %184 = vector.extract_strided_slice %183 {offsets = [0, 0], sizes = [8, 8], strides = [1, 1]} : vector<8x16xf32> to vector<8x8xf32>
    %185 = vector.extract_strided_slice %183 {offsets = [0, 8], sizes = [8, 8], strides = [1, 1]} : vector<8x16xf32> to vector<8x8xf32>
    %186 = vector.extract_strided_slice %172 {offsets = [0, 16], sizes = [8, 8], strides = [1, 1]} : vector<8x24xf32> to vector<8x8xf32>
    %187 = vector.extract_strided_slice %175 {offsets = [0, 16], sizes = [8, 8], strides = [1, 1]} : vector<8x24xf32> to vector<8x8xf32>
    %188 = arith.mulf %184, %187 : vector<8x8xf32>
    %189 = arith.addf %186, %188 : vector<8x8xf32>
    %190 = math.tanh %189 : vector<8x8xf32>
    %cst_54 = arith.constant 1.000000e+00 : f32
    %191 = vector.broadcast %cst_54 : f32 to vector<8x8xf32>
    %192 = arith.subf %191, %185 : vector<8x8xf32>
    %193 = arith.mulf %192, %190 : vector<8x8xf32>
    %194 = arith.mulf %185, %170 : vector<8x8xf32>
    %195 = arith.addf %193, %194 : vector<8x8xf32>
    %c0_55 = arith.constant 0 : index
    %c16 = arith.constant 16 : index
    %196 = vector.load %arg6[%c0_55, %c16] : memref<8x128xf32, #tpu.memory_space<vmem>>, vector<8x8xf32>
    tpu.vector_store %arg6[%c0_55, %c16], %195 {strides = array<i32>} : memref<8x128xf32, #tpu.memory_space<vmem>>, vector<8x8xf32>,
    %197 = vector.extract_strided_slice %120 {offsets = [24, 0], sizes = [8, 24], strides = [1, 1]} : vector<128x24xf32> to vector<8x24xf32>
    %cst_56 = arith.constant dense<0.000000e+00> : vector<8x24xf32>
    %198 = tpu.matmul %195, %9, %cst_56 {dimension_numbers = #tpu.dot_dimension_numbers<[1], [0], [0], [1], [0, 0, 1, 1], [], []>} : vector<8x8xf32>, vector<8x24xf32>, vector<8x24xf32> -> vector<8x24xf32>
    %199 = vector.broadcast %11 : vector<1x24xf32> to vector<8x24xf32>
    %200 = arith.addf %198, %199 : vector<8x24xf32>
    %201 = vector.extract_strided_slice %197 {offsets = [0, 0], sizes = [8, 16], strides = [1, 1]} : vector<8x24xf32> to vector<8x16xf32>
    %202 = vector.extract_strided_slice %200 {offsets = [0, 0], sizes = [8, 16], strides = [1, 1]} : vector<8x24xf32> to vector<8x16xf32>
    %203 = arith.addf %201, %202 : vector<8x16xf32>
    %204 = arith.negf %203 : vector<8x16xf32>
    %205 = math.exp %204 : vector<8x16xf32>
    %cst_57 = arith.constant 1.000000e+00 : f32
    %206 = vector.broadcast %cst_57 : f32 to vector<8x16xf32>
    %207 = arith.addf %206, %205 : vector<8x16xf32>
    %208 = arith.divf %206, %207 : vector<8x16xf32>
    %209 = vector.extract_strided_slice %208 {offsets = [0, 0], sizes = [8, 8], strides = [1, 1]} : vector<8x16xf32> to vector<8x8xf32>
    %210 = vector.extract_strided_slice %208 {offsets = [0, 8], sizes = [8, 8], strides = [1, 1]} : vector<8x16xf32> to vector<8x8xf32>
    %211 = vector.extract_strided_slice %197 {offsets = [0, 16], sizes = [8, 8], strides = [1, 1]} : vector<8x24xf32> to vector<8x8xf32>
    %212 = vector.extract_strided_slice %200 {offsets = [0, 16], sizes = [8, 8], strides = [1, 1]} : vector<8x24xf32> to vector<8x8xf32>
    %213 = arith.mulf %209, %212 : vector<8x8xf32>
    %214 = arith.addf %211, %213 : vector<8x8xf32>
    %215 = math.tanh %214 : vector<8x8xf32>
    %cst_58 = arith.constant 1.000000e+00 : f32
    %216 = vector.broadcast %cst_58 : f32 to vector<8x8xf32>
    %217 = arith.subf %216, %210 : vector<8x8xf32>
    %218 = arith.mulf %217, %215 : vector<8x8xf32>
    %219 = arith.mulf %210, %195 : vector<8x8xf32>
    %220 = arith.addf %218, %219 : vector<8x8xf32>
    %c0_59 = arith.constant 0 : index
    %c24 = arith.constant 24 : index
    %221 = vector.load %arg6[%c0_59, %c24] : memref<8x128xf32, #tpu.memory_space<vmem>>, vector<8x8xf32>
    tpu.vector_store %arg6[%c0_59, %c24], %220 {strides = array<i32>} : memref<8x128xf32, #tpu.memory_space<vmem>>, vector<8x8xf32>,
    %222 = vector.extract_strided_slice %120 {offsets = [32, 0], sizes = [8, 24], strides = [1, 1]} : vector<128x24xf32> to vector<8x24xf32>
    %cst_60 = arith.constant dense<0.000000e+00> : vector<8x24xf32>
    %223 = tpu.matmul %220, %9, %cst_60 {dimension_numbers = #tpu.dot_dimension_numbers<[1], [0], [0], [1], [0, 0, 1, 1], [], []>} : vector<8x8xf32>, vector<8x24xf32>, vector<8x24xf32> -> vector<8x24xf32>
    %224 = vector.broadcast %11 : vector<1x24xf32> to vector<8x24xf32>
    %225 = arith.addf %223, %224 : vector<8x24xf32>
    %226 = vector.extract_strided_slice %222 {offsets = [0, 0], sizes = [8, 16], strides = [1, 1]} : vector<8x24xf32> to vector<8x16xf32>
    %227 = vector.extract_strided_slice %225 {offsets = [0, 0], sizes = [8, 16], strides = [1, 1]} : vector<8x24xf32> to vector<8x16xf32>
    %228 = arith.addf %226, %227 : vector<8x16xf32>
    %229 = arith.negf %228 : vector<8x16xf32>
    %230 = math.exp %229 : vector<8x16xf32>
    %cst_61 = arith.constant 1.000000e+00 : f32
    %231 = vector.broadcast %cst_61 : f32 to vector<8x16xf32>
    %232 = arith.addf %231, %230 : vector<8x16xf32>
    %233 = arith.divf %231, %232 : vector<8x16xf32>
    %234 = vector.extract_strided_slice %233 {offsets = [0, 0], sizes = [8, 8], strides = [1, 1]} : vector<8x16xf32> to vector<8x8xf32>
    %235 = vector.extract_strided_slice %233 {offsets = [0, 8], sizes = [8, 8], strides = [1, 1]} : vector<8x16xf32> to vector<8x8xf32>
    %236 = vector.extract_strided_slice %222 {offsets = [0, 16], sizes = [8, 8], strides = [1, 1]} : vector<8x24xf32> to vector<8x8xf32>
    %237 = vector.extract_strided_slice %225 {offsets = [0, 16], sizes = [8, 8], strides = [1, 1]} : vector<8x24xf32> to vector<8x8xf32>
    %238 = arith.mulf %234, %237 : vector<8x8xf32>
    %239 = arith.addf %236, %238 : vector<8x8xf32>
    %240 = math.tanh %239 : vector<8x8xf32>
    %cst_62 = arith.constant 1.000000e+00 : f32
    %241 = vector.broadcast %cst_62 : f32 to vector<8x8xf32>
    %242 = arith.subf %241, %235 : vector<8x8xf32>
    %243 = arith.mulf %242, %240 : vector<8x8xf32>
    %244 = arith.mulf %235, %220 : vector<8x8xf32>
    %245 = arith.addf %243, %244 : vector<8x8xf32>
    %c0_63 = arith.constant 0 : index
    %c32 = arith.constant 32 : index
    %246 = vector.load %arg6[%c0_63, %c32] : memref<8x128xf32, #tpu.memory_space<vmem>>, vector<8x8xf32>
    tpu.vector_store %arg6[%c0_63, %c32], %245 {strides = array<i32>} : memref<8x128xf32, #tpu.memory_space<vmem>>, vector<8x8xf32>,
    %247 = vector.extract_strided_slice %120 {offsets = [40, 0], sizes = [8, 24], strides = [1, 1]} : vector<128x24xf32> to vector<8x24xf32>
    %cst_64 = arith.constant dense<0.000000e+00> : vector<8x24xf32>
    %248 = tpu.matmul %245, %9, %cst_64 {dimension_numbers = #tpu.dot_dimension_numbers<[1], [0], [0], [1], [0, 0, 1, 1], [], []>} : vector<8x8xf32>, vector<8x24xf32>, vector<8x24xf32> -> vector<8x24xf32>
    %249 = vector.broadcast %11 : vector<1x24xf32> to vector<8x24xf32>
    %250 = arith.addf %248, %249 : vector<8x24xf32>
    %251 = vector.extract_strided_slice %247 {offsets = [0, 0], sizes = [8, 16], strides = [1, 1]} : vector<8x24xf32> to vector<8x16xf32>
    %252 = vector.extract_strided_slice %250 {offsets = [0, 0], sizes = [8, 16], strides = [1, 1]} : vector<8x24xf32> to vector<8x16xf32>
    %253 = arith.addf %251, %252 : vector<8x16xf32>
    %254 = arith.negf %253 : vector<8x16xf32>
    %255 = math.exp %254 : vector<8x16xf32>
    %cst_65 = arith.constant 1.000000e+00 : f32
    %256 = vector.broadcast %cst_65 : f32 to vector<8x16xf32>
    %257 = arith.addf %256, %255 : vector<8x16xf32>
    %258 = arith.divf %256, %257 : vector<8x16xf32>
    %259 = vector.extract_strided_slice %258 {offsets = [0, 0], sizes = [8, 8], strides = [1, 1]} : vector<8x16xf32> to vector<8x8xf32>
    %260 = vector.extract_strided_slice %258 {offsets = [0, 8], sizes = [8, 8], strides = [1, 1]} : vector<8x16xf32> to vector<8x8xf32>
    %261 = vector.extract_strided_slice %247 {offsets = [0, 16], sizes = [8, 8], strides = [1, 1]} : vector<8x24xf32> to vector<8x8xf32>
    %262 = vector.extract_strided_slice %250 {offsets = [0, 16], sizes = [8, 8], strides = [1, 1]} : vector<8x24xf32> to vector<8x8xf32>
    %263 = arith.mulf %259, %262 : vector<8x8xf32>
    %264 = arith.addf %261, %263 : vector<8x8xf32>
    %265 = math.tanh %264 : vector<8x8xf32>
    %cst_66 = arith.constant 1.000000e+00 : f32
    %266 = vector.broadcast %cst_66 : f32 to vector<8x8xf32>
    %267 = arith.subf %266, %260 : vector<8x8xf32>
    %268 = arith.mulf %267, %265 : vector<8x8xf32>
    %269 = arith.mulf %260, %245 : vector<8x8xf32>
    %270 = arith.addf %268, %269 : vector<8x8xf32>
    %c0_67 = arith.constant 0 : index
    %c40 = arith.constant 40 : index
    %271 = vector.load %arg6[%c0_67, %c40] : memref<8x128xf32, #tpu.memory_space<vmem>>, vector<8x8xf32>
    tpu.vector_store %arg6[%c0_67, %c40], %270 {strides = array<i32>} : memref<8x128xf32, #tpu.memory_space<vmem>>, vector<8x8xf32>,
    %272 = vector.extract_strided_slice %120 {offsets = [48, 0], sizes = [8, 24], strides = [1, 1]} : vector<128x24xf32> to vector<8x24xf32>
    %cst_68 = arith.constant dense<0.000000e+00> : vector<8x24xf32>
    %273 = tpu.matmul %270, %9, %cst_68 {dimension_numbers = #tpu.dot_dimension_numbers<[1], [0], [0], [1], [0, 0, 1, 1], [], []>} : vector<8x8xf32>, vector<8x24xf32>, vector<8x24xf32> -> vector<8x24xf32>
    %274 = vector.broadcast %11 : vector<1x24xf32> to vector<8x24xf32>
    %275 = arith.addf %273, %274 : vector<8x24xf32>
    %276 = vector.extract_strided_slice %272 {offsets = [0, 0], sizes = [8, 16], strides = [1, 1]} : vector<8x24xf32> to vector<8x16xf32>
    %277 = vector.extract_strided_slice %275 {offsets = [0, 0], sizes = [8, 16], strides = [1, 1]} : vector<8x24xf32> to vector<8x16xf32>
    %278 = arith.addf %276, %277 : vector<8x16xf32>
    %279 = arith.negf %278 : vector<8x16xf32>
    %280 = math.exp %279 : vector<8x16xf32>
    %cst_69 = arith.constant 1.000000e+00 : f32
    %281 = vector.broadcast %cst_69 : f32 to vector<8x16xf32>
    %282 = arith.addf %281, %280 : vector<8x16xf32>
    %283 = arith.divf %281, %282 : vector<8x16xf32>
    %284 = vector.extract_strided_slice %283 {offsets = [0, 0], sizes = [8, 8], strides = [1, 1]} : vector<8x16xf32> to vector<8x8xf32>
    %285 = vector.extract_strided_slice %283 {offsets = [0, 8], sizes = [8, 8], strides = [1, 1]} : vector<8x16xf32> to vector<8x8xf32>
    %286 = vector.extract_strided_slice %272 {offsets = [0, 16], sizes = [8, 8], strides = [1, 1]} : vector<8x24xf32> to vector<8x8xf32>
    %287 = vector.extract_strided_slice %275 {offsets = [0, 16], sizes = [8, 8], strides = [1, 1]} : vector<8x24xf32> to vector<8x8xf32>
    %288 = arith.mulf %284, %287 : vector<8x8xf32>
    %289 = arith.addf %286, %288 : vector<8x8xf32>
    %290 = math.tanh %289 : vector<8x8xf32>
    %cst_70 = arith.constant 1.000000e+00 : f32
    %291 = vector.broadcast %cst_70 : f32 to vector<8x8xf32>
    %292 = arith.subf %291, %285 : vector<8x8xf32>
    %293 = arith.mulf %292, %290 : vector<8x8xf32>
    %294 = arith.mulf %285, %270 : vector<8x8xf32>
    %295 = arith.addf %293, %294 : vector<8x8xf32>
    %c0_71 = arith.constant 0 : index
    %c48 = arith.constant 48 : index
    %296 = vector.load %arg6[%c0_71, %c48] : memref<8x128xf32, #tpu.memory_space<vmem>>, vector<8x8xf32>
    tpu.vector_store %arg6[%c0_71, %c48], %295 {strides = array<i32>} : memref<8x128xf32, #tpu.memory_space<vmem>>, vector<8x8xf32>,
    %297 = vector.extract_strided_slice %120 {offsets = [56, 0], sizes = [8, 24], strides = [1, 1]} : vector<128x24xf32> to vector<8x24xf32>
    %cst_72 = arith.constant dense<0.000000e+00> : vector<8x24xf32>
    %298 = tpu.matmul %295, %9, %cst_72 {dimension_numbers = #tpu.dot_dimension_numbers<[1], [0], [0], [1], [0, 0, 1, 1], [], []>} : vector<8x8xf32>, vector<8x24xf32>, vector<8x24xf32> -> vector<8x24xf32>
    %299 = vector.broadcast %11 : vector<1x24xf32> to vector<8x24xf32>
    %300 = arith.addf %298, %299 : vector<8x24xf32>
    %301 = vector.extract_strided_slice %297 {offsets = [0, 0], sizes = [8, 16], strides = [1, 1]} : vector<8x24xf32> to vector<8x16xf32>
    %302 = vector.extract_strided_slice %300 {offsets = [0, 0], sizes = [8, 16], strides = [1, 1]} : vector<8x24xf32> to vector<8x16xf32>
    %303 = arith.addf %301, %302 : vector<8x16xf32>
    %304 = arith.negf %303 : vector<8x16xf32>
    %305 = math.exp %304 : vector<8x16xf32>
    %cst_73 = arith.constant 1.000000e+00 : f32
    %306 = vector.broadcast %cst_73 : f32 to vector<8x16xf32>
    %307 = arith.addf %306, %305 : vector<8x16xf32>
    %308 = arith.divf %306, %307 : vector<8x16xf32>
    %309 = vector.extract_strided_slice %308 {offsets = [0, 0], sizes = [8, 8], strides = [1, 1]} : vector<8x16xf32> to vector<8x8xf32>
    %310 = vector.extract_strided_slice %308 {offsets = [0, 8], sizes = [8, 8], strides = [1, 1]} : vector<8x16xf32> to vector<8x8xf32>
    %311 = vector.extract_strided_slice %297 {offsets = [0, 16], sizes = [8, 8], strides = [1, 1]} : vector<8x24xf32> to vector<8x8xf32>
    %312 = vector.extract_strided_slice %300 {offsets = [0, 16], sizes = [8, 8], strides = [1, 1]} : vector<8x24xf32> to vector<8x8xf32>
    %313 = arith.mulf %309, %312 : vector<8x8xf32>
    %314 = arith.addf %311, %313 : vector<8x8xf32>
    %315 = math.tanh %314 : vector<8x8xf32>
    %cst_74 = arith.constant 1.000000e+00 : f32
    %316 = vector.broadcast %cst_74 : f32 to vector<8x8xf32>
    %317 = arith.subf %316, %310 : vector<8x8xf32>
    %318 = arith.mulf %317, %315 : vector<8x8xf32>
    %319 = arith.mulf %310, %295 : vector<8x8xf32>
    %320 = arith.addf %318, %319 : vector<8x8xf32>
    %c0_75 = arith.constant 0 : index
    %c56 = arith.constant 56 : index
    %321 = vector.load %arg6[%c0_75, %c56] : memref<8x128xf32, #tpu.memory_space<vmem>>, vector<8x8xf32>
    tpu.vector_store %arg6[%c0_75, %c56], %320 {strides = array<i32>} : memref<8x128xf32, #tpu.memory_space<vmem>>, vector<8x8xf32>,
    %322 = vector.extract_strided_slice %120 {offsets = [64, 0], sizes = [8, 24], strides = [1, 1]} : vector<128x24xf32> to vector<8x24xf32>
    %cst_76 = arith.constant dense<0.000000e+00> : vector<8x24xf32>
    %323 = tpu.matmul %320, %9, %cst_76 {dimension_numbers = #tpu.dot_dimension_numbers<[1], [0], [0], [1], [0, 0, 1, 1], [], []>} : vector<8x8xf32>, vector<8x24xf32>, vector<8x24xf32> -> vector<8x24xf32>
    %324 = vector.broadcast %11 : vector<1x24xf32> to vector<8x24xf32>
    %325 = arith.addf %323, %324 : vector<8x24xf32>
    %326 = vector.extract_strided_slice %322 {offsets = [0, 0], sizes = [8, 16], strides = [1, 1]} : vector<8x24xf32> to vector<8x16xf32>
    %327 = vector.extract_strided_slice %325 {offsets = [0, 0], sizes = [8, 16], strides = [1, 1]} : vector<8x24xf32> to vector<8x16xf32>
    %328 = arith.addf %326, %327 : vector<8x16xf32>
    %329 = arith.negf %328 : vector<8x16xf32>
    %330 = math.exp %329 : vector<8x16xf32>
    %cst_77 = arith.constant 1.000000e+00 : f32
    %331 = vector.broadcast %cst_77 : f32 to vector<8x16xf32>
    %332 = arith.addf %331, %330 : vector<8x16xf32>
    %333 = arith.divf %331, %332 : vector<8x16xf32>
    %334 = vector.extract_strided_slice %333 {offsets = [0, 0], sizes = [8, 8], strides = [1, 1]} : vector<8x16xf32> to vector<8x8xf32>
    %335 = vector.extract_strided_slice %333 {offsets = [0, 8], sizes = [8, 8], strides = [1, 1]} : vector<8x16xf32> to vector<8x8xf32>
    %336 = vector.extract_strided_slice %322 {offsets = [0, 16], sizes = [8, 8], strides = [1, 1]} : vector<8x24xf32> to vector<8x8xf32>
    %337 = vector.extract_strided_slice %325 {offsets = [0, 16], sizes = [8, 8], strides = [1, 1]} : vector<8x24xf32> to vector<8x8xf32>
    %338 = arith.mulf %334, %337 : vector<8x8xf32>
    %339 = arith.addf %336, %338 : vector<8x8xf32>
    %340 = math.tanh %339 : vector<8x8xf32>
    %cst_78 = arith.constant 1.000000e+00 : f32
    %341 = vector.broadcast %cst_78 : f32 to vector<8x8xf32>
    %342 = arith.subf %341, %335 : vector<8x8xf32>
    %343 = arith.mulf %342, %340 : vector<8x8xf32>
    %344 = arith.mulf %335, %320 : vector<8x8xf32>
    %345 = arith.addf %343, %344 : vector<8x8xf32>
    %c0_79 = arith.constant 0 : index
    %c64 = arith.constant 64 : index
    %346 = vector.load %arg6[%c0_79, %c64] : memref<8x128xf32, #tpu.memory_space<vmem>>, vector<8x8xf32>
    tpu.vector_store %arg6[%c0_79, %c64], %345 {strides = array<i32>} : memref<8x128xf32, #tpu.memory_space<vmem>>, vector<8x8xf32>,
    %347 = vector.extract_strided_slice %120 {offsets = [72, 0], sizes = [8, 24], strides = [1, 1]} : vector<128x24xf32> to vector<8x24xf32>
    %cst_80 = arith.constant dense<0.000000e+00> : vector<8x24xf32>
    %348 = tpu.matmul %345, %9, %cst_80 {dimension_numbers = #tpu.dot_dimension_numbers<[1], [0], [0], [1], [0, 0, 1, 1], [], []>} : vector<8x8xf32>, vector<8x24xf32>, vector<8x24xf32> -> vector<8x24xf32>
    %349 = vector.broadcast %11 : vector<1x24xf32> to vector<8x24xf32>
    %350 = arith.addf %348, %349 : vector<8x24xf32>
    %351 = vector.extract_strided_slice %347 {offsets = [0, 0], sizes = [8, 16], strides = [1, 1]} : vector<8x24xf32> to vector<8x16xf32>
    %352 = vector.extract_strided_slice %350 {offsets = [0, 0], sizes = [8, 16], strides = [1, 1]} : vector<8x24xf32> to vector<8x16xf32>
    %353 = arith.addf %351, %352 : vector<8x16xf32>
    %354 = arith.negf %353 : vector<8x16xf32>
    %355 = math.exp %354 : vector<8x16xf32>
    %cst_81 = arith.constant 1.000000e+00 : f32
    %356 = vector.broadcast %cst_81 : f32 to vector<8x16xf32>
    %357 = arith.addf %356, %355 : vector<8x16xf32>
    %358 = arith.divf %356, %357 : vector<8x16xf32>
    %359 = vector.extract_strided_slice %358 {offsets = [0, 0], sizes = [8, 8], strides = [1, 1]} : vector<8x16xf32> to vector<8x8xf32>
    %360 = vector.extract_strided_slice %358 {offsets = [0, 8], sizes = [8, 8], strides = [1, 1]} : vector<8x16xf32> to vector<8x8xf32>
    %361 = vector.extract_strided_slice %347 {offsets = [0, 16], sizes = [8, 8], strides = [1, 1]} : vector<8x24xf32> to vector<8x8xf32>
    %362 = vector.extract_strided_slice %350 {offsets = [0, 16], sizes = [8, 8], strides = [1, 1]} : vector<8x24xf32> to vector<8x8xf32>
    %363 = arith.mulf %359, %362 : vector<8x8xf32>
    %364 = arith.addf %361, %363 : vector<8x8xf32>
    %365 = math.tanh %364 : vector<8x8xf32>
    %cst_82 = arith.constant 1.000000e+00 : f32
    %366 = vector.broadcast %cst_82 : f32 to vector<8x8xf32>
    %367 = arith.subf %366, %360 : vector<8x8xf32>
    %368 = arith.mulf %367, %365 : vector<8x8xf32>
    %369 = arith.mulf %360, %345 : vector<8x8xf32>
    %370 = arith.addf %368, %369 : vector<8x8xf32>
    %c0_83 = arith.constant 0 : index
    %c72 = arith.constant 72 : index
    %371 = vector.load %arg6[%c0_83, %c72] : memref<8x128xf32, #tpu.memory_space<vmem>>, vector<8x8xf32>
    tpu.vector_store %arg6[%c0_83, %c72], %370 {strides = array<i32>} : memref<8x128xf32, #tpu.memory_space<vmem>>, vector<8x8xf32>,
    %372 = vector.extract_strided_slice %120 {offsets = [80, 0], sizes = [8, 24], strides = [1, 1]} : vector<128x24xf32> to vector<8x24xf32>
    %cst_84 = arith.constant dense<0.000000e+00> : vector<8x24xf32>
    %373 = tpu.matmul %370, %9, %cst_84 {dimension_numbers = #tpu.dot_dimension_numbers<[1], [0], [0], [1], [0, 0, 1, 1], [], []>} : vector<8x8xf32>, vector<8x24xf32>, vector<8x24xf32> -> vector<8x24xf32>
    %374 = vector.broadcast %11 : vector<1x24xf32> to vector<8x24xf32>
    %375 = arith.addf %373, %374 : vector<8x24xf32>
    %376 = vector.extract_strided_slice %372 {offsets = [0, 0], sizes = [8, 16], strides = [1, 1]} : vector<8x24xf32> to vector<8x16xf32>
    %377 = vector.extract_strided_slice %375 {offsets = [0, 0], sizes = [8, 16], strides = [1, 1]} : vector<8x24xf32> to vector<8x16xf32>
    %378 = arith.addf %376, %377 : vector<8x16xf32>
    %379 = arith.negf %378 : vector<8x16xf32>
    %380 = math.exp %379 : vector<8x16xf32>
    %cst_85 = arith.constant 1.000000e+00 : f32
    %381 = vector.broadcast %cst_85 : f32 to vector<8x16xf32>
    %382 = arith.addf %381, %380 : vector<8x16xf32>
    %383 = arith.divf %381, %382 : vector<8x16xf32>
    %384 = vector.extract_strided_slice %383 {offsets = [0, 0], sizes = [8, 8], strides = [1, 1]} : vector<8x16xf32> to vector<8x8xf32>
    %385 = vector.extract_strided_slice %383 {offsets = [0, 8], sizes = [8, 8], strides = [1, 1]} : vector<8x16xf32> to vector<8x8xf32>
    %386 = vector.extract_strided_slice %372 {offsets = [0, 16], sizes = [8, 8], strides = [1, 1]} : vector<8x24xf32> to vector<8x8xf32>
    %387 = vector.extract_strided_slice %375 {offsets = [0, 16], sizes = [8, 8], strides = [1, 1]} : vector<8x24xf32> to vector<8x8xf32>
    %388 = arith.mulf %384, %387 : vector<8x8xf32>
    %389 = arith.addf %386, %388 : vector<8x8xf32>
    %390 = math.tanh %389 : vector<8x8xf32>
    %cst_86 = arith.constant 1.000000e+00 : f32
    %391 = vector.broadcast %cst_86 : f32 to vector<8x8xf32>
    %392 = arith.subf %391, %385 : vector<8x8xf32>
    %393 = arith.mulf %392, %390 : vector<8x8xf32>
    %394 = arith.mulf %385, %370 : vector<8x8xf32>
    %395 = arith.addf %393, %394 : vector<8x8xf32>
    %c0_87 = arith.constant 0 : index
    %c80 = arith.constant 80 : index
    %396 = vector.load %arg6[%c0_87, %c80] : memref<8x128xf32, #tpu.memory_space<vmem>>, vector<8x8xf32>
    tpu.vector_store %arg6[%c0_87, %c80], %395 {strides = array<i32>} : memref<8x128xf32, #tpu.memory_space<vmem>>, vector<8x8xf32>,
    %397 = vector.extract_strided_slice %120 {offsets = [88, 0], sizes = [8, 24], strides = [1, 1]} : vector<128x24xf32> to vector<8x24xf32>
    %cst_88 = arith.constant dense<0.000000e+00> : vector<8x24xf32>
    %398 = tpu.matmul %395, %9, %cst_88 {dimension_numbers = #tpu.dot_dimension_numbers<[1], [0], [0], [1], [0, 0, 1, 1], [], []>} : vector<8x8xf32>, vector<8x24xf32>, vector<8x24xf32> -> vector<8x24xf32>
    %399 = vector.broadcast %11 : vector<1x24xf32> to vector<8x24xf32>
    %400 = arith.addf %398, %399 : vector<8x24xf32>
    %401 = vector.extract_strided_slice %397 {offsets = [0, 0], sizes = [8, 16], strides = [1, 1]} : vector<8x24xf32> to vector<8x16xf32>
    %402 = vector.extract_strided_slice %400 {offsets = [0, 0], sizes = [8, 16], strides = [1, 1]} : vector<8x24xf32> to vector<8x16xf32>
    %403 = arith.addf %401, %402 : vector<8x16xf32>
    %404 = arith.negf %403 : vector<8x16xf32>
    %405 = math.exp %404 : vector<8x16xf32>
    %cst_89 = arith.constant 1.000000e+00 : f32
    %406 = vector.broadcast %cst_89 : f32 to vector<8x16xf32>
    %407 = arith.addf %406, %405 : vector<8x16xf32>
    %408 = arith.divf %406, %407 : vector<8x16xf32>
    %409 = vector.extract_strided_slice %408 {offsets = [0, 0], sizes = [8, 8], strides = [1, 1]} : vector<8x16xf32> to vector<8x8xf32>
    %410 = vector.extract_strided_slice %408 {offsets = [0, 8], sizes = [8, 8], strides = [1, 1]} : vector<8x16xf32> to vector<8x8xf32>
    %411 = vector.extract_strided_slice %397 {offsets = [0, 16], sizes = [8, 8], strides = [1, 1]} : vector<8x24xf32> to vector<8x8xf32>
    %412 = vector.extract_strided_slice %400 {offsets = [0, 16], sizes = [8, 8], strides = [1, 1]} : vector<8x24xf32> to vector<8x8xf32>
    %413 = arith.mulf %409, %412 : vector<8x8xf32>
    %414 = arith.addf %411, %413 : vector<8x8xf32>
    %415 = math.tanh %414 : vector<8x8xf32>
    %cst_90 = arith.constant 1.000000e+00 : f32
    %416 = vector.broadcast %cst_90 : f32 to vector<8x8xf32>
    %417 = arith.subf %416, %410 : vector<8x8xf32>
    %418 = arith.mulf %417, %415 : vector<8x8xf32>
    %419 = arith.mulf %410, %395 : vector<8x8xf32>
    %420 = arith.addf %418, %419 : vector<8x8xf32>
    %c0_91 = arith.constant 0 : index
    %c88 = arith.constant 88 : index
    %421 = vector.load %arg6[%c0_91, %c88] : memref<8x128xf32, #tpu.memory_space<vmem>>, vector<8x8xf32>
    tpu.vector_store %arg6[%c0_91, %c88], %420 {strides = array<i32>} : memref<8x128xf32, #tpu.memory_space<vmem>>, vector<8x8xf32>,
    %422 = vector.extract_strided_slice %120 {offsets = [96, 0], sizes = [8, 24], strides = [1, 1]} : vector<128x24xf32> to vector<8x24xf32>
    %cst_92 = arith.constant dense<0.000000e+00> : vector<8x24xf32>
    %423 = tpu.matmul %420, %9, %cst_92 {dimension_numbers = #tpu.dot_dimension_numbers<[1], [0], [0], [1], [0, 0, 1, 1], [], []>} : vector<8x8xf32>, vector<8x24xf32>, vector<8x24xf32> -> vector<8x24xf32>
    %424 = vector.broadcast %11 : vector<1x24xf32> to vector<8x24xf32>
    %425 = arith.addf %423, %424 : vector<8x24xf32>
    %426 = vector.extract_strided_slice %422 {offsets = [0, 0], sizes = [8, 16], strides = [1, 1]} : vector<8x24xf32> to vector<8x16xf32>
    %427 = vector.extract_strided_slice %425 {offsets = [0, 0], sizes = [8, 16], strides = [1, 1]} : vector<8x24xf32> to vector<8x16xf32>
    %428 = arith.addf %426, %427 : vector<8x16xf32>
    %429 = arith.negf %428 : vector<8x16xf32>
    %430 = math.exp %429 : vector<8x16xf32>
    %cst_93 = arith.constant 1.000000e+00 : f32
    %431 = vector.broadcast %cst_93 : f32 to vector<8x16xf32>
    %432 = arith.addf %431, %430 : vector<8x16xf32>
    %433 = arith.divf %431, %432 : vector<8x16xf32>
    %434 = vector.extract_strided_slice %433 {offsets = [0, 0], sizes = [8, 8], strides = [1, 1]} : vector<8x16xf32> to vector<8x8xf32>
    %435 = vector.extract_strided_slice %433 {offsets = [0, 8], sizes = [8, 8], strides = [1, 1]} : vector<8x16xf32> to vector<8x8xf32>
    %436 = vector.extract_strided_slice %422 {offsets = [0, 16], sizes = [8, 8], strides = [1, 1]} : vector<8x24xf32> to vector<8x8xf32>
    %437 = vector.extract_strided_slice %425 {offsets = [0, 16], sizes = [8, 8], strides = [1, 1]} : vector<8x24xf32> to vector<8x8xf32>
    %438 = arith.mulf %434, %437 : vector<8x8xf32>
    %439 = arith.addf %436, %438 : vector<8x8xf32>
    %440 = math.tanh %439 : vector<8x8xf32>
    %cst_94 = arith.constant 1.000000e+00 : f32
    %441 = vector.broadcast %cst_94 : f32 to vector<8x8xf32>
    %442 = arith.subf %441, %435 : vector<8x8xf32>
    %443 = arith.mulf %442, %440 : vector<8x8xf32>
    %444 = arith.mulf %435, %420 : vector<8x8xf32>
    %445 = arith.addf %443, %444 : vector<8x8xf32>
    %c0_95 = arith.constant 0 : index
    %c96 = arith.constant 96 : index
    %446 = vector.load %arg6[%c0_95, %c96] : memref<8x128xf32, #tpu.memory_space<vmem>>, vector<8x8xf32>
    tpu.vector_store %arg6[%c0_95, %c96], %445 {strides = array<i32>} : memref<8x128xf32, #tpu.memory_space<vmem>>, vector<8x8xf32>,
    %447 = vector.extract_strided_slice %120 {offsets = [104, 0], sizes = [8, 24], strides = [1, 1]} : vector<128x24xf32> to vector<8x24xf32>
    %cst_96 = arith.constant dense<0.000000e+00> : vector<8x24xf32>
    %448 = tpu.matmul %445, %9, %cst_96 {dimension_numbers = #tpu.dot_dimension_numbers<[1], [0], [0], [1], [0, 0, 1, 1], [], []>} : vector<8x8xf32>, vector<8x24xf32>, vector<8x24xf32> -> vector<8x24xf32>
    %449 = vector.broadcast %11 : vector<1x24xf32> to vector<8x24xf32>
    %450 = arith.addf %448, %449 : vector<8x24xf32>
    %451 = vector.extract_strided_slice %447 {offsets = [0, 0], sizes = [8, 16], strides = [1, 1]} : vector<8x24xf32> to vector<8x16xf32>
    %452 = vector.extract_strided_slice %450 {offsets = [0, 0], sizes = [8, 16], strides = [1, 1]} : vector<8x24xf32> to vector<8x16xf32>
    %453 = arith.addf %451, %452 : vector<8x16xf32>
    %454 = arith.negf %453 : vector<8x16xf32>
    %455 = math.exp %454 : vector<8x16xf32>
    %cst_97 = arith.constant 1.000000e+00 : f32
    %456 = vector.broadcast %cst_97 : f32 to vector<8x16xf32>
    %457 = arith.addf %456, %455 : vector<8x16xf32>
    %458 = arith.divf %456, %457 : vector<8x16xf32>
    %459 = vector.extract_strided_slice %458 {offsets = [0, 0], sizes = [8, 8], strides = [1, 1]} : vector<8x16xf32> to vector<8x8xf32>
    %460 = vector.extract_strided_slice %458 {offsets = [0, 8], sizes = [8, 8], strides = [1, 1]} : vector<8x16xf32> to vector<8x8xf32>
    %461 = vector.extract_strided_slice %447 {offsets = [0, 16], sizes = [8, 8], strides = [1, 1]} : vector<8x24xf32> to vector<8x8xf32>
    %462 = vector.extract_strided_slice %450 {offsets = [0, 16], sizes = [8, 8], strides = [1, 1]} : vector<8x24xf32> to vector<8x8xf32>
    %463 = arith.mulf %459, %462 : vector<8x8xf32>
    %464 = arith.addf %461, %463 : vector<8x8xf32>
    %465 = math.tanh %464 : vector<8x8xf32>
    %cst_98 = arith.constant 1.000000e+00 : f32
    %466 = vector.broadcast %cst_98 : f32 to vector<8x8xf32>
    %467 = arith.subf %466, %460 : vector<8x8xf32>
    %468 = arith.mulf %467, %465 : vector<8x8xf32>
    %469 = arith.mulf %460, %445 : vector<8x8xf32>
    %470 = arith.addf %468, %469 : vector<8x8xf32>
    %c0_99 = arith.constant 0 : index
    %c104 = arith.constant 104 : index
    %471 = vector.load %arg6[%c0_99, %c104] : memref<8x128xf32, #tpu.memory_space<vmem>>, vector<8x8xf32>
    tpu.vector_store %arg6[%c0_99, %c104], %470 {strides = array<i32>} : memref<8x128xf32, #tpu.memory_space<vmem>>, vector<8x8xf32>,
    %472 = vector.extract_strided_slice %120 {offsets = [112, 0], sizes = [8, 24], strides = [1, 1]} : vector<128x24xf32> to vector<8x24xf32>
    %cst_100 = arith.constant dense<0.000000e+00> : vector<8x24xf32>
    %473 = tpu.matmul %470, %9, %cst_100 {dimension_numbers = #tpu.dot_dimension_numbers<[1], [0], [0], [1], [0, 0, 1, 1], [], []>} : vector<8x8xf32>, vector<8x24xf32>, vector<8x24xf32> -> vector<8x24xf32>
    %474 = vector.broadcast %11 : vector<1x24xf32> to vector<8x24xf32>
    %475 = arith.addf %473, %474 : vector<8x24xf32>
    %476 = vector.extract_strided_slice %472 {offsets = [0, 0], sizes = [8, 16], strides = [1, 1]} : vector<8x24xf32> to vector<8x16xf32>
    %477 = vector.extract_strided_slice %475 {offsets = [0, 0], sizes = [8, 16], strides = [1, 1]} : vector<8x24xf32> to vector<8x16xf32>
    %478 = arith.addf %476, %477 : vector<8x16xf32>
    %479 = arith.negf %478 : vector<8x16xf32>
    %480 = math.exp %479 : vector<8x16xf32>
    %cst_101 = arith.constant 1.000000e+00 : f32
    %481 = vector.broadcast %cst_101 : f32 to vector<8x16xf32>
    %482 = arith.addf %481, %480 : vector<8x16xf32>
    %483 = arith.divf %481, %482 : vector<8x16xf32>
    %484 = vector.extract_strided_slice %483 {offsets = [0, 0], sizes = [8, 8], strides = [1, 1]} : vector<8x16xf32> to vector<8x8xf32>
    %485 = vector.extract_strided_slice %483 {offsets = [0, 8], sizes = [8, 8], strides = [1, 1]} : vector<8x16xf32> to vector<8x8xf32>
    %486 = vector.extract_strided_slice %472 {offsets = [0, 16], sizes = [8, 8], strides = [1, 1]} : vector<8x24xf32> to vector<8x8xf32>
    %487 = vector.extract_strided_slice %475 {offsets = [0, 16], sizes = [8, 8], strides = [1, 1]} : vector<8x24xf32> to vector<8x8xf32>
    %488 = arith.mulf %484, %487 : vector<8x8xf32>
    %489 = arith.addf %486, %488 : vector<8x8xf32>
    %490 = math.tanh %489 : vector<8x8xf32>
    %cst_102 = arith.constant 1.000000e+00 : f32
    %491 = vector.broadcast %cst_102 : f32 to vector<8x8xf32>
    %492 = arith.subf %491, %485 : vector<8x8xf32>
    %493 = arith.mulf %492, %490 : vector<8x8xf32>
    %494 = arith.mulf %485, %470 : vector<8x8xf32>
    %495 = arith.addf %493, %494 : vector<8x8xf32>
    %c0_103 = arith.constant 0 : index
    %c112 = arith.constant 112 : index
    %496 = vector.load %arg6[%c0_103, %c112] : memref<8x128xf32, #tpu.memory_space<vmem>>, vector<8x8xf32>
    tpu.vector_store %arg6[%c0_103, %c112], %495 {strides = array<i32>} : memref<8x128xf32, #tpu.memory_space<vmem>>, vector<8x8xf32>,
    %497 = vector.extract_strided_slice %120 {offsets = [120, 0], sizes = [8, 24], strides = [1, 1]} : vector<128x24xf32> to vector<8x24xf32>
    %cst_104 = arith.constant dense<0.000000e+00> : vector<8x24xf32>
    %498 = tpu.matmul %495, %9, %cst_104 {dimension_numbers = #tpu.dot_dimension_numbers<[1], [0], [0], [1], [0, 0, 1, 1], [], []>} : vector<8x8xf32>, vector<8x24xf32>, vector<8x24xf32> -> vector<8x24xf32>
    %499 = vector.broadcast %11 : vector<1x24xf32> to vector<8x24xf32>
    %500 = arith.addf %498, %499 : vector<8x24xf32>
    %501 = vector.extract_strided_slice %497 {offsets = [0, 0], sizes = [8, 16], strides = [1, 1]} : vector<8x24xf32> to vector<8x16xf32>
    %502 = vector.extract_strided_slice %500 {offsets = [0, 0], sizes = [8, 16], strides = [1, 1]} : vector<8x24xf32> to vector<8x16xf32>
    %503 = arith.addf %501, %502 : vector<8x16xf32>
    %504 = arith.negf %503 : vector<8x16xf32>
    %505 = math.exp %504 : vector<8x16xf32>
    %cst_105 = arith.constant 1.000000e+00 : f32
    %506 = vector.broadcast %cst_105 : f32 to vector<8x16xf32>
    %507 = arith.addf %506, %505 : vector<8x16xf32>
    %508 = arith.divf %506, %507 : vector<8x16xf32>
    %509 = vector.extract_strided_slice %508 {offsets = [0, 0], sizes = [8, 8], strides = [1, 1]} : vector<8x16xf32> to vector<8x8xf32>
    %510 = vector.extract_strided_slice %508 {offsets = [0, 8], sizes = [8, 8], strides = [1, 1]} : vector<8x16xf32> to vector<8x8xf32>
    %511 = vector.extract_strided_slice %497 {offsets = [0, 16], sizes = [8, 8], strides = [1, 1]} : vector<8x24xf32> to vector<8x8xf32>
    %512 = vector.extract_strided_slice %500 {offsets = [0, 16], sizes = [8, 8], strides = [1, 1]} : vector<8x24xf32> to vector<8x8xf32>
    %513 = arith.mulf %509, %512 : vector<8x8xf32>
    %514 = arith.addf %511, %513 : vector<8x8xf32>
    %515 = math.tanh %514 : vector<8x8xf32>
    %cst_106 = arith.constant 1.000000e+00 : f32
    %516 = vector.broadcast %cst_106 : f32 to vector<8x8xf32>
    %517 = arith.subf %516, %510 : vector<8x8xf32>
    %518 = arith.mulf %517, %515 : vector<8x8xf32>
    %519 = arith.mulf %510, %495 : vector<8x8xf32>
    %520 = arith.addf %518, %519 : vector<8x8xf32>
    %c0_107 = arith.constant 0 : index
    %c120 = arith.constant 120 : index
    %521 = vector.load %arg6[%c0_107, %c120] : memref<8x128xf32, #tpu.memory_space<vmem>>, vector<8x8xf32>
    tpu.vector_store %arg6[%c0_107, %c120], %520 {strides = array<i32>} : memref<8x128xf32, #tpu.memory_space<vmem>>, vector<8x8xf32>,
    %c0_108 = arith.constant 0 : index
    %c0_109 = arith.constant 0 : index
    %522 = vector.load %arg4[%c0_108, %c0_109] : memref<240x128xf32, #tpu.memory_space<vmem>>, vector<128x128xf32>
    %c128 = arith.constant 128 : index
    %c0_110 = arith.constant 0 : index
    %523 = vector.load %arg4[%c128, %c0_110] : memref<240x128xf32, #tpu.memory_space<vmem>>, vector<1x128xf32>
    %c0_111 = arith.constant 0 : index
    %c0_112 = arith.constant 0 : index
    %524 = vector.load %arg6[%c0_111, %c0_112] : memref<8x128xf32, #tpu.memory_space<vmem>>, vector<8x128xf32>
    %cst_113 = arith.constant dense<0.000000e+00> : vector<8x128xf32>
    %525 = tpu.matmul %524, %522, %cst_113 {dimension_numbers = #tpu.dot_dimension_numbers<[1], [0], [0], [1], [0, 0, 1, 1], [], []>} : vector<8x128xf32>, vector<128x128xf32>, vector<8x128xf32> -> vector<8x128xf32>
    %526 = vector.broadcast %523 : vector<1x128xf32> to vector<8x128xf32>
    %527 = arith.addf %525, %526 : vector<8x128xf32>
    %528 = vector.extract_strided_slice %527 {offsets = [0, 0], sizes = [3, 128], strides = [1, 1]} : vector<8x128xf32> to vector<3x128xf32>
    %c0_114 = arith.constant 0 : index
    %c0_115 = arith.constant 0 : index
    %529 = vector.load %arg5[%c0_114, %c0_115] : memref<3x128xf32, #tpu.memory_space<vmem>>, vector<3x128xf32>
    tpu.vector_store %arg5[%c0_114, %c0_115], %528 {strides = array<i32>} : memref<3x128xf32, #tpu.memory_space<vmem>>, vector<3x128xf32>,
    return
  }
}

</mosaic_0001>

<llo_original>
// kernel: argus_forward.1
$region0: #{argus_forward.1}
  #allocation0 [shape = 'u32[]', space=smem, size = 0x4, offset = 0x4, fixed_abs, tag = 'smem constant byte address 0x4 - core index']
  #allocation1 [shape = 'u32[144,128]{1,0:T(1,128)}', space=vmem, size = 0x12000, scoped, tag = 'internal scratch']
  #allocation2 [shape = 'f32[8,128]{1,0:T(8,128)}', space=vmem, size = 0x1000, scoped, tag = 'scratch operand']
  %s0 = inlined_call_operand.vmem [shape: f32[16,16], index: 0, kind: input, shape index: {}]
  %s1 = inlined_call_operand.vmem [shape: s32[96,1], index: 1, kind: input, shape index: {}]
  %s2 = inlined_call_operand.vmem [shape: s32[1,96], index: 2, kind: input, shape index: {}]
  %s3 = inlined_call_operand.vmem [shape: f32[96,4], index: 3, kind: input, shape index: {}]
  %s4 = inlined_call_operand.hbm [shape: f32[240,128], index: 4, kind: input, shape index: {}]
  %s5 = inlined_call_operand.vmem [shape: f32[3,128], index: 5, kind: output, shape index: {}]
  %s6 = sld [smem:[#allocation0]]
  $region34: #{argus_forward.1} parent=0
    _
  %s8 = ssub.s32 1, %s6
  %s9 = scalar_select 0, %s8, %s6
  $region1: #{argus_forward.1} parent=0
    #allocation3 [shape = 'u8[122880]{0}', space=vmem, size = 0x1e000, scoped, tag = 'input window, operand 4, single buffered']
    #allocation4 [shape = 's32[1]{0}', space=sflag, size = 0x4, scoped, tag = 'scoped memory for argus_forward.1']
    %10 = vsyncpa [#allocation4], 0
    // Predicated region
    $region2: #{argus_forward.1} parent=1 // pred_check
      _
    $region3: #{argus_forward.1} parent=1 // pred_check_branch
      %12 = sbr.rel (0) target = $region5
    $region4: #{argus_forward.1} parent=1 // pred_region
      _
    $region5: #{argus_forward.1} parent=1 // pred_fallthru
      _
    // Predicated region
    $region6: #{argus_forward.1} parent=1 // pred_check
      _
    $region7: #{argus_forward.1} parent=1 // pred_check_branch
      %14 = sbr.rel (0) target = $region9
    $region8: #{argus_forward.1} parent=1 // pred_region
      _
    $region9: #{argus_forward.1} parent=1 // pred_fallthru
      _
    // Predicated region
    $region10: #{argus_forward.1} parent=1 // pred_check
      _
    $region11: #{argus_forward.1} parent=1 // pred_check_branch
      %16 = sbr.rel (0) target = $region13
    $region12: #{argus_forward.1} parent=1 // pred_region
      _
    $region13: #{argus_forward.1} parent=1 // pred_fallthru
      _
    // Predicated region
    $region14: #{argus_forward.1} parent=1 // pred_check
      _
    $region15: #{argus_forward.1} parent=1 // pred_check_branch
      %18 = sbr.rel (0) target = $region17
    $region16: #{argus_forward.1} parent=1 // pred_region
      _
    $region17: #{argus_forward.1} parent=1 // pred_fallthru
      _
    // Predicated region
    $region18: #{argus_forward.1} parent=1 // pred_check
      _
    $region19: #{argus_forward.1} parent=1 // pred_check_branch
      %20 = sbr.rel (0) target = $region21
    $region20: #{argus_forward.1} parent=1 // pred_region
      %s22 = ssub.s32 3840, 3840
      %23 = vsyncadd [#allocation4], %s22
      %s24 = sshll.u32 [#allocation3], 4
      %s25 = int_to_ptr.vmem [resolvable:$true] %s24
      %30 = dma.hbm_to_vmem [thread:$0]  %s4, 3840, %s25, [#allocation4], 128, 128, 8
    $region21: #{argus_forward.1} parent=1 // pred_fallthru
      _
    // Predicated region
    $region22: #{argus_forward.1} parent=1 // pred_check
      _
    $region23: #{argus_forward.1} parent=1 // pred_check_branch
      %32 = sbr.rel (0) target = $region25
    $region24: #{argus_forward.1} parent=1 // pred_region
      %33 = dma.done [#allocation4], 3840
    $region25: #{argus_forward.1} parent=1 // pred_fallthru
      _
    %v35 = vld [vmem:[#allocation3 + $0x88] sm:$0xff]
    %v36 = vld [vmem:[#allocation3 + $0x90] sm:$0xff]
    %v37 = vld [vmem:[#allocation3 + $0x98] sm:$0x1]
    %v38 = vld [vmem:[#allocation3 + $0xa0] sm:$0xf]
    %v39 = vld [vmem:[#allocation3 + $0xa8] sm:$0x1]
    %v40 = vld [vmem:[#allocation3 + $0xb0] sm:$0xff]
    %v41 = vld [vmem:[#allocation3 + $0xb8] sm:$0x1]
    %v42 = vld [vmem:[#allocation3 + $0xc0] sm:$0xff]
    %v43 = vld [vmem:[#allocation3 + $0xc8] sm:$0x1]
    %v44 = vld [vmem:[#allocation3 + $0xd0] sm:$0xff]
    %v45 = vld [vmem:[#allocation3 + $0xd8] sm:$0xff]
    %v46 = vld [vmem:[#allocation3 + $0xe0] sm:$0x1]
    %v47 = vld [vmem:[#allocation3 + $0xe8] sm:$0x1]
    %v48 = vld [vmem:[%s1] sm:$0xff]
    %v49 = vld [vmem:[%s1 + $0x8] sm:$0xff]
    %v50 = vld [vmem:[%s1 + $0x10] sm:$0xff]
    %v51 = vld [vmem:[%s1 + $0x18] sm:$0xff]
    %v52 = vld [vmem:[%s1 + $0x20] sm:$0xff]
    %v53 = vld [vmem:[%s1 + $0x28] sm:$0xff]
    %v54 = vld [vmem:[%s1 + $0x30] sm:$0xff]
    %v55 = vld [vmem:[%s1 + $0x38] sm:$0xff]
    %v56 = vld [vmem:[%s1 + $0x40] sm:$0xff]
    %v57 = vld [vmem:[%s1 + $0x48] sm:$0xff]
    %v58 = vld [vmem:[%s1 + $0x50] sm:$0xff]
    %v59 = vld [vmem:[%s1 + $0x58] sm:$0xff]
    %v60 = vld [vmem:[%s2] sm:$0x1]
    %v61 = vlaneseq
    %v62 = vshrl.u32 %v61, 7
    %v63 = vadd.s32 %v62, 8
    %v64 = vadd.s32 %v62, 16
    %v65 = vadd.s32 %v62, 24
    %v66 = vadd.s32 %v62, 32
    %v67 = vadd.s32 %v62, 40
    %v68 = vadd.s32 %v62, 48
    %v69 = vadd.s32 %v62, 56
    %v70 = vadd.s32 %v62, 64
    %v71 = vadd.s32 %v62, 72
    %v72 = vadd.s32 %v62, 80
    %v73 = vadd.s32 %v62, 88
    %v74 = vshra.s32 %v62, 5
    %v75 = vshra.s32 %v63, 5
    %v76 = vshra.s32 %v64, 5
    %v77 = vshra.s32 %v65, 5
    %v78 = vshra.s32 %v66, 5
    %v79 = vshra.s32 %v67, 5
    %v80 = vshra.s32 %v68, 5
    %v81 = vshra.s32 %v69, 5
    %v82 = vshra.s32 %v70, 5
    %v83 = vshra.s32 %v71, 5
    %v84 = vshra.s32 %v72, 5
    %v85 = vshra.s32 %v73, 5
    %v86 = vlaneseq
    %v87 = vand.u32 %v86, 127
    %v88 = vshra.s32 %v87, 5
    %v89 = vmul.u32 %v48, 8
    %v90 = vmul.u32 %v49, 8
    %v91 = vmul.u32 %v50, 8
    %v92 = vmul.u32 %v51, 8
    %v93 = vmul.u32 %v52, 8
    %v94 = vmul.u32 %v53, 8
    %v95 = vmul.u32 %v54, 8
    %v96 = vmul.u32 %v55, 8
    %v97 = vmul.u32 %v56, 8
    %v98 = vmul.u32 %v57, 8
    %v99 = vmul.u32 %v58, 8
    %v100 = vmul.u32 %v59, 8
    %v101 = vadd.s32 %v89, %v74
    %v102 = vadd.s32 %v90, %v75
    %v103 = vadd.s32 %v91, %v76
    %v104 = vadd.s32 %v92, %v77
    %v105 = vadd.s32 %v93, %v78
    %v106 = vadd.s32 %v94, %v79
    %v107 = vadd.s32 %v95, %v80
    %v108 = vadd.s32 %v96, %v81
    %v109 = vadd.s32 %v97, %v82
    %v110 = vadd.s32 %v98, %v83
    %v111 = vadd.s32 %v99, %v84
    %v112 = vadd.s32 %v100, %v85
    %v113 = vmul.u32 %v60, 8
    %v114 = vadd.s32 %v113, %v88
    %115 = vset.pattern.permute.xlu0 0
    %116 = vperm.xlu0 %115, %v101
    %v117 = vpop.permute.xlu0 %116
    %118 = vset.pattern.permute.xlu0 0
    %119 = vperm.xlu0 %118, %v102
    %v120 = vpop.permute.xlu0 %119
    %121 = vset.pattern.permute.xlu0 0
    %122 = vperm.xlu0 %121, %v103
    %v123 = vpop.permute.xlu0 %122
    %124 = vset.pattern.permute.xlu0 0
    %125 = vperm.xlu0 %124, %v104
    %v126 = vpop.permute.xlu0 %125
    %127 = vset.pattern.permute.xlu0 0
    %128 = vperm.xlu0 %127, %v105
    %v129 = vpop.permute.xlu0 %128
    %130 = vset.pattern.permute.xlu0 0
    %131 = vperm.xlu0 %130, %v106
    %v132 = vpop.permute.xlu0 %131
    %133 = vset.pattern.permute.xlu0 0
    %134 = vperm.xlu0 %133, %v107
    %v135 = vpop.permute.xlu0 %134
    %136 = vset.pattern.permute.xlu0 0
    %137 = vperm.xlu0 %136, %v108
    %v138 = vpop.permute.xlu0 %137
    %139 = vset.pattern.permute.xlu0 0
    %140 = vperm.xlu0 %139, %v109
    %v141 = vpop.permute.xlu0 %140
    %142 = vset.pattern.permute.xlu0 0
    %143 = vperm.xlu0 %142, %v110
    %v144 = vpop.permute.xlu0 %143
    %145 = vset.pattern.permute.xlu0 0
    %146 = vperm.xlu0 %145, %v111
    %v147 = vpop.permute.xlu0 %146
    %148 = vset.pattern.permute.xlu0 0
    %149 = vperm.xlu0 %148, %v112
    %v150 = vpop.permute.xlu0 %149
    %vm151 = vcmp.eq.s32.totalorder %v87, %v117
    %vm152 = vcmp.eq.s32.totalorder %v87, %v120
    %vm153 = vcmp.eq.s32.totalorder %v87, %v123
    %vm154 = vcmp.eq.s32.totalorder %v87, %v126
    %vm155 = vcmp.eq.s32.totalorder %v87, %v129
    %vm156 = vcmp.eq.s32.totalorder %v87, %v132
    %vm157 = vcmp.eq.s32.totalorder %v87, %v135
    %vm158 = vcmp.eq.s32.totalorder %v87, %v138
    %vm159 = vcmp.eq.s32.totalorder %v87, %v141
    %vm160 = vcmp.eq.s32.totalorder %v87, %v144
    %vm161 = vcmp.eq.s32.totalorder %v87, %v147
    %vm162 = vcmp.eq.s32.totalorder %v87, %v150
    %v163 = vsel %vm151, 1, 0
    %v164 = vsel %vm152, 1, 0
    %v165 = vsel %vm153, 1, 0
    %v166 = vsel %vm154, 1, 0
    %v167 = vsel %vm155, 1, 0
    %v168 = vsel %vm156, 1, 0
    %v169 = vsel %vm157, 1, 0
    %v170 = vsel %vm158, 1, 0
    %v171 = vsel %vm159, 1, 0
    %v172 = vsel %vm160, 1, 0
    %v173 = vsel %vm161, 1, 0
    %v174 = vsel %vm162, 1, 0
    %v175 = vcvt.s32.f32 %v163
    %v176 = vcvt.s32.f32 %v164
    %v177 = vcvt.s32.f32 %v165
    %v178 = vcvt.s32.f32 %v166
    %v179 = vcvt.s32.f32 %v167
    %v180 = vcvt.s32.f32 %v168
    %v181 = vcvt.s32.f32 %v169
    %v182 = vcvt.s32.f32 %v170
    %v183 = vcvt.s32.f32 %v171
    %v184 = vcvt.s32.f32 %v172
    %v185 = vcvt.s32.f32 %v173
    %v186 = vcvt.s32.f32 %v174
    %v187 = vadd.s32 %v62, 96
    %v188 = vadd.s32 %v62, 104
    %v189 = vadd.s32 %v62, 112
    %v190 = vadd.s32 %v62, 120
    %v191 = vlaneseq
    %v192 = vshrl.u32 %v191, 7
    %v193 = vsub.s32 0, %v192
    %v194 = vrot.slane %v114, %v193
    %vm195 = vcmp.eq.s32.totalorder %v62, %v194
    %vm196 = vcmp.eq.s32.totalorder %v63, %v194
    %vm197 = vcmp.eq.s32.totalorder %v64, %v194
    %vm198 = vcmp.eq.s32.totalorder %v65, %v194
    %vm199 = vcmp.eq.s32.totalorder %v66, %v194
    %vm200 = vcmp.eq.s32.totalorder %v67, %v194
    %vm201 = vcmp.eq.s32.totalorder %v68, %v194
    %vm202 = vcmp.eq.s32.totalorder %v69, %v194
    %vm203 = vcmp.eq.s32.totalorder %v70, %v194
    %vm204 = vcmp.eq.s32.totalorder %v71, %v194
    %vm205 = vcmp.eq.s32.totalorder %v72, %v194
    %vm206 = vcmp.eq.s32.totalorder %v73, %v194
    %vm207 = vcmp.eq.s32.totalorder %v187, %v194
    %vm208 = vcmp.eq.s32.totalorder %v188, %v194
    %vm209 = vcmp.eq.s32.totalorder %v189, %v194
    %vm210 = vcmp.eq.s32.totalorder %v190, %v194
    %v211 = vsel %vm195, 1, 0
    %v212 = vsel %vm196, 1, 0
    %v213 = vsel %vm197, 1, 0
    %v214 = vsel %vm198, 1, 0
    %v215 = vsel %vm199, 1, 0
    %v216 = vsel %vm200, 1, 0
    %v217 = vsel %vm201, 1, 0
    %v218 = vsel %vm202, 1, 0
    %v219 = vsel %vm203, 1, 0
    %v220 = vsel %vm204, 1, 0
    %v221 = vsel %vm205, 1, 0
    %v222 = vsel %vm206, 1, 0
    %v223 = vsel %vm207, 1, 0
    %v224 = vsel %vm208, 1, 0
    %v225 = vsel %vm209, 1, 0
    %v226 = vsel %vm210, 1, 0
    %v227 = vcvt.s32.f32 %v211
    %v228 = vcvt.s32.f32 %v212
    %v229 = vcvt.s32.f32 %v213
    %v230 = vcvt.s32.f32 %v214
    %v231 = vcvt.s32.f32 %v215
    %v232 = vcvt.s32.f32 %v216
    %v233 = vcvt.s32.f32 %v217
    %v234 = vcvt.s32.f32 %v218
    %v235 = vcvt.s32.f32 %v219
    %v236 = vcvt.s32.f32 %v220
    %v237 = vcvt.s32.f32 %v221
    %v238 = vcvt.s32.f32 %v222
    %v239 = vcvt.s32.f32 %v223
    %v240 = vcvt.s32.f32 %v224
    %v241 = vcvt.s32.f32 %v225
    %v242 = vcvt.s32.f32 %v226
    %v243 = vpack.c.bf16 %v228, %v227
    %v244 = vpack.c.bf16 %v230, %v229
    %v245 = vpack.c.bf16 %v232, %v231
    %v246 = vpack.c.bf16 %v234, %v233
    %v247 = vpack.c.bf16 %v236, %v235
    %v248 = vpack.c.bf16 %v238, %v237
    %v249 = vpack.c.bf16 %v240, %v239
    %v250 = vpack.c.bf16 %v242, %v241
    %v251 = vpack.c.bf16 %v176, %v175
    %v252 = vpack.c.bf16 %v178, %v177
    %v253 = vpack.c.bf16 %v180, %v179
    %v254 = vpack.c.bf16 %v182, %v181
    %v255 = vpack.c.bf16 %v184, %v183
    %v256 = vpack.c.bf16 %v186, %v185
    %vm257 = vcmask 785408
    %v259 = vsel %vm257, %v243, 0
    %v262 = vsel %vm257, %v244, 0
    %v265 = vsel %vm257, %v245, 0
    %v268 = vsel %vm257, %v246, 0
    %v271 = vsel %vm257, %v247, 0
    %v274 = vsel %vm257, %v248, 0
    %v277 = vsel %vm257, %v249, 0
    %v280 = vsel %vm257, %v250, 0
    %282 = vmatprep.subr.bf16.mxu0 0
    %283 = vmatpush1.bf16.msra.mxu0 0
    %284 = vmatprep.subr.bf16.mxu0 0
    %285 = vmatpush1.bf16.msra.mxu0 0
    %286 = vmatprep.subr.bf16.mxu0 0
    %287 = vmatpush1.bf16.msra.mxu0 %v256
    %288 = vmatprep.subr.bf16.mxu0 0
    %289 = vmatpush1.bf16.msra.mxu0 %v255
    %290 = vmatprep.subr.bf16.mxu0 0
    %291 = vmatpush1.bf16.msra.mxu0 %v254
    %292 = vmatprep.subr.bf16.mxu0 0
    %293 = vmatpush1.bf16.msra.mxu0 %v253
    %294 = vmatprep.subr.bf16.mxu0 0
    %295 = vmatpush1.bf16.msra.mxu0 %v252
    %296 = vmatprep.subr.bf16.mxu0 0
    %297 = vmatpush1.bf16.msra.mxu0 %v251
    %298 = vmatprep.subr.bf16.mxu0 0
    %299 = vmatpush2.bf16.msra.mxu0 0
    %300 = vmatprep.subr.bf16.mxu0 0
    %301 = vmatpush2.bf16.msra.mxu0 0
    %302 = vmatprep.subr.bf16.mxu0 0
    %303 = vmatpush2.bf16.msra.mxu0 0
    %304 = vmatprep.subr.bf16.mxu0 0
    %305 = vmatpush2.bf16.msra.mxu0 0
    %306 = vmatprep.subr.bf16.mxu0 0
    %307 = vmatpush2.bf16.msra.mxu0 0
    %308 = vmatprep.subr.bf16.mxu0 0
    %309 = vmatpush2.bf16.msra.mxu0 0
    %310 = vmatprep.subr.bf16.mxu0 0
    %311 = vmatpush2.bf16.msra.mxu0 0
    %312 = vmatprep.subr.bf16.mxu0 0
    %313 = vmatpush2.bf16.msra.mxu0 0
    %314 = vmatprep.mubr.bf16.mxu0 0
    %315 = vmatmul.mubr.bf16.gmra.mxu0 %v259
    %v316 = vpop.f32.mrf.mxu0
    %v317 = vadd.f32 0.0, %v316
    %v318 = vpop.f32.mrf.mxu0
    %v319 = vpop.f32.mrf.mxu0
    %v320 = vadd.f32 0.0, %v319
    %v321 = vpop.f32.mrf.mxu0
    %322 = vmatprep.mubr.bf16.mxu0 0
    %323 = vmatmul.mubr.bf16.gmra.mxu0 %v262
    %v324 = vpop.f32.mrf.mxu0
    %v325 = vadd.f32 0.0, %v324
    %v326 = vpop.f32.mrf.mxu0
    %v327 = vpop.f32.mrf.mxu0
    %v328 = vadd.f32 0.0, %v327
    %v329 = vpop.f32.mrf.mxu0
    %330 = vmatprep.mubr.bf16.mxu0 0
    %331 = vmatmul.mubr.bf16.gmra.mxu0 %v265
    %v332 = vpop.f32.mrf.mxu0
    %v333 = vadd.f32 0.0, %v332
    %v334 = vpop.f32.mrf.mxu0
    %v335 = vpop.f32.mrf.mxu0
    %v336 = vadd.f32 0.0, %v335
    %v337 = vpop.f32.mrf.mxu0
    %338 = vmatprep.mubr.bf16.mxu0 0
    %339 = vmatmul.mubr.bf16.gmra.mxu0 %v268
    %v340 = vpop.f32.mrf.mxu0
    %v341 = vadd.f32 0.0, %v340
    %v342 = vpop.f32.mrf.mxu0
    %v343 = vpop.f32.mrf.mxu0
    %v344 = vadd.f32 0.0, %v343
    %v345 = vpop.f32.mrf.mxu0
    %346 = vmatprep.mubr.bf16.mxu0 0
    %347 = vmatmul.mubr.bf16.gmra.mxu0 %v271
    %v348 = vpop.f32.mrf.mxu0
    %v349 = vadd.f32 0.0, %v348
    %v350 = vpop.f32.mrf.mxu0
    %v351 = vpop.f32.mrf.mxu0
    %v352 = vadd.f32 0.0, %v351
    %v353 = vpop.f32.mrf.mxu0
    %354 = vmatprep.mubr.bf16.mxu0 0
    %355 = vmatmul.mubr.bf16.gmra.mxu0 %v274
    %v356 = vpop.f32.mrf.mxu0
    %v357 = vadd.f32 0.0, %v356
    %v358 = vpop.f32.mrf.mxu0
    %v359 = vpop.f32.mrf.mxu0
    %v360 = vadd.f32 0.0, %v359
    %v361 = vpop.f32.mrf.mxu0
    %362 = vmatprep.mubr.bf16.mxu0 0
    %363 = vmatmul.mubr.bf16.gmra.mxu0 %v277
    %v364 = vpop.f32.mrf.mxu0
    %v365 = vadd.f32 0.0, %v364
    %v366 = vpop.f32.mrf.mxu0
    %v367 = vpop.f32.mrf.mxu0
    %v368 = vadd.f32 0.0, %v367
    %v369 = vpop.f32.mrf.mxu0
    %370 = vmatprep.mubr.bf16.mxu0 0
    %371 = vmatmul.mubr.bf16.gmra.mxu0 %v280
    %v372 = vpop.f32.mrf.mxu0
    %v373 = vadd.f32 0.0, %v372
    %v374 = vpop.f32.mrf.mxu0
    %v375 = vpop.f32.mrf.mxu0
    %v376 = vadd.f32 0.0, %v375
    %v377 = vpop.f32.mrf.mxu0
    %378 = vdwg.mxu0
    %vm379 = vcmp.eq.s32.totalorder %v62, %v87
    %vm380 = vcmp.eq.s32.totalorder %v63, %v87
    %vm381 = vcmp.eq.s32.totalorder %v64, %v87
    %vm382 = vcmp.eq.s32.totalorder %v65, %v87
    %vm383 = vcmp.eq.s32.totalorder %v66, %v87
    %vm384 = vcmp.eq.s32.totalorder %v67, %v87
    %vm385 = vcmp.eq.s32.totalorder %v68, %v87
    %vm386 = vcmp.eq.s32.totalorder %v69, %v87
    %vm387 = vcmp.eq.s32.totalorder %v70, %v87
    %vm388 = vcmp.eq.s32.totalorder %v71, %v87
    %vm389 = vcmp.eq.s32.totalorder %v72, %v87
    %vm390 = vcmp.eq.s32.totalorder %v73, %v87
    %vm391 = vcmp.eq.s32.totalorder %v187, %v87
    %vm392 = vcmp.eq.s32.totalorder %v188, %v87
    %vm393 = vcmp.eq.s32.totalorder %v189, %v87
    %vm394 = vcmp.eq.s32.totalorder %v190, %v87
    %v395 = vsel %vm379, 1, 0
    %v396 = vsel %vm380, 1, 0
    %v397 = vsel %vm381, 1, 0
    %v398 = vsel %vm382, 1, 0
    %v399 = vsel %vm383, 1, 0
    %v400 = vsel %vm384, 1, 0
    %v401 = vsel %vm385, 1, 0
    %v402 = vsel %vm386, 1, 0
    %v403 = vsel %vm387, 1, 0
    %v404 = vsel %vm388, 1, 0
    %v405 = vsel %vm389, 1, 0
    %v406 = vsel %vm390, 1, 0
    %v407 = vsel %vm391, 1, 0
    %v408 = vsel %vm392, 1, 0
    %v409 = vsel %vm393, 1, 0
    %v410 = vsel %vm394, 1, 0
    %v411 = vcvt.s32.f32 %v395
    %v412 = vcvt.s32.f32 %v396
    %v413 = vcvt.s32.f32 %v397
    %v414 = vcvt.s32.f32 %v398
    %v415 = vcvt.s32.f32 %v399
    %v416 = vcvt.s32.f32 %v400
    %v417 = vcvt.s32.f32 %v401
    %v418 = vcvt.s32.f32 %v402
    %v419 = vcvt.s32.f32 %v403
    %v420 = vcvt.s32.f32 %v404
    %v421 = vcvt.s32.f32 %v405
    %v422 = vcvt.s32.f32 %v406
    %v423 = vcvt.s32.f32 %v407
    %v424 = vcvt.s32.f32 %v408
    %v425 = vcvt.s32.f32 %v409
    %v426 = vcvt.s32.f32 %v410
    %v427 = vmul.f32 %v317, %v411
    %v428 = vmul.f32 %v320, %v412
    %v429 = vmul.f32 %v325, %v413
    %v430 = vmul.f32 %v328, %v414
    %v431 = vmul.f32 %v333, %v415
    %v432 = vmul.f32 %v336, %v416
    %v433 = vmul.f32 %v341, %v417
    %v434 = vmul.f32 %v344, %v418
    %v435 = vmul.f32 %v349, %v419
    %v436 = vmul.f32 %v352, %v420
    %v437 = vmul.f32 %v357, %v421
    %v438 = vmul.f32 %v360, %v422
    %v439 = vmul.f32 %v365, %v423
    %v440 = vmul.f32 %v368, %v424
    %v441 = vmul.f32 %v373, %v425
    %v442 = vmul.f32 %v376, %v426
    %443 = vadd.xlane.f32.xlu0 %v427
    %v444 = vpop.xlane.xlu0 %443
    %445 = vadd.xlane.f32.xlu0 %v428
    %v446 = vpop.xlane.xlu0 %445
    %447 = vadd.xlane.f32.xlu0 %v429
    %v448 = vpop.xlane.xlu0 %447
    %449 = vadd.xlane.f32.xlu0 %v430
    %v450 = vpop.xlane.xlu0 %449
    %451 = vadd.xlane.f32.xlu0 %v431
    %v452 = vpop.xlane.xlu0 %451
    %453 = vadd.xlane.f32.xlu0 %v432
    %v454 = vpop.xlane.xlu0 %453
    %455 = vadd.xlane.f32.xlu0 %v433
    %v456 = vpop.xlane.xlu0 %455
    %457 = vadd.xlane.f32.xlu0 %v434
    %v458 = vpop.xlane.xlu0 %457
    %459 = vadd.xlane.f32.xlu0 %v435
    %v460 = vpop.xlane.xlu0 %459
    %461 = vadd.xlane.f32.xlu0 %v436
    %v462 = vpop.xlane.xlu0 %461
    %463 = vadd.xlane.f32.xlu0 %v437
    %v464 = vpop.xlane.xlu0 %463
    %465 = vadd.xlane.f32.xlu0 %v438
    %v466 = vpop.xlane.xlu0 %465
    %467 = vadd.xlane.f32.xlu0 %v439
    %v468 = vpop.xlane.xlu0 %467
    %469 = vadd.xlane.f32.xlu0 %v440
    %v470 = vpop.xlane.xlu0 %469
    %471 = vadd.xlane.f32.xlu0 %v441
    %v472 = vpop.xlane.xlu0 %471
    %473 = vadd.xlane.f32.xlu0 %v442
    %v474 = vpop.xlane.xlu0 %473
    %vm475 = vcmp.eq.f32.partialorder %v444, 0.0
    %vm476 = vcmp.eq.f32.partialorder %v446, 0.0
    %vm477 = vcmp.eq.f32.partialorder %v448, 0.0
    %vm478 = vcmp.eq.f32.partialorder %v450, 0.0
    %vm479 = vcmp.eq.f32.partialorder %v452, 0.0
    %vm480 = vcmp.eq.f32.partialorder %v454, 0.0
    %vm481 = vcmp.eq.f32.partialorder %v456, 0.0
    %vm482 = vcmp.eq.f32.partialorder %v458, 0.0
    %vm483 = vcmp.eq.f32.partialorder %v460, 0.0
    %vm484 = vcmp.eq.f32.partialorder %v462, 0.0
    %vm485 = vcmp.eq.f32.partialorder %v464, 0.0
    %vm486 = vcmp.eq.f32.partialorder %v466, 0.0
    %vm487 = vcmp.eq.f32.partialorder %v468, 0.0
    %vm488 = vcmp.eq.f32.partialorder %v470, 0.0
    %vm489 = vcmp.eq.f32.partialorder %v472, 0.0
    %vm490 = vcmp.eq.f32.partialorder %v474, 0.0
    %v491 = vsel %vm475, 1.0, 0.0
    %v492 = vsel %vm476, 1.0, 0.0
    %v493 = vsel %vm477, 1.0, 0.0
    %v494 = vsel %vm478, 1.0, 0.0
    %v495 = vsel %vm479, 1.0, 0.0
    %v496 = vsel %vm480, 1.0, 0.0
    %v497 = vsel %vm481, 1.0, 0.0
    %v498 = vsel %vm482, 1.0, 0.0
    %v499 = vsel %vm483, 1.0, 0.0
    %v500 = vsel %vm484, 1.0, 0.0
    %v501 = vsel %vm485, 1.0, 0.0
    %v502 = vsel %vm486, 1.0, 0.0
    %v503 = vsel %vm487, 1.0, 0.0
    %v504 = vsel %vm488, 1.0, 0.0
    %v505 = vsel %vm489, 1.0, 0.0
    %v506 = vsel %vm490, 1.0, 0.0
    %507 = vadd.xlane.f32.xlu0 %v317
    %v508 = vpop.xlane.xlu0 %507
    %509 = vadd.xlane.f32.xlu0 %v320
    %v510 = vpop.xlane.xlu0 %509
    %511 = vadd.xlane.f32.xlu0 %v325
    %v512 = vpop.xlane.xlu0 %511
    %513 = vadd.xlane.f32.xlu0 %v328
    %v514 = vpop.xlane.xlu0 %513
    %515 = vadd.xlane.f32.xlu0 %v333
    %v516 = vpop.xlane.xlu0 %515
    %517 = vadd.xlane.f32.xlu0 %v336
    %v518 = vpop.xlane.xlu0 %517
    %519 = vadd.xlane.f32.xlu0 %v341
    %v520 = vpop.xlane.xlu0 %519
    %521 = vadd.xlane.f32.xlu0 %v344
    %v522 = vpop.xlane.xlu0 %521
    %523 = vadd.xlane.f32.xlu0 %v349
    %v524 = vpop.xlane.xlu0 %523
    %525 = vadd.xlane.f32.xlu0 %v352
    %v526 = vpop.xlane.xlu0 %525
    %527 = vadd.xlane.f32.xlu0 %v357
    %v528 = vpop.xlane.xlu0 %527
    %529 = vadd.xlane.f32.xlu0 %v360
    %v530 = vpop.xlane.xlu0 %529
    %531 = vadd.xlane.f32.xlu0 %v365
    %v532 = vpop.xlane.xlu0 %531
    %533 = vadd.xlane.f32.xlu0 %v368
    %v534 = vpop.xlane.xlu0 %533
    %535 = vadd.xlane.f32.xlu0 %v373
    %v536 = vpop.xlane.xlu0 %535
    %537 = vadd.xlane.f32.xlu0 %v376
    %v538 = vpop.xlane.xlu0 %537
    %v539 = vadd.f32 %v508, %v491
    %v540 = vadd.f32 %v510, %v492
    %v541 = vadd.f32 %v512, %v493
    %v542 = vadd.f32 %v514, %v494
    %v543 = vadd.f32 %v516, %v495
    %v544 = vadd.f32 %v518, %v496
    %v545 = vadd.f32 %v520, %v497
    %v546 = vadd.f32 %v522, %v498
    %v547 = vadd.f32 %v524, %v499
    %v548 = vadd.f32 %v526, %v500
    %v549 = vadd.f32 %v528, %v501
    %v550 = vadd.f32 %v530, %v502
    %v551 = vadd.f32 %v532, %v503
    %v552 = vadd.f32 %v534, %v504
    %v553 = vadd.f32 %v536, %v505
    %v554 = vadd.f32 %v538, %v506
    %v555 = vrsqrt.pop %v539
    %v556 = vrsqrt.pop %v540
    %v557 = vrsqrt.pop %v541
    %v558 = vrsqrt.pop %v542
    %v559 = vrsqrt.pop %v543
    %v560 = vrsqrt.pop %v544
    %v561 = vrsqrt.pop %v545
    %v562 = vrsqrt.pop %v546
    %v563 = vrsqrt.pop %v547
    %v564 = vrsqrt.pop %v548
    %v565 = vrsqrt.pop %v549
    %v566 = vrsqrt.pop %v550
    %v567 = vrsqrt.pop %v551
    %v568 = vrsqrt.pop %v552
    %v569 = vrsqrt.pop %v553
    %v570 = vrsqrt.pop %v554
    %v571 = vld [vmem:[%s0] sm:$0xff]
    %v572 = vld [vmem:[%s0 + $0x8] sm:$0xff]
    %vm573 = vcmask 130048
    %v575 = vsel %vm573, %v571, 0
    %v578 = vsel %vm573, %v572, 0
    %580 = vmatprep.subr.mxu0 0.0
    %581 = vmatpush1.msra.mxu0 0.0
    %582 = vmatprep.subr.mxu0 0.0
    %583 = vmatpush1.msra.mxu0 0.0
    %584 = vmatprep.subr.mxu0 0.0
    %585 = vmatpush1.msra.mxu0 0.0
    %586 = vmatprep.subr.mxu0 0.0
    %587 = vmatpush1.msra.mxu0 0.0
    %588 = vmatprep.subr.mxu0 0.0
    %589 = vmatpush1.msra.mxu0 0.0
    %590 = vmatprep.subr.mxu0 0.0
    %591 = vmatpush1.msra.mxu0 0.0
    %592 = vmatprep.subr.mxu0 0.0
    %593 = vmatpush1.msra.mxu0 0.0
    %594 = vmatprep.subr.mxu0 0.0
    %595 = vmatpush1.msra.mxu0 0.0
    %596 = vmatprep.subr.mxu0 0.0
    %597 = vmatpush1.msra.mxu0 0.0
    %598 = vmatprep.subr.mxu0 0.0
    %599 = vmatpush1.msra.mxu0 0.0
    %600 = vmatprep.subr.mxu0 0.0
    %601 = vmatpush1.msra.mxu0 0.0
    %602 = vmatprep.subr.mxu0 0.0
    %603 = vmatpush1.msra.mxu0 0.0
    %604 = vmatprep.subr.mxu0 0.0
    %605 = vmatpush1.msra.mxu0 0.0
    %606 = vmatprep.subr.mxu0 0.0
    %607 = vmatpush1.msra.mxu0 0.0
    %608 = vmatprep.subr.mxu0 0.0
    %609 = vmatpush1.msra.mxu0 %v36
    %610 = vmatprep.subr.mxu0 0.0
    %611 = vmatpush1.msra.mxu0 %v35
    %612 = vmatprep.subr.mxu0 0.0
    %613 = vmatpush2.msra.mxu0 0.0
    %614 = vmatprep.subr.mxu0 0.0
    %615 = vmatpush2.msra.mxu0 0.0
    %616 = vmatprep.subr.mxu0 0.0
    %617 = vmatpush2.msra.mxu0 0.0
    %618 = vmatprep.subr.mxu0 0.0
    %619 = vmatpush2.msra.mxu0 0.0
    %620 = vmatprep.subr.mxu0 0.0
    %621 = vmatpush2.msra.mxu0 0.0
    %622 = vmatprep.subr.mxu0 0.0
    %623 = vmatpush2.msra.mxu0 0.0
    %624 = vmatprep.subr.mxu0 0.0
    %625 = vmatpush2.msra.mxu0 0.0
    %626 = vmatprep.subr.mxu0 0.0
    %627 = vmatpush2.msra.mxu0 0.0
    %628 = vmatprep.subr.mxu0 0.0
    %629 = vmatpush2.msra.mxu0 0.0
    %630 = vmatprep.subr.mxu0 0.0
    %631 = vmatpush2.msra.mxu0 0.0
    %632 = vmatprep.subr.mxu0 0.0
    %633 = vmatpush2.msra.mxu0 0.0
    %634 = vmatprep.subr.mxu0 0.0
    %635 = vmatpush2.msra.mxu0 0.0
    %636 = vmatprep.subr.mxu0 0.0
    %637 = vmatpush2.msra.mxu0 0.0
    %638 = vmatprep.subr.mxu0 0.0
    %639 = vmatpush2.msra.mxu0 0.0
    %640 = vmatprep.subr.mxu0 0.0
    %641 = vmatpush2.msra.mxu0 0.0
    %642 = vmatprep.subr.mxu0 0.0
    %643 = vmatpush2.msra.mxu0 0.0
    %644 = vmatprep.mubr.f32.mxu0 0.0
    %645 = vmatmul.mubr.f32.gmra.mxu0 %v575
    %v646 = vpop.f32.mrf.mxu0
    %v647 = vadd.f32 0.0, %v646
    %v648 = vpop.f32.mrf.mxu0
    %649 = vmatprep.mubr.f32.mxu0 0.0
    %650 = vmatmul.mubr.f32.gmra.mxu0 %v578
    %v651 = vpop.f32.mrf.mxu0
    %v652 = vadd.f32 0.0, %v651
    %v653 = vpop.f32.mrf.mxu0
    %654 = vdwg.mxu0
    %v655 = vshra.s32 %v62, 3
    %v656 = vshra.s32 %v63, 3
    %v657 = vshra.s32 %v64, 3
    %v658 = vshra.s32 %v65, 3
    %v659 = vshra.s32 %v66, 3
    %v660 = vshra.s32 %v67, 3
    %v661 = vshra.s32 %v68, 3
    %v662 = vshra.s32 %v69, 3
    %v663 = vshra.s32 %v70, 3
    %v664 = vshra.s32 %v71, 3
    %v665 = vshra.s32 %v72, 3
    %v666 = vshra.s32 %v73, 3
    %v667 = vshra.s32 %v187, 3
    %v668 = vshra.s32 %v188, 3
    %v669 = vshra.s32 %v189, 3
    %v670 = vshra.s32 %v190, 3
    %vm671 = vcmp.eq.s32.totalorder %v655, %v87
    %vm672 = vcmp.eq.s32.totalorder %v656, %v87
    %vm673 = vcmp.eq.s32.totalorder %v657, %v87
    %vm674 = vcmp.eq.s32.totalorder %v658, %v87
    %vm675 = vcmp.eq.s32.totalorder %v659, %v87
    %vm676 = vcmp.eq.s32.totalorder %v660, %v87
    %vm677 = vcmp.eq.s32.totalorder %v661, %v87
    %vm678 = vcmp.eq.s32.totalorder %v662, %v87
    %vm679 = vcmp.eq.s32.totalorder %v663, %v87
    %vm680 = vcmp.eq.s32.totalorder %v664, %v87
    %vm681 = vcmp.eq.s32.totalorder %v665, %v87
    %vm682 = vcmp.eq.s32.totalorder %v666, %v87
    %vm683 = vcmp.eq.s32.totalorder %v667, %v87
    %vm684 = vcmp.eq.s32.totalorder %v668, %v87
    %vm685 = vcmp.eq.s32.totalorder %v669, %v87
    %vm686 = vcmp.eq.s32.totalorder %v670, %v87
    %v687 = vsel %vm671, 1, 0
    %v688 = vsel %vm672, 1, 0
    %v689 = vsel %vm673, 1, 0
    %v690 = vsel %vm674, 1, 0
    %v691 = vsel %vm675, 1, 0
    %v692 = vsel %vm676, 1, 0
    %v693 = vsel %vm677, 1, 0
    %v694 = vsel %vm678, 1, 0
    %v695 = vsel %vm679, 1, 0
    %v696 = vsel %vm680, 1, 0
    %v697 = vsel %vm681, 1, 0
    %v698 = vsel %vm682, 1, 0
    %v699 = vsel %vm683, 1, 0
    %v700 = vsel %vm684, 1, 0
    %v701 = vsel %vm685, 1, 0
    %v702 = vsel %vm686, 1, 0
    %v703 = vcvt.s32.f32 %v687
    %v704 = vcvt.s32.f32 %v688
    %v705 = vcvt.s32.f32 %v689
    %v706 = vcvt.s32.f32 %v690
    %v707 = vcvt.s32.f32 %v691
    %v708 = vcvt.s32.f32 %v692
    %v709 = vcvt.s32.f32 %v693
    %v710 = vcvt.s32.f32 %v694
    %v711 = vcvt.s32.f32 %v695
    %v712 = vcvt.s32.f32 %v696
    %v713 = vcvt.s32.f32 %v697
    %v714 = vcvt.s32.f32 %v698
    %v715 = vcvt.s32.f32 %v699
    %v716 = vcvt.s32.f32 %v700
    %v717 = vcvt.s32.f32 %v701
    %v718 = vcvt.s32.f32 %v702
    %v720 = vsel %vm573, %v703, 0
    %v723 = vsel %vm573, %v704, 0
    %v726 = vsel %vm573, %v705, 0
    %v729 = vsel %vm573, %v706, 0
    %v732 = vsel %vm573, %v707, 0
    %v735 = vsel %vm573, %v708, 0
    %v738 = vsel %vm573, %v709, 0
    %v741 = vsel %vm573, %v710, 0
    %v744 = vsel %vm573, %v711, 0
    %v747 = vsel %vm573, %v712, 0
    %v750 = vsel %vm573, %v713, 0
    %v753 = vsel %vm573, %v714, 0
    %v756 = vsel %vm573, %v715, 0
    %v759 = vsel %vm573, %v716, 0
    %v762 = vsel %vm573, %v717, 0
    %v765 = vsel %vm573, %v718, 0
    %767 = vmatprep.subr.mxu0 0.0
    %768 = vmatpush1.msra.mxu0 0.0
    %769 = vmatprep.subr.mxu0 0.0
    %770 = vmatpush1.msra.mxu0 0.0
    %771 = vmatprep.subr.mxu0 0.0
    %772 = vmatpush1.msra.mxu0 0.0
    %773 = vmatprep.subr.mxu0 0.0
    %774 = vmatpush1.msra.mxu0 0.0
    %775 = vmatprep.subr.mxu0 0.0
    %776 = vmatpush1.msra.mxu0 0.0
    %777 = vmatprep.subr.mxu0 0.0
    %778 = vmatpush1.msra.mxu0 0.0
    %779 = vmatprep.subr.mxu0 0.0
    %780 = vmatpush1.msra.mxu0 0.0
    %781 = vmatprep.subr.mxu0 0.0
    %782 = vmatpush1.msra.mxu0 0.0
    %783 = vmatprep.subr.mxu0 0.0
    %784 = vmatpush1.msra.mxu0 0.0
    %785 = vmatprep.subr.mxu0 0.0
    %786 = vmatpush1.msra.mxu0 0.0
    %787 = vmatprep.subr.mxu0 0.0
    %788 = vmatpush1.msra.mxu0 0.0
    %789 = vmatprep.subr.mxu0 0.0
    %790 = vmatpush1.msra.mxu0 0.0
    %791 = vmatprep.subr.mxu0 0.0
    %792 = vmatpush1.msra.mxu0 0.0
    %793 = vmatprep.subr.mxu0 0.0
    %794 = vmatpush1.msra.mxu0 0.0
    %795 = vmatprep.subr.mxu0 0.0
    %796 = vmatpush1.msra.mxu0 %v652
    %797 = vmatprep.subr.mxu0 0.0
    %798 = vmatpush1.msra.mxu0 %v647
    %799 = vmatprep.subr.mxu0 0.0
    %800 = vmatpush2.msra.mxu0 0.0
    %801 = vmatprep.subr.mxu0 0.0
    %802 = vmatpush2.msra.mxu0 0.0
    %803 = vmatprep.subr.mxu0 0.0
    %804 = vmatpush2.msra.mxu0 0.0
    %805 = vmatprep.subr.mxu0 0.0
    %806 = vmatpush2.msra.mxu0 0.0
    %807 = vmatprep.subr.mxu0 0.0
    %808 = vmatpush2.msra.mxu0 0.0
    %809 = vmatprep.subr.mxu0 0.0
    %810 = vmatpush2.msra.mxu0 0.0
    %811 = vmatprep.subr.mxu0 0.0
    %812 = vmatpush2.msra.mxu0 0.0
    %813 = vmatprep.subr.mxu0 0.0
    %814 = vmatpush2.msra.mxu0 0.0
    %815 = vmatprep.subr.mxu0 0.0
    %816 = vmatpush2.msra.mxu0 0.0
    %817 = vmatprep.subr.mxu0 0.0
    %818 = vmatpush2.msra.mxu0 0.0
    %819 = vmatprep.subr.mxu0 0.0
    %820 = vmatpush2.msra.mxu0 0.0
    %821 = vmatprep.subr.mxu0 0.0
    %822 = vmatpush2.msra.mxu0 0.0
    %823 = vmatprep.subr.mxu0 0.0
    %824 = vmatpush2.msra.mxu0 0.0
    %825 = vmatprep.subr.mxu0 0.0
    %826 = vmatpush2.msra.mxu0 0.0
    %827 = vmatprep.subr.mxu0 0.0
    %828 = vmatpush2.msra.mxu0 0.0
    %829 = vmatprep.subr.mxu0 0.0
    %830 = vmatpush2.msra.mxu0 0.0
    %831 = vmatprep.mubr.f32.mxu0 0.0
    %832 = vmatmul.mubr.f32.gmra.mxu0 %v720
    %v833 = vpop.f32.mrf.mxu0
    %v834 = vadd.f32 0.0, %v833
    %v835 = vpop.f32.mrf.mxu0
    %836 = vmatprep.mubr.f32.mxu0 0.0
    %837 = vmatmul.mubr.f32.gmra.mxu0 %v723
    %v838 = vpop.f32.mrf.mxu0
    %v839 = vadd.f32 0.0, %v838
    %v840 = vpop.f32.mrf.mxu0
    %841 = vmatprep.mubr.f32.mxu0 0.0
    %842 = vmatmul.mubr.f32.gmra.mxu0 %v726
    %v843 = vpop.f32.mrf.mxu0
    %v844 = vadd.f32 0.0, %v843
    %v845 = vpop.f32.mrf.mxu0
    %846 = vmatprep.mubr.f32.mxu0 0.0
    %847 = vmatmul.mubr.f32.gmra.mxu0 %v729
    %v848 = vpop.f32.mrf.mxu0
    %v849 = vadd.f32 0.0, %v848
    %v850 = vpop.f32.mrf.mxu0
    %851 = vmatprep.mubr.f32.mxu0 0.0
    %852 = vmatmul.mubr.f32.gmra.mxu0 %v732
    %v853 = vpop.f32.mrf.mxu0
    %v854 = vadd.f32 0.0, %v853
    %v855 = vpop.f32.mrf.mxu0
    %856 = vmatprep.mubr.f32.mxu0 0.0
    %857 = vmatmul.mubr.f32.gmra.mxu0 %v735
    %v858 = vpop.f32.mrf.mxu0
    %v859 = vadd.f32 0.0, %v858
    %v860 = vpop.f32.mrf.mxu0
    %861 = vmatprep.mubr.f32.mxu0 0.0
    %862 = vmatmul.mubr.f32.gmra.mxu0 %v738
    %v863 = vpop.f32.mrf.mxu0
    %v864 = vadd.f32 0.0, %v863
    %v865 = vpop.f32.mrf.mxu0
    %866 = vmatprep.mubr.f32.mxu0 0.0
    %867 = vmatmul.mubr.f32.gmra.mxu0 %v741
    %v868 = vpop.f32.mrf.mxu0
    %v869 = vadd.f32 0.0, %v868
    %v870 = vpop.f32.mrf.mxu0
    %871 = vmatprep.mubr.f32.mxu0 0.0
    %872 = vmatmul.mubr.f32.gmra.mxu0 %v744
    %v873 = vpop.f32.mrf.mxu0
    %v874 = vadd.f32 0.0, %v873
    %v875 = vpop.f32.mrf.mxu0
    %876 = vmatprep.mubr.f32.mxu0 0.0
    %877 = vmatmul.mubr.f32.gmra.mxu0 %v747
    %v878 = vpop.f32.mrf.mxu0
    %v879 = vadd.f32 0.0, %v878
    %v880 = vpop.f32.mrf.mxu0
    %881 = vmatprep.mubr.f32.mxu0 0.0
    %882 = vmatmul.mubr.f32.gmra.mxu0 %v750
    %v883 = vpop.f32.mrf.mxu0
    %v884 = vadd.f32 0.0, %v883
    %v885 = vpop.f32.mrf.mxu0
    %886 = vmatprep.mubr.f32.mxu0 0.0
    %887 = vmatmul.mubr.f32.gmra.mxu0 %v753
    %v888 = vpop.f32.mrf.mxu0
    %v889 = vadd.f32 0.0, %v888
    %v890 = vpop.f32.mrf.mxu0
    %891 = vmatprep.mubr.f32.mxu0 0.0
    %892 = vmatmul.mubr.f32.gmra.mxu0 %v756
    %v893 = vpop.f32.mrf.mxu0
    %v894 = vadd.f32 0.0, %v893
    %v895 = vpop.f32.mrf.mxu0
    %896 = vmatprep.mubr.f32.mxu0 0.0
    %897 = vmatmul.mubr.f32.gmra.mxu0 %v759
    %v898 = vpop.f32.mrf.mxu0
    %v899 = vadd.f32 0.0, %v898
    %v900 = vpop.f32.mrf.mxu0
    %901 = vmatprep.mubr.f32.mxu0 0.0
    %902 = vmatmul.mubr.f32.gmra.mxu0 %v762
    %v903 = vpop.f32.mrf.mxu0
    %v904 = vadd.f32 0.0, %v903
    %v905 = vpop.f32.mrf.mxu0
    %906 = vmatprep.mubr.f32.mxu0 0.0
    %907 = vmatmul.mubr.f32.gmra.mxu0 %v765
    %v908 = vpop.f32.mrf.mxu0
    %v909 = vadd.f32 0.0, %v908
    %v910 = vpop.f32.mrf.mxu0
    %911 = vdwg.mxu0
    %v912 = vmul.f32 %v555, %v834
    %v913 = vmul.f32 %v556, %v839
    %v914 = vmul.f32 %v557, %v844
    %v915 = vmul.f32 %v558, %v849
    %v916 = vmul.f32 %v559, %v854
    %v917 = vmul.f32 %v560, %v859
    %v918 = vmul.f32 %v561, %v864
    %v919 = vmul.f32 %v562, %v869
    %v920 = vmul.f32 %v563, %v874
    %v921 = vmul.f32 %v564, %v879
    %v922 = vmul.f32 %v565, %v884
    %v923 = vmul.f32 %v566, %v889
    %v924 = vmul.f32 %v567, %v894
    %v925 = vmul.f32 %v568, %v899
    %v926 = vmul.f32 %v569, %v904
    %v927 = vmul.f32 %v570, %v909
    %v928 = vmul.f32 %v491, %v912
    %v929 = vmul.f32 %v492, %v913
    %v930 = vmul.f32 %v493, %v914
    %v931 = vmul.f32 %v494, %v915
    %v932 = vmul.f32 %v495, %v916
    %v933 = vmul.f32 %v496, %v917
    %v934 = vmul.f32 %v497, %v918
    %v935 = vmul.f32 %v498, %v919
    %v936 = vmul.f32 %v499, %v920
    %v937 = vmul.f32 %v500, %v921
    %v938 = vmul.f32 %v501, %v922
    %v939 = vmul.f32 %v502, %v923
    %v940 = vmul.f32 %v503, %v924
    %v941 = vmul.f32 %v504, %v925
    %v942 = vmul.f32 %v505, %v926
    %v943 = vmul.f32 %v506, %v927
    %944 = vmatprep.subr.mxu0 0.0
    %945 = vmatpush1.msra.mxu0 %v927
    %946 = vmatprep.subr.mxu0 0.0
    %947 = vmatpush1.msra.mxu0 %v926
    %948 = vmatprep.subr.mxu0 0.0
    %949 = vmatpush1.msra.mxu0 %v925
    %950 = vmatprep.subr.mxu0 0.0
    %951 = vmatpush1.msra.mxu0 %v924
    %952 = vmatprep.subr.mxu0 0.0
    %953 = vmatpush1.msra.mxu0 %v923
    %954 = vmatprep.subr.mxu0 0.0
    %955 = vmatpush1.msra.mxu0 %v922
    %956 = vmatprep.subr.mxu0 0.0
    %957 = vmatpush1.msra.mxu0 %v921
    %958 = vmatprep.subr.mxu0 0.0
    %959 = vmatpush1.msra.mxu0 %v920
    %960 = vmatprep.subr.mxu0 0.0
    %961 = vmatpush1.msra.mxu0 %v919
    %962 = vmatprep.subr.mxu0 0.0
    %963 = vmatpush1.msra.mxu0 %v918
    %964 = vmatprep.subr.mxu0 0.0
    %965 = vmatpush1.msra.mxu0 %v917
    %966 = vmatprep.subr.mxu0 0.0
    %967 = vmatpush1.msra.mxu0 %v916
    %968 = vmatprep.subr.mxu0 0.0
    %969 = vmatpush1.msra.mxu0 %v915
    %970 = vmatprep.subr.mxu0 0.0
    %971 = vmatpush1.msra.mxu0 %v914
    %972 = vmatprep.subr.mxu0 0.0
    %973 = vmatpush1.msra.mxu0 %v913
    %974 = vmatprep.subr.mxu0 0.0
    %975 = vmatpush1.msra.mxu0 %v912
    %976 = vmatprep.subr.mxu0 0.0
    %977 = vmatpush2.msra.mxu0 0.0
    %978 = vmatprep.subr.mxu0 0.0
    %979 = vmatpush2.msra.mxu0 0.0
    %980 = vmatprep.subr.mxu0 0.0
    %981 = vmatpush2.msra.mxu0 0.0
    %982 = vmatprep.subr.mxu0 0.0
    %983 = vmatpush2.msra.mxu0 0.0
    %984 = vmatprep.subr.mxu0 0.0
    %985 = vmatpush2.msra.mxu0 0.0
    %986 = vmatprep.subr.mxu0 0.0
    %987 = vmatpush2.msra.mxu0 0.0
    %988 = vmatprep.subr.mxu0 0.0
    %989 = vmatpush2.msra.mxu0 0.0
    %990 = vmatprep.subr.mxu0 0.0
    %991 = vmatpush2.msra.mxu0 0.0
    %992 = vmatprep.subr.mxu0 0.0
    %993 = vmatpush2.msra.mxu0 0.0
    %994 = vmatprep.subr.mxu0 0.0
    %995 = vmatpush2.msra.mxu0 0.0
    %996 = vmatprep.subr.mxu0 0.0
    %997 = vmatpush2.msra.mxu0 0.0
    %998 = vmatprep.subr.mxu0 0.0
    %999 = vmatpush2.msra.mxu0 0.0
    %1000 = vmatprep.subr.mxu0 0.0
    %1001 = vmatpush2.msra.mxu0 0.0
    %1002 = vmatprep.subr.mxu0 0.0
    %1003 = vmatpush2.msra.mxu0 0.0
    %1004 = vmatprep.subr.mxu0 0.0
    %1005 = vmatpush2.msra.mxu0 0.0
    %1006 = vmatprep.subr.mxu0 0.0
    %1007 = vmatpush2.msra.mxu0 0.0
    %1008 = vmatprep.mubr.f32.mxu0 0.0
    %1009 = vmatmul.mubr.f32.gmra.mxu0 %v317
    %v1010 = vpop.f32.mrf.mxu0
    %v1011 = vadd.f32 %v928, %v1010
    %v1012 = vpop.f32.mrf.mxu0
    %1013 = vmatprep.mubr.f32.mxu0 0.0
    %1014 = vmatmul.mubr.f32.gmra.mxu0 %v320
    %v1015 = vpop.f32.mrf.mxu0
    %v1016 = vadd.f32 %v929, %v1015
    %v1017 = vpop.f32.mrf.mxu0
    %1018 = vmatprep.mubr.f32.mxu0 0.0
    %1019 = vmatmul.mubr.f32.gmra.mxu0 %v325
    %v1020 = vpop.f32.mrf.mxu0
    %v1021 = vadd.f32 %v930, %v1020
    %v1022 = vpop.f32.mrf.mxu0
    %1023 = vmatprep.mubr.f32.mxu0 0.0
    %1024 = vmatmul.mubr.f32.gmra.mxu0 %v328
    %v1025 = vpop.f32.mrf.mxu0
    %v1026 = vadd.f32 %v931, %v1025
    %v1027 = vpop.f32.mrf.mxu0
    %1028 = vmatprep.mubr.f32.mxu0 0.0
    %1029 = vmatmul.mubr.f32.gmra.mxu0 %v333
    %v1030 = vpop.f32.mrf.mxu0
    %v1031 = vadd.f32 %v932, %v1030
    %v1032 = vpop.f32.mrf.mxu0
    %1033 = vmatprep.mubr.f32.mxu0 0.0
    %1034 = vmatmul.mubr.f32.gmra.mxu0 %v336
    %v1035 = vpop.f32.mrf.mxu0
    %v1036 = vadd.f32 %v933, %v1035
    %v1037 = vpop.f32.mrf.mxu0
    %1038 = vmatprep.mubr.f32.mxu0 0.0
    %1039 = vmatmul.mubr.f32.gmra.mxu0 %v341
    %v1040 = vpop.f32.mrf.mxu0
    %v1041 = vadd.f32 %v934, %v1040
    %v1042 = vpop.f32.mrf.mxu0
    %1043 = vmatprep.mubr.f32.mxu0 0.0
    %1044 = vmatmul.mubr.f32.gmra.mxu0 %v344
    %v1045 = vpop.f32.mrf.mxu0
    %v1046 = vadd.f32 %v935, %v1045
    %v1047 = vpop.f32.mrf.mxu0
    %1048 = vmatprep.mubr.f32.mxu0 0.0
    %1049 = vmatmul.mubr.f32.gmra.mxu0 %v349
    %v1050 = vpop.f32.mrf.mxu0
    %v1051 = vadd.f32 %v936, %v1050
    %v1052 = vpop.f32.mrf.mxu0
    %1053 = vmatprep.mubr.f32.mxu0 0.0
    %1054 = vmatmul.mubr.f32.gmra.mxu0 %v352
    %v1055 = vpop.f32.mrf.mxu0
    %v1056 = vadd.f32 %v937, %v1055
    %v1057 = vpop.f32.mrf.mxu0
    %1058 = vmatprep.mubr.f32.mxu0 0.0
    %1059 = vmatmul.mubr.f32.gmra.mxu0 %v357
    %v1060 = vpop.f32.mrf.mxu0
    %v1061 = vadd.f32 %v938, %v1060
    %v1062 = vpop.f32.mrf.mxu0
    %1063 = vmatprep.mubr.f32.mxu0 0.0
    %1064 = vmatmul.mubr.f32.gmra.mxu0 %v360
    %v1065 = vpop.f32.mrf.mxu0
    %v1066 = vadd.f32 %v939, %v1065
    %v1067 = vpop.f32.mrf.mxu0
    %1068 = vmatprep.mubr.f32.mxu0 0.0
    %1069 = vmatmul.mubr.f32.gmra.mxu0 %v365
    %v1070 = vpop.f32.mrf.mxu0
    %v1071 = vadd.f32 %v940, %v1070
    %v1072 = vpop.f32.mrf.mxu0
    %1073 = vmatprep.mubr.f32.mxu0 0.0
    %1074 = vmatmul.mubr.f32.gmra.mxu0 %v368
    %v1075 = vpop.f32.mrf.mxu0
    %v1076 = vadd.f32 %v941, %v1075
    %v1077 = vpop.f32.mrf.mxu0
    %1078 = vmatprep.mubr.f32.mxu0 0.0
    %1079 = vmatmul.mubr.f32.gmra.mxu0 %v373
    %v1080 = vpop.f32.mrf.mxu0
    %v1081 = vadd.f32 %v942, %v1080
    %v1082 = vpop.f32.mrf.mxu0
    %1083 = vmatprep.mubr.f32.mxu0 0.0
    %1084 = vmatmul.mubr.f32.gmra.mxu0 %v376
    %v1085 = vpop.f32.mrf.mxu0
    %v1086 = vadd.f32 %v943, %v1085
    %v1087 = vpop.f32.mrf.mxu0
    %1088 = vdwg.mxu0
    %v1089 = vmul.f32 %v555, %v1011
    %v1090 = vmul.f32 %v556, %v1016
    %v1091 = vmul.f32 %v557, %v1021
    %v1092 = vmul.f32 %v558, %v1026
    %v1093 = vmul.f32 %v559, %v1031
    %v1094 = vmul.f32 %v560, %v1036
    %v1095 = vmul.f32 %v561, %v1041
    %v1096 = vmul.f32 %v562, %v1046
    %v1097 = vmul.f32 %v563, %v1051
    %v1098 = vmul.f32 %v564, %v1056
    %v1099 = vmul.f32 %v565, %v1061
    %v1100 = vmul.f32 %v566, %v1066
    %v1101 = vmul.f32 %v567, %v1071
    %v1102 = vmul.f32 %v568, %v1076
    %v1103 = vmul.f32 %v569, %v1081
    %v1104 = vmul.f32 %v570, %v1086
    %v1105 = vlaneseq
    %v1106 = vshrl.u32 %v1105, 7
    %v1107 = vsub.s32 0, %v1106
    %v1108 = vrot.slane %v37, %v1107
    %v1109 = vadd.f32 %v1089, %v1108
    %v1110 = vadd.f32 %v1090, %v1108
    %v1111 = vadd.f32 %v1091, %v1108
    %v1112 = vadd.f32 %v1092, %v1108
    %v1113 = vadd.f32 %v1093, %v1108
    %v1114 = vadd.f32 %v1094, %v1108
    %v1115 = vadd.f32 %v1095, %v1108
    %v1116 = vadd.f32 %v1096, %v1108
    %v1117 = vadd.f32 %v1097, %v1108
    %v1118 = vadd.f32 %v1098, %v1108
    %v1119 = vadd.f32 %v1099, %v1108
    %v1120 = vadd.f32 %v1100, %v1108
    %v1121 = vadd.f32 %v1101, %v1108
    %v1122 = vadd.f32 %v1102, %v1108
    %v1123 = vadd.f32 %v1103, %v1108
    %v1124 = vadd.f32 %v1104, %v1108
    %v1125 = vmax.f32 %v1109, 0.0
    %v1126 = vmax.f32 %v1110, 0.0
    %v1127 = vmax.f32 %v1111, 0.0
    %v1128 = vmax.f32 %v1112, 0.0
    %v1129 = vmax.f32 %v1113, 0.0
    %v1130 = vmax.f32 %v1114, 0.0
    %v1131 = vmax.f32 %v1115, 0.0
    %v1132 = vmax.f32 %v1116, 0.0
    %v1133 = vmax.f32 %v1117, 0.0
    %v1134 = vmax.f32 %v1118, 0.0
    %v1135 = vmax.f32 %v1119, 0.0
    %v1136 = vmax.f32 %v1120, 0.0
    %v1137 = vmax.f32 %v1121, 0.0
    %v1138 = vmax.f32 %v1122, 0.0
    %v1139 = vmax.f32 %v1123, 0.0
    %v1140 = vmax.f32 %v1124, 0.0
    %v1141 = vld [vmem:[%s3] sm:$0xff]
    %v1142 = vld [vmem:[%s3 + $0x8] sm:$0xff]
    %v1143 = vld [vmem:[%s3 + $0x10] sm:$0xff]
    %v1144 = vld [vmem:[%s3 + $0x18] sm:$0xff]
    %v1145 = vld [vmem:[%s3 + $0x20] sm:$0xff]
    %v1146 = vld [vmem:[%s3 + $0x28] sm:$0xff]
    %v1147 = vld [vmem:[%s3 + $0x30] sm:$0xff]
    %v1148 = vld [vmem:[%s3 + $0x38] sm:$0xff]
    %v1149 = vld [vmem:[%s3 + $0x40] sm:$0xff]
    %v1150 = vld [vmem:[%s3 + $0x48] sm:$0xff]
    %v1151 = vld [vmem:[%s3 + $0x50] sm:$0xff]
    %v1152 = vld [vmem:[%s3 + $0x58] sm:$0xff]
    %v1153 = vlaneseq
    %v1154 = vshrl.u32 %v1153, 7
    %v1155 = vsub.s32 0, %v1154
    %v1156 = vrot.slane %v39, %v1155
    %vm1157 = vcmask 31744
    %v1159 = vsel %vm1157, %v1141, 0
    %v1162 = vsel %vm1157, %v1142, 0
    %v1165 = vsel %vm1157, %v1143, 0
    %v1168 = vsel %vm1157, %v1144, 0
    %v1171 = vsel %vm1157, %v1145, 0
    %v1174 = vsel %vm1157, %v1146, 0
    %v1177 = vsel %vm1157, %v1147, 0
    %v1180 = vsel %vm1157, %v1148, 0
    %v1183 = vsel %vm1157, %v1149, 0
    %v1186 = vsel %vm1157, %v1150, 0
    %v1189 = vsel %vm1157, %v1151, 0
    %v1192 = vsel %vm1157, %v1152, 0
    %vm1194 = vcmask 1043456
    %v1196 = vsel %vm1194, %v38, 0
    %1198 = vmatprep.subr.mxu0 0.0
    %1199 = vmatpush1.msra.mxu0 0.0
    %1200 = vmatprep.subr.mxu0 0.0
    %1201 = vmatpush1.msra.mxu0 0.0
    %1202 = vmatprep.subr.mxu0 0.0
    %1203 = vmatpush1.msra.mxu0 0.0
    %1204 = vmatprep.subr.mxu0 0.0
    %1205 = vmatpush1.msra.mxu0 0.0
    %1206 = vmatprep.subr.mxu0 0.0
    %1207 = vmatpush1.msra.mxu0 0.0
    %1208 = vmatprep.subr.mxu0 0.0
    %1209 = vmatpush1.msra.mxu0 0.0
    %1210 = vmatprep.subr.mxu0 0.0
    %1211 = vmatpush1.msra.mxu0 0.0
    %1212 = vmatprep.subr.mxu0 0.0
    %1213 = vmatpush1.msra.mxu0 0.0
    %1214 = vmatprep.subr.mxu0 0.0
    %1215 = vmatpush1.msra.mxu0 0.0
    %1216 = vmatprep.subr.mxu0 0.0
    %1217 = vmatpush1.msra.mxu0 0.0
    %1218 = vmatprep.subr.mxu0 0.0
    %1219 = vmatpush1.msra.mxu0 0.0
    %1220 = vmatprep.subr.mxu0 0.0
    %1221 = vmatpush1.msra.mxu0 0.0
    %1222 = vmatprep.subr.mxu0 0.0
    %1223 = vmatpush1.msra.mxu0 0.0
    %1224 = vmatprep.subr.mxu0 0.0
    %1225 = vmatpush1.msra.mxu0 0.0
    %1226 = vmatprep.subr.mxu0 0.0
    %1227 = vmatpush1.msra.mxu0 0.0
    %1228 = vmatprep.subr.mxu0 0.0
    %1229 = vmatpush1.msra.mxu0 %v1196
    %1230 = vmatprep.subr.mxu0 0.0
    %1231 = vmatpush2.msra.mxu0 0.0
    %1232 = vmatprep.subr.mxu0 0.0
    %1233 = vmatpush2.msra.mxu0 0.0
    %1234 = vmatprep.subr.mxu0 0.0
    %1235 = vmatpush2.msra.mxu0 0.0
    %1236 = vmatprep.subr.mxu0 0.0
    %1237 = vmatpush2.msra.mxu0 0.0
    %1238 = vmatprep.subr.mxu0 0.0
    %1239 = vmatpush2.msra.mxu0 0.0
    %1240 = vmatprep.subr.mxu0 0.0
    %1241 = vmatpush2.msra.mxu0 0.0
    %1242 = vmatprep.subr.mxu0 0.0
    %1243 = vmatpush2.msra.mxu0 0.0
    %1244 = vmatprep.subr.mxu0 0.0
    %1245 = vmatpush2.msra.mxu0 0.0
    %1246 = vmatprep.subr.mxu0 0.0
    %1247 = vmatpush2.msra.mxu0 0.0
    %1248 = vmatprep.subr.mxu0 0.0
    %1249 = vmatpush2.msra.mxu0 0.0
    %1250 = vmatprep.subr.mxu0 0.0
    %1251 = vmatpush2.msra.mxu0 0.0
    %1252 = vmatprep.subr.mxu0 0.0
    %1253 = vmatpush2.msra.mxu0 0.0
    %1254 = vmatprep.subr.mxu0 0.0
    %1255 = vmatpush2.msra.mxu0 0.0
    %1256 = vmatprep.subr.mxu0 0.0
    %1257 = vmatpush2.msra.mxu0 0.0
    %1258 = vmatprep.subr.mxu0 0.0
    %1259 = vmatpush2.msra.mxu0 0.0
    %1260 = vmatprep.subr.mxu0 0.0
    %1261 = vmatpush2.msra.mxu0 0.0
    %1262 = vmatprep.mubr.f32.mxu0 0.0
    %1263 = vmatmul.mubr.f32.gmra.mxu0 %v1159
    %v1264 = vpop.f32.mrf.mxu0
    %v1265 = vadd.f32 %v1156, %v1264
    %v1266 = vpop.f32.mrf.mxu0
    %1267 = vmatprep.mubr.f32.mxu0 0.0
    %1268 = vmatmul.mubr.f32.gmra.mxu0 %v1162
    %v1269 = vpop.f32.mrf.mxu0
    %v1270 = vadd.f32 %v1156, %v1269
    %v1271 = vpop.f32.mrf.mxu0
    %1272 = vmatprep.mubr.f32.mxu0 0.0
    %1273 = vmatmul.mubr.f32.gmra.mxu0 %v1165
    %v1274 = vpop.f32.mrf.mxu0
    %v1275 = vadd.f32 %v1156, %v1274
    %v1276 = vpop.f32.mrf.mxu0
    %1277 = vmatprep.mubr.f32.mxu0 0.0
    %1278 = vmatmul.mubr.f32.gmra.mxu0 %v1168
    %v1279 = vpop.f32.mrf.mxu0
    %v1280 = vadd.f32 %v1156, %v1279
    %v1281 = vpop.f32.mrf.mxu0
    %1282 = vmatprep.mubr.f32.mxu0 0.0
    %1283 = vmatmul.mubr.f32.gmra.mxu0 %v1171
    %v1284 = vpop.f32.mrf.mxu0
    %v1285 = vadd.f32 %v1156, %v1284
    %v1286 = vpop.f32.mrf.mxu0
    %1287 = vmatprep.mubr.f32.mxu0 0.0
    %1288 = vmatmul.mubr.f32.gmra.mxu0 %v1174
    %v1289 = vpop.f32.mrf.mxu0
    %v1290 = vadd.f32 %v1156, %v1289
    %v1291 = vpop.f32.mrf.mxu0
    %1292 = vmatprep.mubr.f32.mxu0 0.0
    %1293 = vmatmul.mubr.f32.gmra.mxu0 %v1177
    %v1294 = vpop.f32.mrf.mxu0
    %v1295 = vadd.f32 %v1156, %v1294
    %v1296 = vpop.f32.mrf.mxu0
    %1297 = vmatprep.mubr.f32.mxu0 0.0
    %1298 = vmatmul.mubr.f32.gmra.mxu0 %v1180
    %v1299 = vpop.f32.mrf.mxu0
    %v1300 = vadd.f32 %v1156, %v1299
    %v1301 = vpop.f32.mrf.mxu0
    %1302 = vmatprep.mubr.f32.mxu0 0.0
    %1303 = vmatmul.mubr.f32.gmra.mxu0 %v1183
    %v1304 = vpop.f32.mrf.mxu0
    %v1305 = vadd.f32 %v1156, %v1304
    %v1306 = vpop.f32.mrf.mxu0
    %1307 = vmatprep.mubr.f32.mxu0 0.0
    %1308 = vmatmul.mubr.f32.gmra.mxu0 %v1186
    %v1309 = vpop.f32.mrf.mxu0
    %v1310 = vadd.f32 %v1156, %v1309
    %v1311 = vpop.f32.mrf.mxu0
    %1312 = vmatprep.mubr.f32.mxu0 0.0
    %1313 = vmatmul.mubr.f32.gmra.mxu0 %v1189
    %v1314 = vpop.f32.mrf.mxu0
    %v1315 = vadd.f32 %v1156, %v1314
    %v1316 = vpop.f32.mrf.mxu0
    %1317 = vmatprep.mubr.f32.mxu0 0.0
    %1318 = vmatmul.mubr.f32.gmra.mxu0 %v1192
    %v1319 = vpop.f32.mrf.mxu0
    %v1320 = vadd.f32 %v1156, %v1319
    %v1321 = vpop.f32.mrf.mxu0
    %1322 = vdwg.mxu0
    %v1323 = vmax.f32 %v1265, 0.0
    %v1324 = vmax.f32 %v1270, 0.0
    %v1325 = vmax.f32 %v1275, 0.0
    %v1326 = vmax.f32 %v1280, 0.0
    %v1327 = vmax.f32 %v1285, 0.0
    %v1328 = vmax.f32 %v1290, 0.0
    %v1329 = vmax.f32 %v1295, 0.0
    %v1330 = vmax.f32 %v1300, 0.0
    %v1331 = vmax.f32 %v1305, 0.0
    %v1332 = vmax.f32 %v1310, 0.0
    %v1333 = vmax.f32 %v1315, 0.0
    %v1334 = vmax.f32 %v1320, 0.0
    %v1335 = vlaneseq
    %v1336 = vshrl.u32 %v1335, 7
    %v1337 = vsub.s32 0, %v1336
    %v1338 = vrot.slane %v41, %v1337
    %vm1339 = vcmask 64512
    %v1341 = vsel %vm1339, %v1323, 0
    %v1344 = vsel %vm1339, %v1324, 0
    %v1347 = vsel %vm1339, %v1325, 0
    %v1350 = vsel %vm1339, %v1326, 0
    %v1353 = vsel %vm1339, %v1327, 0
    %v1356 = vsel %vm1339, %v1328, 0
    %v1359 = vsel %vm1339, %v1329, 0
    %v1362 = vsel %vm1339, %v1330, 0
    %v1365 = vsel %vm1339, %v1331, 0
    %v1368 = vsel %vm1339, %v1332, 0
    %v1371 = vsel %vm1339, %v1333, 0
    %v1374 = vsel %vm1339, %v1334, 0
    %1376 = vmatprep.subr.mxu0 0.0
    %1377 = vmatpush1.msra.mxu0 0.0
    %1378 = vmatprep.subr.mxu0 0.0
    %1379 = vmatpush1.msra.mxu0 0.0
    %1380 = vmatprep.subr.mxu0 0.0
    %1381 = vmatpush1.msra.mxu0 0.0
    %1382 = vmatprep.subr.mxu0 0.0
    %1383 = vmatpush1.msra.mxu0 0.0
    %1384 = vmatprep.subr.mxu0 0.0
    %1385 = vmatpush1.msra.mxu0 0.0
    %1386 = vmatprep.subr.mxu0 0.0
    %1387 = vmatpush1.msra.mxu0 0.0
    %1388 = vmatprep.subr.mxu0 0.0
    %1389 = vmatpush1.msra.mxu0 0.0
    %1390 = vmatprep.subr.mxu0 0.0
    %1391 = vmatpush1.msra.mxu0 0.0
    %1392 = vmatprep.subr.mxu0 0.0
    %1393 = vmatpush1.msra.mxu0 0.0
    %1394 = vmatprep.subr.mxu0 0.0
    %1395 = vmatpush1.msra.mxu0 0.0
    %1396 = vmatprep.subr.mxu0 0.0
    %1397 = vmatpush1.msra.mxu0 0.0
    %1398 = vmatprep.subr.mxu0 0.0
    %1399 = vmatpush1.msra.mxu0 0.0
    %1400 = vmatprep.subr.mxu0 0.0
    %1401 = vmatpush1.msra.mxu0 0.0
    %1402 = vmatprep.subr.mxu0 0.0
    %1403 = vmatpush1.msra.mxu0 0.0
    %1404 = vmatprep.subr.mxu0 0.0
    %1405 = vmatpush1.msra.mxu0 0.0
    %1406 = vmatprep.subr.mxu0 0.0
    %1407 = vmatpush1.msra.mxu0 %v40
    %1408 = vmatprep.subr.mxu0 0.0
    %1409 = vmatpush2.msra.mxu0 0.0
    %1410 = vmatprep.subr.mxu0 0.0
    %1411 = vmatpush2.msra.mxu0 0.0
    %1412 = vmatprep.subr.mxu0 0.0
    %1413 = vmatpush2.msra.mxu0 0.0
    %1414 = vmatprep.subr.mxu0 0.0
    %1415 = vmatpush2.msra.mxu0 0.0
    %1416 = vmatprep.subr.mxu0 0.0
    %1417 = vmatpush2.msra.mxu0 0.0
    %1418 = vmatprep.subr.mxu0 0.0
    %1419 = vmatpush2.msra.mxu0 0.0
    %1420 = vmatprep.subr.mxu0 0.0
    %1421 = vmatpush2.msra.mxu0 0.0
    %1422 = vmatprep.subr.mxu0 0.0
    %1423 = vmatpush2.msra.mxu0 0.0
    %1424 = vmatprep.subr.mxu0 0.0
    %1425 = vmatpush2.msra.mxu0 0.0
    %1426 = vmatprep.subr.mxu0 0.0
    %1427 = vmatpush2.msra.mxu0 0.0
    %1428 = vmatprep.subr.mxu0 0.0
    %1429 = vmatpush2.msra.mxu0 0.0
    %1430 = vmatprep.subr.mxu0 0.0
    %1431 = vmatpush2.msra.mxu0 0.0
    %1432 = vmatprep.subr.mxu0 0.0
    %1433 = vmatpush2.msra.mxu0 0.0
    %1434 = vmatprep.subr.mxu0 0.0
    %1435 = vmatpush2.msra.mxu0 0.0
    %1436 = vmatprep.subr.mxu0 0.0
    %1437 = vmatpush2.msra.mxu0 0.0
    %1438 = vmatprep.subr.mxu0 0.0
    %1439 = vmatpush2.msra.mxu0 0.0
    %1440 = vmatprep.mubr.f32.mxu0 0.0
    %1441 = vmatmul.mubr.f32.gmra.mxu0 %v1341
    %v1442 = vpop.f32.mrf.mxu0
    %v1443 = vadd.f32 %v1338, %v1442
    %v1444 = vpop.f32.mrf.mxu0
    %1445 = vmatprep.mubr.f32.mxu0 0.0
    %1446 = vmatmul.mubr.f32.gmra.mxu0 %v1344
    %v1447 = vpop.f32.mrf.mxu0
    %v1448 = vadd.f32 %v1338, %v1447
    %v1449 = vpop.f32.mrf.mxu0
    %1450 = vmatprep.mubr.f32.mxu0 0.0
    %1451 = vmatmul.mubr.f32.gmra.mxu0 %v1347
    %v1452 = vpop.f32.mrf.mxu0
    %v1453 = vadd.f32 %v1338, %v1452
    %v1454 = vpop.f32.mrf.mxu0
    %1455 = vmatprep.mubr.f32.mxu0 0.0
    %1456 = vmatmul.mubr.f32.gmra.mxu0 %v1350
    %v1457 = vpop.f32.mrf.mxu0
    %v1458 = vadd.f32 %v1338, %v1457
    %v1459 = vpop.f32.mrf.mxu0
    %1460 = vmatprep.mubr.f32.mxu0 0.0
    %1461 = vmatmul.mubr.f32.gmra.mxu0 %v1353
    %v1462 = vpop.f32.mrf.mxu0
    %v1463 = vadd.f32 %v1338, %v1462
    %v1464 = vpop.f32.mrf.mxu0
    %1465 = vmatprep.mubr.f32.mxu0 0.0
    %1466 = vmatmul.mubr.f32.gmra.mxu0 %v1356
    %v1467 = vpop.f32.mrf.mxu0
    %v1468 = vadd.f32 %v1338, %v1467
    %v1469 = vpop.f32.mrf.mxu0
    %1470 = vmatprep.mubr.f32.mxu0 0.0
    %1471 = vmatmul.mubr.f32.gmra.mxu0 %v1359
    %v1472 = vpop.f32.mrf.mxu0
    %v1473 = vadd.f32 %v1338, %v1472
    %v1474 = vpop.f32.mrf.mxu0
    %1475 = vmatprep.mubr.f32.mxu0 0.0
    %1476 = vmatmul.mubr.f32.gmra.mxu0 %v1362
    %v1477 = vpop.f32.mrf.mxu0
    %v1478 = vadd.f32 %v1338, %v1477
    %v1479 = vpop.f32.mrf.mxu0
    %1480 = vmatprep.mubr.f32.mxu0 0.0
    %1481 = vmatmul.mubr.f32.gmra.mxu0 %v1365
    %v1482 = vpop.f32.mrf.mxu0
    %v1483 = vadd.f32 %v1338, %v1482
    %v1484 = vpop.f32.mrf.mxu0
    %1485 = vmatprep.mubr.f32.mxu0 0.0
    %1486 = vmatmul.mubr.f32.gmra.mxu0 %v1368
    %v1487 = vpop.f32.mrf.mxu0
    %v1488 = vadd.f32 %v1338, %v1487
    %v1489 = vpop.f32.mrf.mxu0
    %1490 = vmatprep.mubr.f32.mxu0 0.0
    %1491 = vmatmul.mubr.f32.gmra.mxu0 %v1371
    %v1492 = vpop.f32.mrf.mxu0
    %v1493 = vadd.f32 %v1338, %v1492
    %v1494 = vpop.f32.mrf.mxu0
    %1495 = vmatprep.mubr.f32.mxu0 0.0
    %1496 = vmatmul.mubr.f32.gmra.mxu0 %v1374
    %v1497 = vpop.f32.mrf.mxu0
    %v1498 = vadd.f32 %v1338, %v1497
    %v1499 = vpop.f32.mrf.mxu0
    %1500 = vdwg.mxu0
    %v1501 = vshra.s32 %v87, 3
    %vm1502 = vcmp.eq.s32.totalorder %v62, %v1501
    %v1503 = vsel %vm1502, 1, 0
    %v1504 = vcvt.s32.f32 %v1503
    %v1505 = vand.u32 %v62, 7
    %v1506 = vand.u32 %v63, 7
    %v1507 = vand.u32 %v64, 7
    %v1508 = vand.u32 %v65, 7
    %v1509 = vand.u32 %v66, 7
    %v1510 = vand.u32 %v67, 7
    %v1511 = vand.u32 %v68, 7
    %v1512 = vand.u32 %v69, 7
    %vm1513 = vcmp.eq.s32.totalorder %v1505, %v87
    %vm1514 = vcmp.eq.s32.totalorder %v1506, %v87
    %vm1515 = vcmp.eq.s32.totalorder %v1507, %v87
    %vm1516 = vcmp.eq.s32.totalorder %v1508, %v87
    %vm1517 = vcmp.eq.s32.totalorder %v1509, %v87
    %vm1518 = vcmp.eq.s32.totalorder %v1510, %v87
    %vm1519 = vcmp.eq.s32.totalorder %v1511, %v87
    %vm1520 = vcmp.eq.s32.totalorder %v1512, %v87
    %v1521 = vsel %vm1513, 1, 0
    %v1522 = vsel %vm1514, 1, 0
    %v1523 = vsel %vm1515, 1, 0
    %v1524 = vsel %vm1516, 1, 0
    %v1525 = vsel %vm1517, 1, 0
    %v1526 = vsel %vm1518, 1, 0
    %v1527 = vsel %vm1519, 1, 0
    %v1528 = vsel %vm1520, 1, 0
    %v1529 = vcvt.s32.f32 %v1521
    %v1530 = vcvt.s32.f32 %v1522
    %v1531 = vcvt.s32.f32 %v1523
    %v1532 = vcvt.s32.f32 %v1524
    %v1533 = vcvt.s32.f32 %v1525
    %v1534 = vcvt.s32.f32 %v1526
    %v1535 = vcvt.s32.f32 %v1527
    %v1536 = vcvt.s32.f32 %v1528
    %1537 = vmatprep.subr.mxu0 0.0
    %1538 = vmatpush1.msra.mxu0 %v1140
    %1539 = vmatprep.subr.mxu0 0.0
    %1540 = vmatpush1.msra.mxu0 %v1139
    %1541 = vmatprep.subr.mxu0 0.0
    %1542 = vmatpush1.msra.mxu0 %v1138
    %1543 = vmatprep.subr.mxu0 0.0
    %1544 = vmatpush1.msra.mxu0 %v1137
    %1545 = vmatprep.subr.mxu0 0.0
    %1546 = vmatpush1.msra.mxu0 %v1136
    %1547 = vmatprep.subr.mxu0 0.0
    %1548 = vmatpush1.msra.mxu0 %v1135
    %1549 = vmatprep.subr.mxu0 0.0
    %1550 = vmatpush1.msra.mxu0 %v1134
    %1551 = vmatprep.subr.mxu0 0.0
    %1552 = vmatpush1.msra.mxu0 %v1133
    %1553 = vmatprep.subr.mxu0 0.0
    %1554 = vmatpush1.msra.mxu0 %v1132
    %1555 = vmatprep.subr.mxu0 0.0
    %1556 = vmatpush1.msra.mxu0 %v1131
    %1557 = vmatprep.subr.mxu0 0.0
    %1558 = vmatpush1.msra.mxu0 %v1130
    %1559 = vmatprep.subr.mxu0 0.0
    %1560 = vmatpush1.msra.mxu0 %v1129
    %1561 = vmatprep.subr.mxu0 0.0
    %1562 = vmatpush1.msra.mxu0 %v1128
    %1563 = vmatprep.subr.mxu0 0.0
    %1564 = vmatpush1.msra.mxu0 %v1127
    %1565 = vmatprep.subr.mxu0 0.0
    %1566 = vmatpush1.msra.mxu0 %v1126
    %1567 = vmatprep.subr.mxu0 0.0
    %1568 = vmatpush1.msra.mxu0 %v1125
    %1569 = vmatprep.subr.mxu0 0.0
    %1570 = vmatpush2.msra.mxu0 0.0
    %1571 = vmatprep.subr.mxu0 0.0
    %1572 = vmatpush2.msra.mxu0 0.0
    %1573 = vmatprep.subr.mxu0 0.0
    %1574 = vmatpush2.msra.mxu0 0.0
    %1575 = vmatprep.subr.mxu0 0.0
    %1576 = vmatpush2.msra.mxu0 0.0
    %1577 = vmatprep.subr.mxu0 0.0
    %1578 = vmatpush2.msra.mxu0 0.0
    %1579 = vmatprep.subr.mxu0 0.0
    %1580 = vmatpush2.msra.mxu0 0.0
    %1581 = vmatprep.subr.mxu0 0.0
    %1582 = vmatpush2.msra.mxu0 0.0
    %1583 = vmatprep.subr.mxu0 0.0
    %1584 = vmatpush2.msra.mxu0 0.0
    %1585 = vmatprep.subr.mxu0 0.0
    %1586 = vmatpush2.msra.mxu0 0.0
    %1587 = vmatprep.subr.mxu0 0.0
    %1588 = vmatpush2.msra.mxu0 0.0
    %1589 = vmatprep.subr.mxu0 0.0
    %1590 = vmatpush2.msra.mxu0 0.0
    %1591 = vmatprep.subr.mxu0 0.0
    %1592 = vmatpush2.msra.mxu0 0.0
    %1593 = vmatprep.subr.mxu0 0.0
    %1594 = vmatpush2.msra.mxu0 0.0
    %1595 = vmatprep.subr.mxu0 0.0
    %1596 = vmatpush2.msra.mxu0 0.0
    %1597 = vmatprep.subr.mxu0 0.0
    %1598 = vmatpush2.msra.mxu0 0.0
    %1599 = vmatprep.subr.mxu0 0.0
    %1600 = vmatpush2.msra.mxu0 0.0
    %1601 = vmatprep.mubr.f32.mxu0 0.0
    %1602 = vmatmul.mubr.f32.gmra.mxu0 %v175
    %v1603 = vpop.f32.mrf.mxu0
    %v1604 = vadd.f32 0.0, %v1603
    %v1605 = vpop.f32.mrf.mxu0
    %1606 = vmatprep.mubr.f32.mxu0 0.0
    %1607 = vmatmul.mubr.f32.gmra.mxu0 %v176
    %v1608 = vpop.f32.mrf.mxu0
    %v1609 = vadd.f32 0.0, %v1608
    %v1610 = vpop.f32.mrf.mxu0
    %1611 = vmatprep.mubr.f32.mxu0 0.0
    %1612 = vmatmul.mubr.f32.gmra.mxu0 %v177
    %v1613 = vpop.f32.mrf.mxu0
    %v1614 = vadd.f32 0.0, %v1613
    %v1615 = vpop.f32.mrf.mxu0
    %1616 = vmatprep.mubr.f32.mxu0 0.0
    %1617 = vmatmul.mubr.f32.gmra.mxu0 %v178
    %v1618 = vpop.f32.mrf.mxu0
    %v1619 = vadd.f32 0.0, %v1618
    %v1620 = vpop.f32.mrf.mxu0
    %1621 = vmatprep.mubr.f32.mxu0 0.0
    %1622 = vmatmul.mubr.f32.gmra.mxu0 %v179
    %v1623 = vpop.f32.mrf.mxu0
    %v1624 = vadd.f32 0.0, %v1623
    %v1625 = vpop.f32.mrf.mxu0
    %1626 = vmatprep.mubr.f32.mxu0 0.0
    %1627 = vmatmul.mubr.f32.gmra.mxu0 %v180
    %v1628 = vpop.f32.mrf.mxu0
    %v1629 = vadd.f32 0.0, %v1628
    %v1630 = vpop.f32.mrf.mxu0
    %1631 = vmatprep.mubr.f32.mxu0 0.0
    %1632 = vmatmul.mubr.f32.gmra.mxu0 %v181
    %v1633 = vpop.f32.mrf.mxu0
    %v1634 = vadd.f32 0.0, %v1633
    %v1635 = vpop.f32.mrf.mxu0
    %1636 = vmatprep.mubr.f32.mxu0 0.0
    %1637 = vmatmul.mubr.f32.gmra.mxu0 %v182
    %v1638 = vpop.f32.mrf.mxu0
    %v1639 = vadd.f32 0.0, %v1638
    %v1640 = vpop.f32.mrf.mxu0
    %1641 = vmatprep.mubr.f32.mxu0 0.0
    %1642 = vmatmul.mubr.f32.gmra.mxu0 %v183
    %v1643 = vpop.f32.mrf.mxu0
    %v1644 = vadd.f32 0.0, %v1643
    %v1645 = vpop.f32.mrf.mxu0
    %1646 = vmatprep.mubr.f32.mxu0 0.0
    %1647 = vmatmul.mubr.f32.gmra.mxu0 %v184
    %v1648 = vpop.f32.mrf.mxu0
    %v1649 = vadd.f32 0.0, %v1648
    %v1650 = vpop.f32.mrf.mxu0
    %1651 = vmatprep.mubr.f32.mxu0 0.0
    %1652 = vmatmul.mubr.f32.gmra.mxu0 %v185
    %v1653 = vpop.f32.mrf.mxu0
    %v1654 = vadd.f32 0.0, %v1653
    %v1655 = vpop.f32.mrf.mxu0
    %1656 = vmatprep.mubr.f32.mxu0 0.0
    %1657 = vmatmul.mubr.f32.gmra.mxu0 %v186
    %v1658 = vpop.f32.mrf.mxu0
    %v1659 = vadd.f32 0.0, %v1658
    %v1660 = vpop.f32.mrf.mxu0
    %1661 = vdwg.mxu0
    %v1663 = vsel %vm1339, %v1604, 0
    %v1666 = vsel %vm1339, %v1609, 0
    %v1669 = vsel %vm1339, %v1614, 0
    %v1672 = vsel %vm1339, %v1619, 0
    %v1675 = vsel %vm1339, %v1624, 0
    %v1678 = vsel %vm1339, %v1629, 0
    %v1681 = vsel %vm1339, %v1634, 0
    %v1684 = vsel %vm1339, %v1639, 0
    %v1687 = vsel %vm1339, %v1644, 0
    %v1690 = vsel %vm1339, %v1649, 0
    %v1693 = vsel %vm1339, %v1654, 0
    %v1696 = vsel %vm1339, %v1659, 0
    %1698 = vmatprep.subr.mxu0 0.0
    %1699 = vmatpush1.msra.mxu0 0.0
    %1700 = vmatprep.subr.mxu0 0.0
    %1701 = vmatpush1.msra.mxu0 0.0
    %1702 = vmatprep.subr.mxu0 0.0
    %1703 = vmatpush1.msra.mxu0 0.0
    %1704 = vmatprep.subr.mxu0 0.0
    %1705 = vmatpush1.msra.mxu0 0.0
    %1706 = vmatprep.subr.mxu0 0.0
    %1707 = vmatpush1.msra.mxu0 0.0
    %1708 = vmatprep.subr.mxu0 0.0
    %1709 = vmatpush1.msra.mxu0 0.0
    %1710 = vmatprep.subr.mxu0 0.0
    %1711 = vmatpush1.msra.mxu0 0.0
    %1712 = vmatprep.subr.mxu0 0.0
    %1713 = vmatpush1.msra.mxu0 0.0
    %1714 = vmatprep.subr.mxu0 0.0
    %1715 = vmatpush1.msra.mxu0 0.0
    %1716 = vmatprep.subr.mxu0 0.0
    %1717 = vmatpush1.msra.mxu0 0.0
    %1718 = vmatprep.subr.mxu0 0.0
    %1719 = vmatpush1.msra.mxu0 0.0
    %1720 = vmatprep.subr.mxu0 0.0
    %1721 = vmatpush1.msra.mxu0 0.0
    %1722 = vmatprep.subr.mxu0 0.0
    %1723 = vmatpush1.msra.mxu0 0.0
    %1724 = vmatprep.subr.mxu0 0.0
    %1725 = vmatpush1.msra.mxu0 0.0
    %1726 = vmatprep.subr.mxu0 0.0
    %1727 = vmatpush1.msra.mxu0 0.0
    %1728 = vmatprep.subr.mxu0 0.0
    %1729 = vmatpush1.msra.mxu0 %v1504
    %1730 = vmatprep.subr.mxu0 0.0
    %1731 = vmatpush2.msra.mxu0 0.0
    %1732 = vmatprep.subr.mxu0 0.0
    %1733 = vmatpush2.msra.mxu0 0.0
    %1734 = vmatprep.subr.mxu0 0.0
    %1735 = vmatpush2.msra.mxu0 0.0
    %1736 = vmatprep.subr.mxu0 0.0
    %1737 = vmatpush2.msra.mxu0 0.0
    %1738 = vmatprep.subr.mxu0 0.0
    %1739 = vmatpush2.msra.mxu0 0.0
    %1740 = vmatprep.subr.mxu0 0.0
    %1741 = vmatpush2.msra.mxu0 0.0
    %1742 = vmatprep.subr.mxu0 0.0
    %1743 = vmatpush2.msra.mxu0 0.0
    %1744 = vmatprep.subr.mxu0 0.0
    %1745 = vmatpush2.msra.mxu0 0.0
    %1746 = vmatprep.subr.mxu0 0.0
    %1747 = vmatpush2.msra.mxu0 0.0
    %1748 = vmatprep.subr.mxu0 0.0
    %1749 = vmatpush2.msra.mxu0 0.0
    %1750 = vmatprep.subr.mxu0 0.0
    %1751 = vmatpush2.msra.mxu0 0.0
    %1752 = vmatprep.subr.mxu0 0.0
    %1753 = vmatpush2.msra.mxu0 0.0
    %1754 = vmatprep.subr.mxu0 0.0
    %1755 = vmatpush2.msra.mxu0 0.0
    %1756 = vmatprep.subr.mxu0 0.0
    %1757 = vmatpush2.msra.mxu0 0.0
    %1758 = vmatprep.subr.mxu0 0.0
    %1759 = vmatpush2.msra.mxu0 0.0
    %1760 = vmatprep.subr.mxu0 0.0
    %1761 = vmatpush2.msra.mxu0 0.0
    %1762 = vmatprep.mubr.f32.mxu0 0.0
    %1763 = vmatmul.mubr.f32.gmra.mxu0 %v1663
    %v1764 = vpop.f32.mrf.mxu0
    %v1765 = vadd.f32 0.0, %v1764
    %v1766 = vpop.f32.mrf.mxu0
    %1767 = vmatprep.mubr.f32.mxu0 0.0
    %1768 = vmatmul.mubr.f32.gmra.mxu0 %v1666
    %v1769 = vpop.f32.mrf.mxu0
    %v1770 = vadd.f32 0.0, %v1769
    %v1771 = vpop.f32.mrf.mxu0
    %1772 = vmatprep.mubr.f32.mxu0 0.0
    %1773 = vmatmul.mubr.f32.gmra.mxu0 %v1669
    %v1774 = vpop.f32.mrf.mxu0
    %v1775 = vadd.f32 0.0, %v1774
    %v1776 = vpop.f32.mrf.mxu0
    %1777 = vmatprep.mubr.f32.mxu0 0.0
    %1778 = vmatmul.mubr.f32.gmra.mxu0 %v1672
    %v1779 = vpop.f32.mrf.mxu0
    %v1780 = vadd.f32 0.0, %v1779
    %v1781 = vpop.f32.mrf.mxu0
    %1782 = vmatprep.mubr.f32.mxu0 0.0
    %1783 = vmatmul.mubr.f32.gmra.mxu0 %v1675
    %v1784 = vpop.f32.mrf.mxu0
    %v1785 = vadd.f32 0.0, %v1784
    %v1786 = vpop.f32.mrf.mxu0
    %1787 = vmatprep.mubr.f32.mxu0 0.0
    %1788 = vmatmul.mubr.f32.gmra.mxu0 %v1678
    %v1789 = vpop.f32.mrf.mxu0
    %v1790 = vadd.f32 0.0, %v1789
    %v1791 = vpop.f32.mrf.mxu0
    %1792 = vmatprep.mubr.f32.mxu0 0.0
    %1793 = vmatmul.mubr.f32.gmra.mxu0 %v1681
    %v1794 = vpop.f32.mrf.mxu0
    %v1795 = vadd.f32 0.0, %v1794
    %v1796 = vpop.f32.mrf.mxu0
    %1797 = vmatprep.mubr.f32.mxu0 0.0
    %1798 = vmatmul.mubr.f32.gmra.mxu0 %v1684
    %v1799 = vpop.f32.mrf.mxu0
    %v1800 = vadd.f32 0.0, %v1799
    %v1801 = vpop.f32.mrf.mxu0
    %1802 = vmatprep.mubr.f32.mxu0 0.0
    %1803 = vmatmul.mubr.f32.gmra.mxu0 %v1687
    %v1804 = vpop.f32.mrf.mxu0
    %v1805 = vadd.f32 0.0, %v1804
    %v1806 = vpop.f32.mrf.mxu0
    %1807 = vmatprep.mubr.f32.mxu0 0.0
    %1808 = vmatmul.mubr.f32.gmra.mxu0 %v1690
    %v1809 = vpop.f32.mrf.mxu0
    %v1810 = vadd.f32 0.0, %v1809
    %v1811 = vpop.f32.mrf.mxu0
    %1812 = vmatprep.mubr.f32.mxu0 0.0
    %1813 = vmatmul.mubr.f32.gmra.mxu0 %v1693
    %v1814 = vpop.f32.mrf.mxu0
    %v1815 = vadd.f32 0.0, %v1814
    %v1816 = vpop.f32.mrf.mxu0
    %1817 = vmatprep.mubr.f32.mxu0 0.0
    %1818 = vmatmul.mubr.f32.gmra.mxu0 %v1696
    %v1819 = vpop.f32.mrf.mxu0
    %v1820 = vadd.f32 0.0, %v1819
    %v1821 = vpop.f32.mrf.mxu0
    %1822 = vdwg.mxu0
    %v1823 = vmul.f32 %v1765, %v1443
    %v1824 = vmul.f32 %v1770, %v1448
    %v1825 = vmul.f32 %v1775, %v1453
    %v1826 = vmul.f32 %v1780, %v1458
    %v1827 = vmul.f32 %v1785, %v1463
    %v1828 = vmul.f32 %v1790, %v1468
    %v1829 = vmul.f32 %v1795, %v1473
    %v1830 = vmul.f32 %v1800, %v1478
    %v1831 = vmul.f32 %v1805, %v1483
    %v1832 = vmul.f32 %v1810, %v1488
    %v1833 = vmul.f32 %v1815, %v1493
    %v1834 = vmul.f32 %v1820, %v1498
    %vm1835 = vcmask 523264
    %v1837 = vsel %vm1835, %v1823, 0
    %v1840 = vsel %vm1835, %v1824, 0
    %v1843 = vsel %vm1835, %v1825, 0
    %v1846 = vsel %vm1835, %v1826, 0
    %v1849 = vsel %vm1835, %v1827, 0
    %v1852 = vsel %vm1835, %v1828, 0
    %v1855 = vsel %vm1835, %v1829, 0
    %v1858 = vsel %vm1835, %v1830, 0
    %v1861 = vsel %vm1835, %v1831, 0
    %v1864 = vsel %vm1835, %v1832, 0
    %v1867 = vsel %vm1835, %v1833, 0
    %v1870 = vsel %vm1835, %v1834, 0
    %1872 = vmatprep.subr.mxu0 0.0
    %1873 = vmatpush1.msra.mxu0 0.0
    %1874 = vmatprep.subr.mxu0 0.0
    %1875 = vmatpush1.msra.mxu0 0.0
    %1876 = vmatprep.subr.mxu0 0.0
    %1877 = vmatpush1.msra.mxu0 0.0
    %1878 = vmatprep.subr.mxu0 0.0
    %1879 = vmatpush1.msra.mxu0 0.0
    %1880 = vmatprep.subr.mxu0 0.0
    %1881 = vmatpush1.msra.mxu0 0.0
    %1882 = vmatprep.subr.mxu0 0.0
    %1883 = vmatpush1.msra.mxu0 0.0
    %1884 = vmatprep.subr.mxu0 0.0
    %1885 = vmatpush1.msra.mxu0 0.0
    %1886 = vmatprep.subr.mxu0 0.0
    %1887 = vmatpush1.msra.mxu0 0.0
    %1888 = vmatprep.subr.mxu0 0.0
    %1889 = vmatpush1.msra.mxu0 %v1536
    %1890 = vmatprep.subr.mxu0 0.0
    %1891 = vmatpush1.msra.mxu0 %v1535
    %1892 = vmatprep.subr.mxu0 0.0
    %1893 = vmatpush1.msra.mxu0 %v1534
    %1894 = vmatprep.subr.mxu0 0.0
    %1895 = vmatpush1.msra.mxu0 %v1533
    %1896 = vmatprep.subr.mxu0 0.0
    %1897 = vmatpush1.msra.mxu0 %v1532
    %1898 = vmatprep.subr.mxu0 0.0
    %1899 = vmatpush1.msra.mxu0 %v1531
    %1900 = vmatprep.subr.mxu0 0.0
    %1901 = vmatpush1.msra.mxu0 %v1530
    %1902 = vmatprep.subr.mxu0 0.0
    %1903 = vmatpush1.msra.mxu0 %v1529
    %1904 = vmatprep.subr.mxu0 0.0
    %1905 = vmatpush2.msra.mxu0 0.0
    %1906 = vmatprep.subr.mxu0 0.0
    %1907 = vmatpush2.msra.mxu0 0.0
    %1908 = vmatprep.subr.mxu0 0.0
    %1909 = vmatpush2.msra.mxu0 0.0
    %1910 = vmatprep.subr.mxu0 0.0
    %1911 = vmatpush2.msra.mxu0 0.0
    %1912 = vmatprep.subr.mxu0 0.0
    %1913 = vmatpush2.msra.mxu0 0.0
    %1914 = vmatprep.subr.mxu0 0.0
    %1915 = vmatpush2.msra.mxu0 0.0
    %1916 = vmatprep.subr.mxu0 0.0
    %1917 = vmatpush2.msra.mxu0 0.0
    %1918 = vmatprep.subr.mxu0 0.0
    %1919 = vmatpush2.msra.mxu0 0.0
    %1920 = vmatprep.subr.mxu0 0.0
    %1921 = vmatpush2.msra.mxu0 0.0
    %1922 = vmatprep.subr.mxu0 0.0
    %1923 = vmatpush2.msra.mxu0 0.0
    %1924 = vmatprep.subr.mxu0 0.0
    %1925 = vmatpush2.msra.mxu0 0.0
    %1926 = vmatprep.subr.mxu0 0.0
    %1927 = vmatpush2.msra.mxu0 0.0
    %1928 = vmatprep.subr.mxu0 0.0
    %1929 = vmatpush2.msra.mxu0 0.0
    %1930 = vmatprep.subr.mxu0 0.0
    %1931 = vmatpush2.msra.mxu0 0.0
    %1932 = vmatprep.subr.mxu0 0.0
    %1933 = vmatpush2.msra.mxu0 0.0
    %1934 = vmatprep.subr.mxu0 0.0
    %1935 = vmatpush2.msra.mxu0 0.0
    %1936 = vmatprep.mubr.f32.mxu0 0.0
    %1937 = vmatmul.mubr.f32.gmra.mxu0 %v1837
    %v1938 = vpop.f32.mrf.mxu0
    %v1939 = vadd.f32 0.0, %v1938
    %v1940 = vpop.f32.mrf.mxu0
    %1941 = vmatprep.mubr.f32.mxu0 0.0
    %1942 = vmatmul.mubr.f32.gmra.mxu0 %v1840
    %v1943 = vpop.f32.mrf.mxu0
    %v1944 = vadd.f32 0.0, %v1943
    %v1945 = vpop.f32.mrf.mxu0
    %1946 = vmatprep.mubr.f32.mxu0 0.0
    %1947 = vmatmul.mubr.f32.gmra.mxu0 %v1843
    %v1948 = vpop.f32.mrf.mxu0
    %v1949 = vadd.f32 0.0, %v1948
    %v1950 = vpop.f32.mrf.mxu0
    %1951 = vmatprep.mubr.f32.mxu0 0.0
    %1952 = vmatmul.mubr.f32.gmra.mxu0 %v1846
    %v1953 = vpop.f32.mrf.mxu0
    %v1954 = vadd.f32 0.0, %v1953
    %v1955 = vpop.f32.mrf.mxu0
    %1956 = vmatprep.mubr.f32.mxu0 0.0
    %1957 = vmatmul.mubr.f32.gmra.mxu0 %v1849
    %v1958 = vpop.f32.mrf.mxu0
    %v1959 = vadd.f32 0.0, %v1958
    %v1960 = vpop.f32.mrf.mxu0
    %1961 = vmatprep.mubr.f32.mxu0 0.0
    %1962 = vmatmul.mubr.f32.gmra.mxu0 %v1852
    %v1963 = vpop.f32.mrf.mxu0
    %v1964 = vadd.f32 0.0, %v1963
    %v1965 = vpop.f32.mrf.mxu0
    %1966 = vmatprep.mubr.f32.mxu0 0.0
    %1967 = vmatmul.mubr.f32.gmra.mxu0 %v1855
    %v1968 = vpop.f32.mrf.mxu0
    %v1969 = vadd.f32 0.0, %v1968
    %v1970 = vpop.f32.mrf.mxu0
    %1971 = vmatprep.mubr.f32.mxu0 0.0
    %1972 = vmatmul.mubr.f32.gmra.mxu0 %v1858
    %v1973 = vpop.f32.mrf.mxu0
    %v1974 = vadd.f32 0.0, %v1973
    %v1975 = vpop.f32.mrf.mxu0
    %1976 = vmatprep.mubr.f32.mxu0 0.0
    %1977 = vmatmul.mubr.f32.gmra.mxu0 %v1861
    %v1978 = vpop.f32.mrf.mxu0
    %v1979 = vadd.f32 0.0, %v1978
    %v1980 = vpop.f32.mrf.mxu0
    %1981 = vmatprep.mubr.f32.mxu0 0.0
    %1982 = vmatmul.mubr.f32.gmra.mxu0 %v1864
    %v1983 = vpop.f32.mrf.mxu0
    %v1984 = vadd.f32 0.0, %v1983
    %v1985 = vpop.f32.mrf.mxu0
    %1986 = vmatprep.mubr.f32.mxu0 0.0
    %1987 = vmatmul.mubr.f32.gmra.mxu0 %v1867
    %v1988 = vpop.f32.mrf.mxu0
    %v1989 = vadd.f32 0.0, %v1988
    %v1990 = vpop.f32.mrf.mxu0
    %1991 = vmatprep.mubr.f32.mxu0 0.0
    %1992 = vmatmul.mubr.f32.gmra.mxu0 %v1870
    %v1993 = vpop.f32.mrf.mxu0
    %v1994 = vadd.f32 0.0, %v1993
    %v1995 = vpop.f32.mrf.mxu0
    %1996 = vdwg.mxu0
    %v1997 = vsel %vm257, %v227, 0.0
    %1998 = vadd.xlane.f32.xlu0 %v1997
    %v1999 = vpop.xlane.xlu0 %1998
    %v2000 = vsel %vm257, %v228, 0.0
    %2001 = vadd.xlane.f32.xlu0 %v2000
    %v2002 = vpop.xlane.xlu0 %2001
    %v2003 = vsel %vm257, %v229, 0.0
    %2004 = vadd.xlane.f32.xlu0 %v2003
    %v2005 = vpop.xlane.xlu0 %2004
    %v2006 = vsel %vm257, %v230, 0.0
    %2007 = vadd.xlane.f32.xlu0 %v2006
    %v2008 = vpop.xlane.xlu0 %2007
    %v2009 = vsel %vm257, %v231, 0.0
    %2010 = vadd.xlane.f32.xlu0 %v2009
    %v2011 = vpop.xlane.xlu0 %2010
    %v2012 = vsel %vm257, %v232, 0.0
    %2013 = vadd.xlane.f32.xlu0 %v2012
    %v2014 = vpop.xlane.xlu0 %2013
    %v2015 = vsel %vm257, %v233, 0.0
    %2016 = vadd.xlane.f32.xlu0 %v2015
    %v2017 = vpop.xlane.xlu0 %2016
    %v2018 = vsel %vm257, %v234, 0.0
    %2019 = vadd.xlane.f32.xlu0 %v2018
    %v2020 = vpop.xlane.xlu0 %2019
    %v2021 = vsel %vm257, %v235, 0.0
    %2022 = vadd.xlane.f32.xlu0 %v2021
    %v2023 = vpop.xlane.xlu0 %2022
    %v2024 = vsel %vm257, %v236, 0.0
    %2025 = vadd.xlane.f32.xlu0 %v2024
    %v2026 = vpop.xlane.xlu0 %2025
    %v2027 = vsel %vm257, %v237, 0.0
    %2028 = vadd.xlane.f32.xlu0 %v2027
    %v2029 = vpop.xlane.xlu0 %2028
    %v2030 = vsel %vm257, %v238, 0.0
    %2031 = vadd.xlane.f32.xlu0 %v2030
    %v2032 = vpop.xlane.xlu0 %2031
    %v2033 = vsel %vm257, %v239, 0.0
    %2034 = vadd.xlane.f32.xlu0 %v2033
    %v2035 = vpop.xlane.xlu0 %2034
    %v2036 = vsel %vm257, %v240, 0.0
    %2037 = vadd.xlane.f32.xlu0 %v2036
    %v2038 = vpop.xlane.xlu0 %2037
    %v2039 = vsel %vm257, %v241, 0.0
    %2040 = vadd.xlane.f32.xlu0 %v2039
    %v2041 = vpop.xlane.xlu0 %2040
    %v2042 = vsel %vm257, %v242, 0.0
    %2043 = vadd.xlane.f32.xlu0 %v2042
    %v2044 = vpop.xlane.xlu0 %2043
    %v2045 = vmax.f32 %v1999, 1.0
    %v2046 = vmax.f32 %v2002, 1.0
    %v2047 = vmax.f32 %v2005, 1.0
    %v2048 = vmax.f32 %v2008, 1.0
    %v2049 = vmax.f32 %v2011, 1.0
    %v2050 = vmax.f32 %v2014, 1.0
    %v2051 = vmax.f32 %v2017, 1.0
    %v2052 = vmax.f32 %v2020, 1.0
    %v2053 = vmax.f32 %v2023, 1.0
    %v2054 = vmax.f32 %v2026, 1.0
    %v2055 = vmax.f32 %v2029, 1.0
    %v2056 = vmax.f32 %v2032, 1.0
    %v2057 = vmax.f32 %v2035, 1.0
    %v2058 = vmax.f32 %v2038, 1.0
    %v2059 = vmax.f32 %v2041, 1.0
    %v2060 = vmax.f32 %v2044, 1.0
    %v2061 = vrcp.pop %v2045
    %v2062 = vrcp.pop %v2046
    %v2063 = vrcp.pop %v2047
    %v2064 = vrcp.pop %v2048
    %v2065 = vrcp.pop %v2049
    %v2066 = vrcp.pop %v2050
    %v2067 = vrcp.pop %v2051
    %v2068 = vrcp.pop %v2052
    %v2069 = vrcp.pop %v2053
    %v2070 = vrcp.pop %v2054
    %v2071 = vrcp.pop %v2055
    %v2072 = vrcp.pop %v2056
    %v2073 = vrcp.pop %v2057
    %v2074 = vrcp.pop %v2058
    %v2075 = vrcp.pop %v2059
    %v2076 = vrcp.pop %v2060
    %v2078 = vsel %vm257, %v227, 0
    %v2081 = vsel %vm257, %v228, 0
    %v2084 = vsel %vm257, %v229, 0
    %v2087 = vsel %vm257, %v230, 0
    %v2090 = vsel %vm257, %v231, 0
    %v2093 = vsel %vm257, %v232, 0
    %v2096 = vsel %vm257, %v233, 0
    %v2099 = vsel %vm257, %v234, 0
    %v2102 = vsel %vm257, %v235, 0
    %v2105 = vsel %vm257, %v236, 0
    %v2108 = vsel %vm257, %v237, 0
    %v2111 = vsel %vm257, %v238, 0
    %v2114 = vsel %vm257, %v239, 0
    %v2117 = vsel %vm257, %v240, 0
    %v2120 = vsel %vm257, %v241, 0
    %v2123 = vsel %vm257, %v242, 0
    %2125 = vmatprep.subr.mxu0 0.0
    %2126 = vmatpush1.msra.mxu0 0.0
    %2127 = vmatprep.subr.mxu0 0.0
    %2128 = vmatpush1.msra.mxu0 0.0
    %2129 = vmatprep.subr.mxu0 0.0
    %2130 = vmatpush1.msra.mxu0 0.0
    %2131 = vmatprep.subr.mxu0 0.0
    %2132 = vmatpush1.msra.mxu0 0.0
    %2133 = vmatprep.subr.mxu0 0.0
    %2134 = vmatpush1.msra.mxu0 %v1994
    %2135 = vmatprep.subr.mxu0 0.0
    %2136 = vmatpush1.msra.mxu0 %v1989
    %2137 = vmatprep.subr.mxu0 0.0
    %2138 = vmatpush1.msra.mxu0 %v1984
    %2139 = vmatprep.subr.mxu0 0.0
    %2140 = vmatpush1.msra.mxu0 %v1979
    %2141 = vmatprep.subr.mxu0 0.0
    %2142 = vmatpush1.msra.mxu0 %v1974
    %2143 = vmatprep.subr.mxu0 0.0
    %2144 = vmatpush1.msra.mxu0 %v1969
    %2145 = vmatprep.subr.mxu0 0.0
    %2146 = vmatpush1.msra.mxu0 %v1964
    %2147 = vmatprep.subr.mxu0 0.0
    %2148 = vmatpush1.msra.mxu0 %v1959
    %2149 = vmatprep.subr.mxu0 0.0
    %2150 = vmatpush1.msra.mxu0 %v1954
    %2151 = vmatprep.subr.mxu0 0.0
    %2152 = vmatpush1.msra.mxu0 %v1949
    %2153 = vmatprep.subr.mxu0 0.0
    %2154 = vmatpush1.msra.mxu0 %v1944
    %2155 = vmatprep.subr.mxu0 0.0
    %2156 = vmatpush1.msra.mxu0 %v1939
    %2157 = vmatprep.subr.mxu0 0.0
    %2158 = vmatpush2.msra.mxu0 0.0
    %2159 = vmatprep.subr.mxu0 0.0
    %2160 = vmatpush2.msra.mxu0 0.0
    %2161 = vmatprep.subr.mxu0 0.0
    %2162 = vmatpush2.msra.mxu0 0.0
    %2163 = vmatprep.subr.mxu0 0.0
    %2164 = vmatpush2.msra.mxu0 0.0
    %2165 = vmatprep.subr.mxu0 0.0
    %2166 = vmatpush2.msra.mxu0 0.0
    %2167 = vmatprep.subr.mxu0 0.0
    %2168 = vmatpush2.msra.mxu0 0.0
    %2169 = vmatprep.subr.mxu0 0.0
    %2170 = vmatpush2.msra.mxu0 0.0
    %2171 = vmatprep.subr.mxu0 0.0
    %2172 = vmatpush2.msra.mxu0 0.0
    %2173 = vmatprep.subr.mxu0 0.0
    %2174 = vmatpush2.msra.mxu0 0.0
    %2175 = vmatprep.subr.mxu0 0.0
    %2176 = vmatpush2.msra.mxu0 0.0
    %2177 = vmatprep.subr.mxu0 0.0
    %2178 = vmatpush2.msra.mxu0 0.0
    %2179 = vmatprep.subr.mxu0 0.0
    %2180 = vmatpush2.msra.mxu0 0.0
    %2181 = vmatprep.subr.mxu0 0.0
    %2182 = vmatpush2.msra.mxu0 0.0
    %2183 = vmatprep.subr.mxu0 0.0
    %2184 = vmatpush2.msra.mxu0 0.0
    %2185 = vmatprep.subr.mxu0 0.0
    %2186 = vmatpush2.msra.mxu0 0.0
    %2187 = vmatprep.subr.mxu0 0.0
    %2188 = vmatpush2.msra.mxu0 0.0
    %2189 = vmatprep.mubr.f32.mxu0 0.0
    %2190 = vmatmul.mubr.f32.gmra.mxu0 %v2078
    %v2191 = vpop.f32.mrf.mxu0
    %v2192 = vadd.f32 0.0, %v2191
    %v2193 = vpop.f32.mrf.mxu0
    %2194 = vmatprep.mubr.f32.mxu0 0.0
    %2195 = vmatmul.mubr.f32.gmra.mxu0 %v2081
    %v2196 = vpop.f32.mrf.mxu0
    %v2197 = vadd.f32 0.0, %v2196
    %v2198 = vpop.f32.mrf.mxu0
    %2199 = vmatprep.mubr.f32.mxu0 0.0
    %2200 = vmatmul.mubr.f32.gmra.mxu0 %v2084
    %v2201 = vpop.f32.mrf.mxu0
    %v2202 = vadd.f32 0.0, %v2201
    %v2203 = vpop.f32.mrf.mxu0
    %2204 = vmatprep.mubr.f32.mxu0 0.0
    %2205 = vmatmul.mubr.f32.gmra.mxu0 %v2087
    %v2206 = vpop.f32.mrf.mxu0
    %v2207 = vadd.f32 0.0, %v2206
    %v2208 = vpop.f32.mrf.mxu0
    %2209 = vmatprep.mubr.f32.mxu0 0.0
    %2210 = vmatmul.mubr.f32.gmra.mxu0 %v2090
    %v2211 = vpop.f32.mrf.mxu0
    %v2212 = vadd.f32 0.0, %v2211
    %v2213 = vpop.f32.mrf.mxu0
    %2214 = vmatprep.mubr.f32.mxu0 0.0
    %2215 = vmatmul.mubr.f32.gmra.mxu0 %v2093
    %v2216 = vpop.f32.mrf.mxu0
    %v2217 = vadd.f32 0.0, %v2216
    %v2218 = vpop.f32.mrf.mxu0
    %2219 = vmatprep.mubr.f32.mxu0 0.0
    %2220 = vmatmul.mubr.f32.gmra.mxu0 %v2096
    %v2221 = vpop.f32.mrf.mxu0
    %v2222 = vadd.f32 0.0, %v2221
    %v2223 = vpop.f32.mrf.mxu0
    %2224 = vmatprep.mubr.f32.mxu0 0.0
    %2225 = vmatmul.mubr.f32.gmra.mxu0 %v2099
    %v2226 = vpop.f32.mrf.mxu0
    %v2227 = vadd.f32 0.0, %v2226
    %v2228 = vpop.f32.mrf.mxu0
    %2229 = vmatprep.mubr.f32.mxu0 0.0
    %2230 = vmatmul.mubr.f32.gmra.mxu0 %v2102
    %v2231 = vpop.f32.mrf.mxu0
    %v2232 = vadd.f32 0.0, %v2231
    %v2233 = vpop.f32.mrf.mxu0
    %2234 = vmatprep.mubr.f32.mxu0 0.0
    %2235 = vmatmul.mubr.f32.gmra.mxu0 %v2105
    %v2236 = vpop.f32.mrf.mxu0
    %v2237 = vadd.f32 0.0, %v2236
    %v2238 = vpop.f32.mrf.mxu0
    %2239 = vmatprep.mubr.f32.mxu0 0.0
    %2240 = vmatmul.mubr.f32.gmra.mxu0 %v2108
    %v2241 = vpop.f32.mrf.mxu0
    %v2242 = vadd.f32 0.0, %v2241
    %v2243 = vpop.f32.mrf.mxu0
    %2244 = vmatprep.mubr.f32.mxu0 0.0
    %2245 = vmatmul.mubr.f32.gmra.mxu0 %v2111
    %v2246 = vpop.f32.mrf.mxu0
    %v2247 = vadd.f32 0.0, %v2246
    %v2248 = vpop.f32.mrf.mxu0
    %2249 = vmatprep.mubr.f32.mxu0 0.0
    %2250 = vmatmul.mubr.f32.gmra.mxu0 %v2114
    %v2251 = vpop.f32.mrf.mxu0
    %v2252 = vadd.f32 0.0, %v2251
    %v2253 = vpop.f32.mrf.mxu0
    %2254 = vmatprep.mubr.f32.mxu0 0.0
    %2255 = vmatmul.mubr.f32.gmra.mxu0 %v2117
    %v2256 = vpop.f32.mrf.mxu0
    %v2257 = vadd.f32 0.0, %v2256
    %v2258 = vpop.f32.mrf.mxu0
    %2259 = vmatprep.mubr.f32.mxu0 0.0
    %2260 = vmatmul.mubr.f32.gmra.mxu0 %v2120
    %v2261 = vpop.f32.mrf.mxu0
    %v2262 = vadd.f32 0.0, %v2261
    %v2263 = vpop.f32.mrf.mxu0
    %2264 = vmatprep.mubr.f32.mxu0 0.0
    %2265 = vmatmul.mubr.f32.gmra.mxu0 %v2123
    %v2266 = vpop.f32.mrf.mxu0
    %v2267 = vadd.f32 0.0, %v2266
    %v2268 = vpop.f32.mrf.mxu0
    %2269 = vdwg.mxu0
    %v2270 = vmul.f32 %v2061, %v2192
    %v2271 = vmul.f32 %v2062, %v2197
    %v2272 = vmul.f32 %v2063, %v2202
    %v2273 = vmul.f32 %v2064, %v2207
    %v2274 = vmul.f32 %v2065, %v2212
    %v2275 = vmul.f32 %v2066, %v2217
    %v2276 = vmul.f32 %v2067, %v2222
    %v2277 = vmul.f32 %v2068, %v2227
    %v2278 = vmul.f32 %v2069, %v2232
    %v2279 = vmul.f32 %v2070, %v2237
    %v2280 = vmul.f32 %v2071, %v2242
    %v2281 = vmul.f32 %v2072, %v2247
    %v2282 = vmul.f32 %v2073, %v2252
    %v2283 = vmul.f32 %v2074, %v2257
    %v2284 = vmul.f32 %v2075, %v2262
    %v2285 = vmul.f32 %v2076, %v2267
    %v2287 = vsel %vm1339, %v1125, 0
    %v2290 = vsel %vm1339, %v1126, 0
    %v2293 = vsel %vm1339, %v1127, 0
    %v2296 = vsel %vm1339, %v1128, 0
    %v2299 = vsel %vm1339, %v1129, 0
    %v2302 = vsel %vm1339, %v1130, 0
    %v2305 = vsel %vm1339, %v1131, 0
    %v2308 = vsel %vm1339, %v1132, 0
    %v2311 = vsel %vm1339, %v1133, 0
    %v2314 = vsel %vm1339, %v1134, 0
    %v2317 = vsel %vm1339, %v1135, 0
    %v2320 = vsel %vm1339, %v1136, 0
    %v2323 = vsel %vm1339, %v1137, 0
    %v2326 = vsel %vm1339, %v1138, 0
    %v2329 = vsel %vm1339, %v1139, 0
    %v2332 = vsel %vm1339, %v1140, 0
    %2334 = vmatprep.subr.mxu0 0.0
    %2335 = vmatpush1.msra.mxu0 0.0
    %2336 = vmatprep.subr.mxu0 0.0
    %2337 = vmatpush1.msra.mxu0 0.0
    %2338 = vmatprep.subr.mxu0 0.0
    %2339 = vmatpush1.msra.mxu0 0.0
    %2340 = vmatprep.subr.mxu0 0.0
    %2341 = vmatpush1.msra.mxu0 0.0
    %2342 = vmatprep.subr.mxu0 0.0
    %2343 = vmatpush1.msra.mxu0 0.0
    %2344 = vmatprep.subr.mxu0 0.0
    %2345 = vmatpush1.msra.mxu0 0.0
    %2346 = vmatprep.subr.mxu0 0.0
    %2347 = vmatpush1.msra.mxu0 0.0
    %2348 = vmatprep.subr.mxu0 0.0
    %2349 = vmatpush1.msra.mxu0 0.0
    %2350 = vmatprep.subr.mxu0 0.0
    %2351 = vmatpush1.msra.mxu0 0.0
    %2352 = vmatprep.subr.mxu0 0.0
    %2353 = vmatpush1.msra.mxu0 0.0
    %2354 = vmatprep.subr.mxu0 0.0
    %2355 = vmatpush1.msra.mxu0 0.0
    %2356 = vmatprep.subr.mxu0 0.0
    %2357 = vmatpush1.msra.mxu0 0.0
    %2358 = vmatprep.subr.mxu0 0.0
    %2359 = vmatpush1.msra.mxu0 0.0
    %2360 = vmatprep.subr.mxu0 0.0
    %2361 = vmatpush1.msra.mxu0 0.0
    %2362 = vmatprep.subr.mxu0 0.0
    %2363 = vmatpush1.msra.mxu0 0.0
    %2364 = vmatprep.subr.mxu0 0.0
    %2365 = vmatpush1.msra.mxu0 %v42
    %2366 = vmatprep.subr.mxu0 0.0
    %2367 = vmatpush2.msra.mxu0 0.0
    %2368 = vmatprep.subr.mxu0 0.0
    %2369 = vmatpush2.msra.mxu0 0.0
    %2370 = vmatprep.subr.mxu0 0.0
    %2371 = vmatpush2.msra.mxu0 0.0
    %2372 = vmatprep.subr.mxu0 0.0
    %2373 = vmatpush2.msra.mxu0 0.0
    %2374 = vmatprep.subr.mxu0 0.0
    %2375 = vmatpush2.msra.mxu0 0.0
    %2376 = vmatprep.subr.mxu0 0.0
    %2377 = vmatpush2.msra.mxu0 0.0
    %2378 = vmatprep.subr.mxu0 0.0
    %2379 = vmatpush2.msra.mxu0 0.0
    %2380 = vmatprep.subr.mxu0 0.0
    %2381 = vmatpush2.msra.mxu0 0.0
    %2382 = vmatprep.subr.mxu0 0.0
    %2383 = vmatpush2.msra.mxu0 0.0
    %2384 = vmatprep.subr.mxu0 0.0
    %2385 = vmatpush2.msra.mxu0 0.0
    %2386 = vmatprep.subr.mxu0 0.0
    %2387 = vmatpush2.msra.mxu0 0.0
    %2388 = vmatprep.subr.mxu0 0.0
    %2389 = vmatpush2.msra.mxu0 0.0
    %2390 = vmatprep.subr.mxu0 0.0
    %2391 = vmatpush2.msra.mxu0 0.0
    %2392 = vmatprep.subr.mxu0 0.0
    %2393 = vmatpush2.msra.mxu0 0.0
    %2394 = vmatprep.subr.mxu0 0.0
    %2395 = vmatpush2.msra.mxu0 0.0
    %2396 = vmatprep.subr.mxu0 0.0
    %2397 = vmatpush2.msra.mxu0 0.0
    %2398 = vmatprep.mubr.f32.mxu0 0.0
    %2399 = vmatmul.mubr.f32.gmra.mxu0 %v2287
    %v2400 = vpop.f32.mrf.mxu0
    %v2401 = vadd.f32 0.0, %v2400
    %v2402 = vpop.f32.mrf.mxu0
    %2403 = vmatprep.mubr.f32.mxu0 0.0
    %2404 = vmatmul.mubr.f32.gmra.mxu0 %v2290
    %v2405 = vpop.f32.mrf.mxu0
    %v2406 = vadd.f32 0.0, %v2405
    %v2407 = vpop.f32.mrf.mxu0
    %2408 = vmatprep.mubr.f32.mxu0 0.0
    %2409 = vmatmul.mubr.f32.gmra.mxu0 %v2293
    %v2410 = vpop.f32.mrf.mxu0
    %v2411 = vadd.f32 0.0, %v2410
    %v2412 = vpop.f32.mrf.mxu0
    %2413 = vmatprep.mubr.f32.mxu0 0.0
    %2414 = vmatmul.mubr.f32.gmra.mxu0 %v2296
    %v2415 = vpop.f32.mrf.mxu0
    %v2416 = vadd.f32 0.0, %v2415
    %v2417 = vpop.f32.mrf.mxu0
    %2418 = vmatprep.mubr.f32.mxu0 0.0
    %2419 = vmatmul.mubr.f32.gmra.mxu0 %v2299
    %v2420 = vpop.f32.mrf.mxu0
    %v2421 = vadd.f32 0.0, %v2420
    %v2422 = vpop.f32.mrf.mxu0
    %2423 = vmatprep.mubr.f32.mxu0 0.0
    %2424 = vmatmul.mubr.f32.gmra.mxu0 %v2302
    %v2425 = vpop.f32.mrf.mxu0
    %v2426 = vadd.f32 0.0, %v2425
    %v2427 = vpop.f32.mrf.mxu0
    %2428 = vmatprep.mubr.f32.mxu0 0.0
    %2429 = vmatmul.mubr.f32.gmra.mxu0 %v2305
    %v2430 = vpop.f32.mrf.mxu0
    %v2431 = vadd.f32 0.0, %v2430
    %v2432 = vpop.f32.mrf.mxu0
    %2433 = vmatprep.mubr.f32.mxu0 0.0
    %2434 = vmatmul.mubr.f32.gmra.mxu0 %v2308
    %v2435 = vpop.f32.mrf.mxu0
    %v2436 = vadd.f32 0.0, %v2435
    %v2437 = vpop.f32.mrf.mxu0
    %2438 = vmatprep.mubr.f32.mxu0 0.0
    %2439 = vmatmul.mubr.f32.gmra.mxu0 %v2311
    %v2440 = vpop.f32.mrf.mxu0
    %v2441 = vadd.f32 0.0, %v2440
    %v2442 = vpop.f32.mrf.mxu0
    %2443 = vmatprep.mubr.f32.mxu0 0.0
    %2444 = vmatmul.mubr.f32.gmra.mxu0 %v2314
    %v2445 = vpop.f32.mrf.mxu0
    %v2446 = vadd.f32 0.0, %v2445
    %v2447 = vpop.f32.mrf.mxu0
    %2448 = vmatprep.mubr.f32.mxu0 0.0
    %2449 = vmatmul.mubr.f32.gmra.mxu0 %v2317
    %v2450 = vpop.f32.mrf.mxu0
    %v2451 = vadd.f32 0.0, %v2450
    %v2452 = vpop.f32.mrf.mxu0
    %2453 = vmatprep.mubr.f32.mxu0 0.0
    %2454 = vmatmul.mubr.f32.gmra.mxu0 %v2320
    %v2455 = vpop.f32.mrf.mxu0
    %v2456 = vadd.f32 0.0, %v2455
    %v2457 = vpop.f32.mrf.mxu0
    %2458 = vmatprep.mubr.f32.mxu0 0.0
    %2459 = vmatmul.mubr.f32.gmra.mxu0 %v2323
    %v2460 = vpop.f32.mrf.mxu0
    %v2461 = vadd.f32 0.0, %v2460
    %v2462 = vpop.f32.mrf.mxu0
    %2463 = vmatprep.mubr.f32.mxu0 0.0
    %2464 = vmatmul.mubr.f32.gmra.mxu0 %v2326
    %v2465 = vpop.f32.mrf.mxu0
    %v2466 = vadd.f32 0.0, %v2465
    %v2467 = vpop.f32.mrf.mxu0
    %2468 = vmatprep.mubr.f32.mxu0 0.0
    %2469 = vmatmul.mubr.f32.gmra.mxu0 %v2329
    %v2470 = vpop.f32.mrf.mxu0
    %v2471 = vadd.f32 0.0, %v2470
    %v2472 = vpop.f32.mrf.mxu0
    %2473 = vmatprep.mubr.f32.mxu0 0.0
    %2474 = vmatmul.mubr.f32.gmra.mxu0 %v2332
    %v2475 = vpop.f32.mrf.mxu0
    %v2476 = vadd.f32 0.0, %v2475
    %v2477 = vpop.f32.mrf.mxu0
    %2478 = vdwg.mxu0
    %v2479 = vadd.f32 %v2270, %v2401
    %v2480 = vadd.f32 %v2271, %v2406
    %v2481 = vadd.f32 %v2272, %v2411
    %v2482 = vadd.f32 %v2273, %v2416
    %v2483 = vadd.f32 %v2274, %v2421
    %v2484 = vadd.f32 %v2275, %v2426
    %v2485 = vadd.f32 %v2276, %v2431
    %v2486 = vadd.f32 %v2277, %v2436
    %v2487 = vadd.f32 %v2278, %v2441
    %v2488 = vadd.f32 %v2279, %v2446
    %v2489 = vadd.f32 %v2280, %v2451
    %v2490 = vadd.f32 %v2281, %v2456
    %v2491 = vadd.f32 %v2282, %v2461
    %v2492 = vadd.f32 %v2283, %v2466
    %v2493 = vadd.f32 %v2284, %v2471
    %v2494 = vadd.f32 %v2285, %v2476
    %v2495 = vlaneseq
    %v2496 = vshrl.u32 %v2495, 7
    %v2497 = vsub.s32 0, %v2496
    %v2498 = vrot.slane %v43, %v2497
    %v2499 = vadd.f32 %v2479, %v2498
    %v2500 = vadd.f32 %v2480, %v2498
    %v2501 = vadd.f32 %v2481, %v2498
    %v2502 = vadd.f32 %v2482, %v2498
    %v2503 = vadd.f32 %v2483, %v2498
    %v2504 = vadd.f32 %v2484, %v2498
    %v2505 = vadd.f32 %v2485, %v2498
    %v2506 = vadd.f32 %v2486, %v2498
    %v2507 = vadd.f32 %v2487, %v2498
    %v2508 = vadd.f32 %v2488, %v2498
    %v2509 = vadd.f32 %v2489, %v2498
    %v2510 = vadd.f32 %v2490, %v2498
    %v2511 = vadd.f32 %v2491, %v2498
    %v2512 = vadd.f32 %v2492, %v2498
    %v2513 = vadd.f32 %v2493, %v2498
    %v2514 = vadd.f32 %v2494, %v2498
    %v2515 = vtanh.pop %v2499
    %v2516 = vtanh.pop %v2500
    %v2517 = vtanh.pop %v2501
    %v2518 = vtanh.pop %v2502
    %v2519 = vtanh.pop %v2503
    %v2520 = vtanh.pop %v2504
    %v2521 = vtanh.pop %v2505
    %v2522 = vtanh.pop %v2506
    %v2523 = vtanh.pop %v2507
    %v2524 = vtanh.pop %v2508
    %v2525 = vtanh.pop %v2509
    %v2526 = vtanh.pop %v2510
    %v2527 = vtanh.pop %v2511
    %v2528 = vtanh.pop %v2512
    %v2529 = vtanh.pop %v2513
    %v2530 = vtanh.pop %v2514
    %v2531 = vlaneseq
    %v2532 = vshrl.u32 %v2531, 7
    %v2533 = vsub.s32 0, %v2532
    %v2534 = vrot.slane %v46, %v2533
    %v2536 = vsel %vm1339, %v2515, 0
    %v2539 = vsel %vm1339, %v2516, 0
    %v2542 = vsel %vm1339, %v2517, 0
    %v2545 = vsel %vm1339, %v2518, 0
    %v2548 = vsel %vm1339, %v2519, 0
    %v2551 = vsel %vm1339, %v2520, 0
    %v2554 = vsel %vm1339, %v2521, 0
    %v2557 = vsel %vm1339, %v2522, 0
    %v2560 = vsel %vm1339, %v2523, 0
    %v2563 = vsel %vm1339, %v2524, 0
    %v2566 = vsel %vm1339, %v2525, 0
    %v2569 = vsel %vm1339, %v2526, 0
    %v2572 = vsel %vm1339, %v2527, 0
    %v2575 = vsel %vm1339, %v2528, 0
    %v2578 = vsel %vm1339, %v2529, 0
    %v2581 = vsel %vm1339, %v2530, 0
    %2583 = vmatprep.subr.mxu0 0.0
    %2584 = vmatpush1.msra.mxu0 0.0
    %2585 = vmatprep.subr.mxu0 0.0
    %2586 = vmatpush1.msra.mxu0 0.0
    %2587 = vmatprep.subr.mxu0 0.0
    %2588 = vmatpush1.msra.mxu0 0.0
    %2589 = vmatprep.subr.mxu0 0.0
    %2590 = vmatpush1.msra.mxu0 0.0
    %2591 = vmatprep.subr.mxu0 0.0
    %2592 = vmatpush1.msra.mxu0 0.0
    %2593 = vmatprep.subr.mxu0 0.0
    %2594 = vmatpush1.msra.mxu0 0.0
    %2595 = vmatprep.subr.mxu0 0.0
    %2596 = vmatpush1.msra.mxu0 0.0
    %2597 = vmatprep.subr.mxu0 0.0
    %2598 = vmatpush1.msra.mxu0 0.0
    %2599 = vmatprep.subr.mxu0 0.0
    %2600 = vmatpush1.msra.mxu0 0.0
    %2601 = vmatprep.subr.mxu0 0.0
    %2602 = vmatpush1.msra.mxu0 0.0
    %2603 = vmatprep.subr.mxu0 0.0
    %2604 = vmatpush1.msra.mxu0 0.0
    %2605 = vmatprep.subr.mxu0 0.0
    %2606 = vmatpush1.msra.mxu0 0.0
    %2607 = vmatprep.subr.mxu0 0.0
    %2608 = vmatpush1.msra.mxu0 0.0
    %2609 = vmatprep.subr.mxu0 0.0
    %2610 = vmatpush1.msra.mxu0 0.0
    %2611 = vmatprep.subr.mxu0 0.0
    %2612 = vmatpush1.msra.mxu0 0.0
    %2613 = vmatprep.subr.mxu0 0.0
    %2614 = vmatpush1.msra.mxu0 %v44
    %2615 = vmatprep.subr.mxu0 0.0
    %2616 = vmatpush2.msra.mxu0 0.0
    %2617 = vmatprep.subr.mxu0 0.0
    %2618 = vmatpush2.msra.mxu0 0.0
    %2619 = vmatprep.subr.mxu0 0.0
    %2620 = vmatpush2.msra.mxu0 0.0
    %2621 = vmatprep.subr.mxu0 0.0
    %2622 = vmatpush2.msra.mxu0 0.0
    %2623 = vmatprep.subr.mxu0 0.0
    %2624 = vmatpush2.msra.mxu0 0.0
    %2625 = vmatprep.subr.mxu0 0.0
    %2626 = vmatpush2.msra.mxu0 0.0
    %2627 = vmatprep.subr.mxu0 0.0
    %2628 = vmatpush2.msra.mxu0 0.0
    %2629 = vmatprep.subr.mxu0 0.0
    %2630 = vmatpush2.msra.mxu0 0.0
    %2631 = vmatprep.subr.mxu0 0.0
    %2632 = vmatpush2.msra.mxu0 0.0
    %2633 = vmatprep.subr.mxu0 0.0
    %2634 = vmatpush2.msra.mxu0 0.0
    %2635 = vmatprep.subr.mxu0 0.0
    %2636 = vmatpush2.msra.mxu0 0.0
    %2637 = vmatprep.subr.mxu0 0.0
    %2638 = vmatpush2.msra.mxu0 0.0
    %2639 = vmatprep.subr.mxu0 0.0
    %2640 = vmatpush2.msra.mxu0 0.0
    %2641 = vmatprep.subr.mxu0 0.0
    %2642 = vmatpush2.msra.mxu0 0.0
    %2643 = vmatprep.subr.mxu0 0.0
    %2644 = vmatpush2.msra.mxu0 0.0
    %2645 = vmatprep.subr.mxu0 0.0
    %2646 = vmatpush2.msra.mxu0 0.0
    %2647 = vmatprep.mubr.f32.mxu0 0.0
    %2648 = vmatmul.mubr.f32.gmra.mxu0 %v2536
    %v2649 = vpop.f32.mrf.mxu0
    %v2650 = vadd.f32 %v2534, %v2649
    %v2651 = vpop.f32.mrf.mxu0
    %2652 = vmatprep.mubr.f32.mxu0 0.0
    %2653 = vmatmul.mubr.f32.gmra.mxu0 %v2539
    %v2654 = vpop.f32.mrf.mxu0
    %v2655 = vadd.f32 %v2534, %v2654
    %v2656 = vpop.f32.mrf.mxu0
    %2657 = vmatprep.mubr.f32.mxu0 0.0
    %2658 = vmatmul.mubr.f32.gmra.mxu0 %v2542
    %v2659 = vpop.f32.mrf.mxu0
    %v2660 = vadd.f32 %v2534, %v2659
    %v2661 = vpop.f32.mrf.mxu0
    %2662 = vmatprep.mubr.f32.mxu0 0.0
    %2663 = vmatmul.mubr.f32.gmra.mxu0 %v2545
    %v2664 = vpop.f32.mrf.mxu0
    %v2665 = vadd.f32 %v2534, %v2664
    %v2666 = vpop.f32.mrf.mxu0
    %2667 = vmatprep.mubr.f32.mxu0 0.0
    %2668 = vmatmul.mubr.f32.gmra.mxu0 %v2548
    %v2669 = vpop.f32.mrf.mxu0
    %v2670 = vadd.f32 %v2534, %v2669
    %v2671 = vpop.f32.mrf.mxu0
    %2672 = vmatprep.mubr.f32.mxu0 0.0
    %2673 = vmatmul.mubr.f32.gmra.mxu0 %v2551
    %v2674 = vpop.f32.mrf.mxu0
    %v2675 = vadd.f32 %v2534, %v2674
    %v2676 = vpop.f32.mrf.mxu0
    %2677 = vmatprep.mubr.f32.mxu0 0.0
    %2678 = vmatmul.mubr.f32.gmra.mxu0 %v2554
    %v2679 = vpop.f32.mrf.mxu0
    %v2680 = vadd.f32 %v2534, %v2679
    %v2681 = vpop.f32.mrf.mxu0
    %2682 = vmatprep.mubr.f32.mxu0 0.0
    %2683 = vmatmul.mubr.f32.gmra.mxu0 %v2557
    %v2684 = vpop.f32.mrf.mxu0
    %v2685 = vadd.f32 %v2534, %v2684
    %v2686 = vpop.f32.mrf.mxu0
    %2687 = vmatprep.mubr.f32.mxu0 0.0
    %2688 = vmatmul.mubr.f32.gmra.mxu0 %v2560
    %v2689 = vpop.f32.mrf.mxu0
    %v2690 = vadd.f32 %v2534, %v2689
    %v2691 = vpop.f32.mrf.mxu0
    %2692 = vmatprep.mubr.f32.mxu0 0.0
    %2693 = vmatmul.mubr.f32.gmra.mxu0 %v2563
    %v2694 = vpop.f32.mrf.mxu0
    %v2695 = vadd.f32 %v2534, %v2694
    %v2696 = vpop.f32.mrf.mxu0
    %2697 = vmatprep.mubr.f32.mxu0 0.0
    %2698 = vmatmul.mubr.f32.gmra.mxu0 %v2566
    %v2699 = vpop.f32.mrf.mxu0
    %v2700 = vadd.f32 %v2534, %v2699
    %v2701 = vpop.f32.mrf.mxu0
    %2702 = vmatprep.mubr.f32.mxu0 0.0
    %2703 = vmatmul.mubr.f32.gmra.mxu0 %v2569
    %v2704 = vpop.f32.mrf.mxu0
    %v2705 = vadd.f32 %v2534, %v2704
    %v2706 = vpop.f32.mrf.mxu0
    %2707 = vmatprep.mubr.f32.mxu0 0.0
    %2708 = vmatmul.mubr.f32.gmra.mxu0 %v2572
    %v2709 = vpop.f32.mrf.mxu0
    %v2710 = vadd.f32 %v2534, %v2709
    %v2711 = vpop.f32.mrf.mxu0
    %2712 = vmatprep.mubr.f32.mxu0 0.0
    %2713 = vmatmul.mubr.f32.gmra.mxu0 %v2575
    %v2714 = vpop.f32.mrf.mxu0
    %v2715 = vadd.f32 %v2534, %v2714
    %v2716 = vpop.f32.mrf.mxu0
    %2717 = vmatprep.mubr.f32.mxu0 0.0
    %2718 = vmatmul.mubr.f32.gmra.mxu0 %v2578
    %v2719 = vpop.f32.mrf.mxu0
    %v2720 = vadd.f32 %v2534, %v2719
    %v2721 = vpop.f32.mrf.mxu0
    %2722 = vmatprep.mubr.f32.mxu0 0.0
    %2723 = vmatmul.mubr.f32.gmra.mxu0 %v2581
    %v2724 = vpop.f32.mrf.mxu0
    %v2725 = vadd.f32 %v2534, %v2724
    %v2726 = vpop.f32.mrf.mxu0
    %2727 = vdwg.mxu0
    %v2728 = vlaneseq
    %v2729 = vshrl.u32 %v2728, 7
    %v2730 = vsub.s32 0, %v2729
    %v2731 = vrot.slane %v47, %v2730
    %v2733 = vsel %vm1339, 0.0, 0
    %2735 = vmatprep.subr.mxu0 0.0
    %2736 = vmatpush1.msra.mxu0 0.0
    %2737 = vmatprep.subr.mxu0 0.0
    %2738 = vmatpush1.msra.mxu0 0.0
    %2739 = vmatprep.subr.mxu0 0.0
    %2740 = vmatpush1.msra.mxu0 0.0
    %2741 = vmatprep.subr.mxu0 0.0
    %2742 = vmatpush1.msra.mxu0 0.0
    %2743 = vmatprep.subr.mxu0 0.0
    %2744 = vmatpush1.msra.mxu0 0.0
    %2745 = vmatprep.subr.mxu0 0.0
    %2746 = vmatpush1.msra.mxu0 0.0
    %2747 = vmatprep.subr.mxu0 0.0
    %2748 = vmatpush1.msra.mxu0 0.0
    %2749 = vmatprep.subr.mxu0 0.0
    %2750 = vmatpush1.msra.mxu0 0.0
    %2751 = vmatprep.subr.mxu0 0.0
    %2752 = vmatpush1.msra.mxu0 0.0
    %2753 = vmatprep.subr.mxu0 0.0
    %2754 = vmatpush1.msra.mxu0 0.0
    %2755 = vmatprep.subr.mxu0 0.0
    %2756 = vmatpush1.msra.mxu0 0.0
    %2757 = vmatprep.subr.mxu0 0.0
    %2758 = vmatpush1.msra.mxu0 0.0
    %2759 = vmatprep.subr.mxu0 0.0
    %2760 = vmatpush1.msra.mxu0 0.0
    %2761 = vmatprep.subr.mxu0 0.0
    %2762 = vmatpush1.msra.mxu0 0.0
    %2763 = vmatprep.subr.mxu0 0.0
    %2764 = vmatpush1.msra.mxu0 0.0
    %2765 = vmatprep.subr.mxu0 0.0
    %2766 = vmatpush1.msra.mxu0 %v45
    %2767 = vmatprep.subr.mxu0 0.0
    %2768 = vmatpush2.msra.mxu0 0.0
    %2769 = vmatprep.subr.mxu0 0.0
    %2770 = vmatpush2.msra.mxu0 0.0
    %2771 = vmatprep.subr.mxu0 0.0
    %2772 = vmatpush2.msra.mxu0 0.0
    %2773 = vmatprep.subr.mxu0 0.0
    %2774 = vmatpush2.msra.mxu0 0.0
    %2775 = vmatprep.subr.mxu0 0.0
    %2776 = vmatpush2.msra.mxu0 0.0
    %2777 = vmatprep.subr.mxu0 0.0
    %2778 = vmatpush2.msra.mxu0 0.0
    %2779 = vmatprep.subr.mxu0 0.0
    %2780 = vmatpush2.msra.mxu0 0.0
    %2781 = vmatprep.subr.mxu0 0.0
    %2782 = vmatpush2.msra.mxu0 0.0
    %2783 = vmatprep.subr.mxu0 0.0
    %2784 = vmatpush2.msra.mxu0 0.0
    %2785 = vmatprep.subr.mxu0 0.0
    %2786 = vmatpush2.msra.mxu0 0.0
    %2787 = vmatprep.subr.mxu0 0.0
    %2788 = vmatpush2.msra.mxu0 0.0
    %2789 = vmatprep.subr.mxu0 0.0
    %2790 = vmatpush2.msra.mxu0 0.0
    %2791 = vmatprep.subr.mxu0 0.0
    %2792 = vmatpush2.msra.mxu0 0.0
    %2793 = vmatprep.subr.mxu0 0.0
    %2794 = vmatpush2.msra.mxu0 0.0
    %2795 = vmatprep.subr.mxu0 0.0
    %2796 = vmatpush2.msra.mxu0 0.0
    %2797 = vmatprep.subr.mxu0 0.0
    %2798 = vmatpush2.msra.mxu0 0.0
    %2799 = vmatprep.mubr.f32.mxu0 0.0
    %2800 = vmatmul.mubr.f32.gmra.mxu0 %v2733
    %v2801 = vpop.f32.mrf.mxu0
    %v2802 = vadd.f32 %v2731, %v2801
    %v2803 = vpop.f32.mrf.mxu0
    %2804 = vdwg.mxu0
    %v2805 = vadd.f32 %v2650, %v2802
    %v2806 = vxor.u32 %v2805, 2147483648
    %v2807 = vmul.f32 %v2806, 1.442695
    %v2808 = vpow.pop %v2807
    %v2809 = vadd.f32 %v2808, 1.0
    %v2810 = vrcp.pop %v2809
    %v2811 = vmul.f32 1.0, %v2810
    %2813 = vrot.lane.b32.xlu0 %v2802, 112
    %v2814 = vpop.permute.xlu0 %2813
    %v2816 = vmul.f32 %v2811, %v2814
    %2818 = vrot.lane.b32.xlu0 %v2816, 16
    %v2819 = vpop.permute.xlu0 %2818
    %v2821 = vadd.f32 %v2650, %v2819
    %v2822 = vtanh.pop %v2821
    %v2823 = vsub.f32 1.0, %v2811
    %2825 = vrot.lane.b32.xlu0 %v2822, 120
    %v2826 = vpop.permute.xlu0 %2825
    %v2828 = vmul.f32 %v2823, %v2826
    %v2829 = vmul.f32 %v2811, 0.0
    %v2830 = vadd.f32 %v2828, %v2829
    %2832 = vrot.lane.b32.xlu0 %v2830, 120
    %v2833 = vpop.permute.xlu0 %2832
    %2835 = vst.msk [vmem:[#allocation2] sm:$0xff] %vm1339, %v2833
    %v2836 = vsel %vm1339, %v2833, 0
    %2838 = vmatprep.subr.mxu0 0.0
    %2839 = vmatpush1.msra.mxu0 0.0
    %2840 = vmatprep.subr.mxu0 0.0
    %2841 = vmatpush1.msra.mxu0 0.0
    %2842 = vmatprep.subr.mxu0 0.0
    %2843 = vmatpush1.msra.mxu0 0.0
    %2844 = vmatprep.subr.mxu0 0.0
    %2845 = vmatpush1.msra.mxu0 0.0
    %2846 = vmatprep.subr.mxu0 0.0
    %2847 = vmatpush1.msra.mxu0 0.0
    %2848 = vmatprep.subr.mxu0 0.0
    %2849 = vmatpush1.msra.mxu0 0.0
    %2850 = vmatprep.subr.mxu0 0.0
    %2851 = vmatpush1.msra.mxu0 0.0
    %2852 = vmatprep.subr.mxu0 0.0
    %2853 = vmatpush1.msra.mxu0 0.0
    %2854 = vmatprep.subr.mxu0 0.0
    %2855 = vmatpush1.msra.mxu0 0.0
    %2856 = vmatprep.subr.mxu0 0.0
    %2857 = vmatpush1.msra.mxu0 0.0
    %2858 = vmatprep.subr.mxu0 0.0
    %2859 = vmatpush1.msra.mxu0 0.0
    %2860 = vmatprep.subr.mxu0 0.0
    %2861 = vmatpush1.msra.mxu0 0.0
    %2862 = vmatprep.subr.mxu0 0.0
    %2863 = vmatpush1.msra.mxu0 0.0
    %2864 = vmatprep.subr.mxu0 0.0
    %2865 = vmatpush1.msra.mxu0 0.0
    %2866 = vmatprep.subr.mxu0 0.0
    %2867 = vmatpush1.msra.mxu0 0.0
    %2868 = vmatprep.subr.mxu0 0.0
    %2869 = vmatpush1.msra.mxu0 %v45
    %2870 = vmatprep.subr.mxu0 0.0
    %2871 = vmatpush2.msra.mxu0 0.0
    %2872 = vmatprep.subr.mxu0 0.0
    %2873 = vmatpush2.msra.mxu0 0.0
    %2874 = vmatprep.subr.mxu0 0.0
    %2875 = vmatpush2.msra.mxu0 0.0
    %2876 = vmatprep.subr.mxu0 0.0
    %2877 = vmatpush2.msra.mxu0 0.0
    %2878 = vmatprep.subr.mxu0 0.0
    %2879 = vmatpush2.msra.mxu0 0.0
    %2880 = vmatprep.subr.mxu0 0.0
    %2881 = vmatpush2.msra.mxu0 0.0
    %2882 = vmatprep.subr.mxu0 0.0
    %2883 = vmatpush2.msra.mxu0 0.0
    %2884 = vmatprep.subr.mxu0 0.0
    %2885 = vmatpush2.msra.mxu0 0.0
    %2886 = vmatprep.subr.mxu0 0.0
    %2887 = vmatpush2.msra.mxu0 0.0
    %2888 = vmatprep.subr.mxu0 0.0
    %2889 = vmatpush2.msra.mxu0 0.0
    %2890 = vmatprep.subr.mxu0 0.0
    %2891 = vmatpush2.msra.mxu0 0.0
    %2892 = vmatprep.subr.mxu0 0.0
    %2893 = vmatpush2.msra.mxu0 0.0
    %2894 = vmatprep.subr.mxu0 0.0
    %2895 = vmatpush2.msra.mxu0 0.0
    %2896 = vmatprep.subr.mxu0 0.0
    %2897 = vmatpush2.msra.mxu0 0.0
    %2898 = vmatprep.subr.mxu0 0.0
    %2899 = vmatpush2.msra.mxu0 0.0
    %2900 = vmatprep.subr.mxu0 0.0
    %2901 = vmatpush2.msra.mxu0 0.0
    %2902 = vmatprep.mubr.f32.mxu0 0.0
    %2903 = vmatmul.mubr.f32.gmra.mxu0 %v2836
    %v2904 = vpop.f32.mrf.mxu0
    %v2905 = vadd.f32 %v2731, %v2904
    %v2906 = vpop.f32.mrf.mxu0
    %2907 = vdwg.mxu0
    %v2908 = vadd.f32 %v2655, %v2905
    %v2909 = vxor.u32 %v2908, 2147483648
    %v2910 = vmul.f32 %v2909, 1.442695
    %v2911 = vpow.pop %v2910
    %v2912 = vadd.f32 %v2911, 1.0
    %v2913 = vrcp.pop %v2912
    %v2914 = vmul.f32 1.0, %v2913
    %2916 = vrot.lane.b32.xlu0 %v2905, 112
    %v2917 = vpop.permute.xlu0 %2916
    %v2919 = vmul.f32 %v2914, %v2917
    %2921 = vrot.lane.b32.xlu0 %v2919, 16
    %v2922 = vpop.permute.xlu0 %2921
    %v2924 = vadd.f32 %v2655, %v2922
    %v2925 = vtanh.pop %v2924
    %v2926 = vsub.f32 1.0, %v2914
    %2928 = vrot.lane.b32.xlu0 %v2925, 120
    %v2929 = vpop.permute.xlu0 %2928
    %v2931 = vmul.f32 %v2926, %v2929
    %v2932 = vmul.f32 %v2914, %v2830
    %v2933 = vadd.f32 %v2931, %v2932
    %vm2934 = vcmask 130112
    %2935 = vst.msk [vmem:[#allocation2] sm:$0xff] %vm2934, %v2933
    %2937 = vrot.lane.b32.xlu0 %v2933, 120
    %v2938 = vpop.permute.xlu0 %2937
    %v2939 = vsel %vm1339, %v2938, 0
    %2941 = vmatprep.subr.mxu0 0.0
    %2942 = vmatpush1.msra.mxu0 0.0
    %2943 = vmatprep.subr.mxu0 0.0
    %2944 = vmatpush1.msra.mxu0 0.0
    %2945 = vmatprep.subr.mxu0 0.0
    %2946 = vmatpush1.msra.mxu0 0.0
    %2947 = vmatprep.subr.mxu0 0.0
    %2948 = vmatpush1.msra.mxu0 0.0
    %2949 = vmatprep.subr.mxu0 0.0
    %2950 = vmatpush1.msra.mxu0 0.0
    %2951 = vmatprep.subr.mxu0 0.0
    %2952 = vmatpush1.msra.mxu0 0.0
    %2953 = vmatprep.subr.mxu0 0.0
    %2954 = vmatpush1.msra.mxu0 0.0
    %2955 = vmatprep.subr.mxu0 0.0
    %2956 = vmatpush1.msra.mxu0 0.0
    %2957 = vmatprep.subr.mxu0 0.0
    %2958 = vmatpush1.msra.mxu0 0.0
    %2959 = vmatprep.subr.mxu0 0.0
    %2960 = vmatpush1.msra.mxu0 0.0
    %2961 = vmatprep.subr.mxu0 0.0
    %2962 = vmatpush1.msra.mxu0 0.0
    %2963 = vmatprep.subr.mxu0 0.0
    %2964 = vmatpush1.msra.mxu0 0.0
    %2965 = vmatprep.subr.mxu0 0.0
    %2966 = vmatpush1.msra.mxu0 0.0
    %2967 = vmatprep.subr.mxu0 0.0
    %2968 = vmatpush1.msra.mxu0 0.0
    %2969 = vmatprep.subr.mxu0 0.0
    %2970 = vmatpush1.msra.mxu0 0.0
    %2971 = vmatprep.subr.mxu0 0.0
    %2972 = vmatpush1.msra.mxu0 %v45
    %2973 = vmatprep.subr.mxu0 0.0
    %2974 = vmatpush2.msra.mxu0 0.0
    %2975 = vmatprep.subr.mxu0 0.0
    %2976 = vmatpush2.msra.mxu0 0.0
    %2977 = vmatprep.subr.mxu0 0.0
    %2978 = vmatpush2.msra.mxu0 0.0
    %2979 = vmatprep.subr.mxu0 0.0
    %2980 = vmatpush2.msra.mxu0 0.0
    %2981 = vmatprep.subr.mxu0 0.0
    %2982 = vmatpush2.msra.mxu0 0.0
    %2983 = vmatprep.subr.mxu0 0.0
    %2984 = vmatpush2.msra.mxu0 0.0
    %2985 = vmatprep.subr.mxu0 0.0
    %2986 = vmatpush2.msra.mxu0 0.0
    %2987 = vmatprep.subr.mxu0 0.0
    %2988 = vmatpush2.msra.mxu0 0.0
    %2989 = vmatprep.subr.mxu0 0.0
    %2990 = vmatpush2.msra.mxu0 0.0
    %2991 = vmatprep.subr.mxu0 0.0
    %2992 = vmatpush2.msra.mxu0 0.0
    %2993 = vmatprep.subr.mxu0 0.0
    %2994 = vmatpush2.msra.mxu0 0.0
    %2995 = vmatprep.subr.mxu0 0.0
    %2996 = vmatpush2.msra.mxu0 0.0
    %2997 = vmatprep.subr.mxu0 0.0
    %2998 = vmatpush2.msra.mxu0 0.0
    %2999 = vmatprep.subr.mxu0 0.0
    %3000 = vmatpush2.msra.mxu0 0.0
    %3001 = vmatprep.subr.mxu0 0.0
    %3002 = vmatpush2.msra.mxu0 0.0
    %3003 = vmatprep.subr.mxu0 0.0
    %3004 = vmatpush2.msra.mxu0 0.0
    %3005 = vmatprep.mubr.f32.mxu0 0.0
    %3006 = vmatmul.mubr.f32.gmra.mxu0 %v2939
    %v3007 = vpop.f32.mrf.mxu0
    %v3008 = vadd.f32 %v2731, %v3007
    %v3009 = vpop.f32.mrf.mxu0
    %3010 = vdwg.mxu0
    %v3011 = vadd.f32 %v2660, %v3008
    %v3012 = vxor.u32 %v3011, 2147483648
    %v3013 = vmul.f32 %v3012, 1.442695
    %v3014 = vpow.pop %v3013
    %v3015 = vadd.f32 %v3014, 1.0
    %v3016 = vrcp.pop %v3015
    %v3017 = vmul.f32 1.0, %v3016
    %3019 = vrot.lane.b32.xlu0 %v3008, 112
    %v3020 = vpop.permute.xlu0 %3019
    %v3022 = vmul.f32 %v3017, %v3020
    %3024 = vrot.lane.b32.xlu0 %v3022, 16
    %v3025 = vpop.permute.xlu0 %3024
    %v3027 = vadd.f32 %v2660, %v3025
    %v3028 = vtanh.pop %v3027
    %v3029 = vsub.f32 1.0, %v3017
    %3031 = vrot.lane.b32.xlu0 %v3028, 120
    %v3032 = vpop.permute.xlu0 %3031
    %v3034 = vmul.f32 %v3029, %v3032
    %v3035 = vmul.f32 %v3017, %v2933
    %v3036 = vadd.f32 %v3034, %v3035
    %3038 = vrot.lane.b32.xlu0 %v3036, 8
    %v3039 = vpop.permute.xlu0 %3038
    %vm3041 = vcmask 195712
    %3042 = vst.msk [vmem:[#allocation2] sm:$0xff] %vm3041, %v3039
    %3043 = vrot.lane.b32.xlu0 %v3036, 120
    %v3044 = vpop.permute.xlu0 %3043
    %v3045 = vsel %vm1339, %v3044, 0
    %3047 = vmatprep.subr.mxu0 0.0
    %3048 = vmatpush1.msra.mxu0 0.0
    %3049 = vmatprep.subr.mxu0 0.0
    %3050 = vmatpush1.msra.mxu0 0.0
    %3051 = vmatprep.subr.mxu0 0.0
    %3052 = vmatpush1.msra.mxu0 0.0
    %3053 = vmatprep.subr.mxu0 0.0
    %3054 = vmatpush1.msra.mxu0 0.0
    %3055 = vmatprep.subr.mxu0 0.0
    %3056 = vmatpush1.msra.mxu0 0.0
    %3057 = vmatprep.subr.mxu0 0.0
    %3058 = vmatpush1.msra.mxu0 0.0
    %3059 = vmatprep.subr.mxu0 0.0
    %3060 = vmatpush1.msra.mxu0 0.0
    %3061 = vmatprep.subr.mxu0 0.0
    %3062 = vmatpush1.msra.mxu0 0.0
    %3063 = vmatprep.subr.mxu0 0.0
    %3064 = vmatpush1.msra.mxu0 0.0
    %3065 = vmatprep.subr.mxu0 0.0
    %3066 = vmatpush1.msra.mxu0 0.0
    %3067 = vmatprep.subr.mxu0 0.0
    %3068 = vmatpush1.msra.mxu0 0.0
    %3069 = vmatprep.subr.mxu0 0.0
    %3070 = vmatpush1.msra.mxu0 0.0
    %3071 = vmatprep.subr.mxu0 0.0
    %3072 = vmatpush1.msra.mxu0 0.0
    %3073 = vmatprep.subr.mxu0 0.0
    %3074 = vmatpush1.msra.mxu0 0.0
    %3075 = vmatprep.subr.mxu0 0.0
    %3076 = vmatpush1.msra.mxu0 0.0
    %3077 = vmatprep.subr.mxu0 0.0
    %3078 = vmatpush1.msra.mxu0 %v45
    %3079 = vmatprep.subr.mxu0 0.0
    %3080 = vmatpush2.msra.mxu0 0.0
    %3081 = vmatprep.subr.mxu0 0.0
    %3082 = vmatpush2.msra.mxu0 0.0
    %3083 = vmatprep.subr.mxu0 0.0
    %3084 = vmatpush2.msra.mxu0 0.0
    %3085 = vmatprep.subr.mxu0 0.0
    %3086 = vmatpush2.msra.mxu0 0.0
    %3087 = vmatprep.subr.mxu0 0.0
    %3088 = vmatpush2.msra.mxu0 0.0
    %3089 = vmatprep.subr.mxu0 0.0
    %3090 = vmatpush2.msra.mxu0 0.0
    %3091 = vmatprep.subr.mxu0 0.0
    %3092 = vmatpush2.msra.mxu0 0.0
    %3093 = vmatprep.subr.mxu0 0.0
    %3094 = vmatpush2.msra.mxu0 0.0
    %3095 = vmatprep.subr.mxu0 0.0
    %3096 = vmatpush2.msra.mxu0 0.0
    %3097 = vmatprep.subr.mxu0 0.0
    %3098 = vmatpush2.msra.mxu0 0.0
    %3099 = vmatprep.subr.mxu0 0.0
    %3100 = vmatpush2.msra.mxu0 0.0
    %3101 = vmatprep.subr.mxu0 0.0
    %3102 = vmatpush2.msra.mxu0 0.0
    %3103 = vmatprep.subr.mxu0 0.0
    %3104 = vmatpush2.msra.mxu0 0.0
    %3105 = vmatprep.subr.mxu0 0.0
    %3106 = vmatpush2.msra.mxu0 0.0
    %3107 = vmatprep.subr.mxu0 0.0
    %3108 = vmatpush2.msra.mxu0 0.0
    %3109 = vmatprep.subr.mxu0 0.0
    %3110 = vmatpush2.msra.mxu0 0.0
    %3111 = vmatprep.mubr.f32.mxu0 0.0
    %3112 = vmatmul.mubr.f32.gmra.mxu0 %v3045
    %v3113 = vpop.f32.mrf.mxu0
    %v3114 = vadd.f32 %v2731, %v3113
    %v3115 = vpop.f32.mrf.mxu0
    %3116 = vdwg.mxu0
    %v3117 = vadd.f32 %v2665, %v3114
    %v3118 = vxor.u32 %v3117, 2147483648
    %v3119 = vmul.f32 %v3118, 1.442695
    %v3120 = vpow.pop %v3119
    %v3121 = vadd.f32 %v3120, 1.0
    %v3122 = vrcp.pop %v3121
    %v3123 = vmul.f32 1.0, %v3122
    %3125 = vrot.lane.b32.xlu0 %v3114, 112
    %v3126 = vpop.permute.xlu0 %3125
    %v3128 = vmul.f32 %v3123, %v3126
    %3130 = vrot.lane.b32.xlu0 %v3128, 16
    %v3131 = vpop.permute.xlu0 %3130
    %v3133 = vadd.f32 %v2665, %v3131
    %v3134 = vtanh.pop %v3133
    %v3135 = vsub.f32 1.0, %v3123
    %3137 = vrot.lane.b32.xlu0 %v3134, 120
    %v3138 = vpop.permute.xlu0 %3137
    %v3140 = vmul.f32 %v3135, %v3138
    %v3141 = vmul.f32 %v3123, %v3036
    %v3142 = vadd.f32 %v3140, %v3141
    %3144 = vrot.lane.b32.xlu0 %v3142, 16
    %v3145 = vpop.permute.xlu0 %3144
    %vm3147 = vcmask 261312
    %3148 = vst.msk [vmem:[#allocation2] sm:$0xff] %vm3147, %v3145
    %3149 = vrot.lane.b32.xlu0 %v3142, 120
    %v3150 = vpop.permute.xlu0 %3149
    %v3151 = vsel %vm1339, %v3150, 0
    %3153 = vmatprep.subr.mxu0 0.0
    %3154 = vmatpush1.msra.mxu0 0.0
    %3155 = vmatprep.subr.mxu0 0.0
    %3156 = vmatpush1.msra.mxu0 0.0
    %3157 = vmatprep.subr.mxu0 0.0
    %3158 = vmatpush1.msra.mxu0 0.0
    %3159 = vmatprep.subr.mxu0 0.0
    %3160 = vmatpush1.msra.mxu0 0.0
    %3161 = vmatprep.subr.mxu0 0.0
    %3162 = vmatpush1.msra.mxu0 0.0
    %3163 = vmatprep.subr.mxu0 0.0
    %3164 = vmatpush1.msra.mxu0 0.0
    %3165 = vmatprep.subr.mxu0 0.0
    %3166 = vmatpush1.msra.mxu0 0.0
    %3167 = vmatprep.subr.mxu0 0.0
    %3168 = vmatpush1.msra.mxu0 0.0
    %3169 = vmatprep.subr.mxu0 0.0
    %3170 = vmatpush1.msra.mxu0 0.0
    %3171 = vmatprep.subr.mxu0 0.0
    %3172 = vmatpush1.msra.mxu0 0.0
    %3173 = vmatprep.subr.mxu0 0.0
    %3174 = vmatpush1.msra.mxu0 0.0
    %3175 = vmatprep.subr.mxu0 0.0
    %3176 = vmatpush1.msra.mxu0 0.0
    %3177 = vmatprep.subr.mxu0 0.0
    %3178 = vmatpush1.msra.mxu0 0.0
    %3179 = vmatprep.subr.mxu0 0.0
    %3180 = vmatpush1.msra.mxu0 0.0
    %3181 = vmatprep.subr.mxu0 0.0
    %3182 = vmatpush1.msra.mxu0 0.0
    %3183 = vmatprep.subr.mxu0 0.0
    %3184 = vmatpush1.msra.mxu0 %v45
    %3185 = vmatprep.subr.mxu0 0.0
    %3186 = vmatpush2.msra.mxu0 0.0
    %3187 = vmatprep.subr.mxu0 0.0
    %3188 = vmatpush2.msra.mxu0 0.0
    %3189 = vmatprep.subr.mxu0 0.0
    %3190 = vmatpush2.msra.mxu0 0.0
    %3191 = vmatprep.subr.mxu0 0.0
    %3192 = vmatpush2.msra.mxu0 0.0
    %3193 = vmatprep.subr.mxu0 0.0
    %3194 = vmatpush2.msra.mxu0 0.0
    %3195 = vmatprep.subr.mxu0 0.0
    %3196 = vmatpush2.msra.mxu0 0.0
    %3197 = vmatprep.subr.mxu0 0.0
    %3198 = vmatpush2.msra.mxu0 0.0
    %3199 = vmatprep.subr.mxu0 0.0
    %3200 = vmatpush2.msra.mxu0 0.0
    %3201 = vmatprep.subr.mxu0 0.0
    %3202 = vmatpush2.msra.mxu0 0.0
    %3203 = vmatprep.subr.mxu0 0.0
    %3204 = vmatpush2.msra.mxu0 0.0
    %3205 = vmatprep.subr.mxu0 0.0
    %3206 = vmatpush2.msra.mxu0 0.0
    %3207 = vmatprep.subr.mxu0 0.0
    %3208 = vmatpush2.msra.mxu0 0.0
    %3209 = vmatprep.subr.mxu0 0.0
    %3210 = vmatpush2.msra.mxu0 0.0
    %3211 = vmatprep.subr.mxu0 0.0
    %3212 = vmatpush2.msra.mxu0 0.0
    %3213 = vmatprep.subr.mxu0 0.0
    %3214 = vmatpush2.msra.mxu0 0.0
    %3215 = vmatprep.subr.mxu0 0.0
    %3216 = vmatpush2.msra.mxu0 0.0
    %3217 = vmatprep.mubr.f32.mxu0 0.0
    %3218 = vmatmul.mubr.f32.gmra.mxu0 %v3151
    %v3219 = vpop.f32.mrf.mxu0
    %v3220 = vadd.f32 %v2731, %v3219
    %v3221 = vpop.f32.mrf.mxu0
    %3222 = vdwg.mxu0
    %v3223 = vadd.f32 %v2670, %v3220
    %v3224 = vxor.u32 %v3223, 2147483648
    %v3225 = vmul.f32 %v3224, 1.442695
    %v3226 = vpow.pop %v3225
    %v3227 = vadd.f32 %v3226, 1.0
    %v3228 = vrcp.pop %v3227
    %v3229 = vmul.f32 1.0, %v3228
    %3231 = vrot.lane.b32.xlu0 %v3220, 112
    %v3232 = vpop.permute.xlu0 %3231
    %v3234 = vmul.f32 %v3229, %v3232
    %3236 = vrot.lane.b32.xlu0 %v3234, 16
    %v3237 = vpop.permute.xlu0 %3236
    %v3239 = vadd.f32 %v2670, %v3237
    %v3240 = vtanh.pop %v3239
    %v3241 = vsub.f32 1.0, %v3229
    %3243 = vrot.lane.b32.xlu0 %v3240, 120
    %v3244 = vpop.permute.xlu0 %3243
    %v3246 = vmul.f32 %v3241, %v3244
    %v3247 = vmul.f32 %v3229, %v3142
    %v3248 = vadd.f32 %v3246, %v3247
    %3250 = vrot.lane.b32.xlu0 %v3248, 24
    %v3251 = vpop.permute.xlu0 %3250
    %vm3253 = vcmask 326912
    %3254 = vst.msk [vmem:[#allocation2] sm:$0xff] %vm3253, %v3251
    %3255 = vrot.lane.b32.xlu0 %v3248, 120
    %v3256 = vpop.permute.xlu0 %3255
    %v3257 = vsel %vm1339, %v3256, 0
    %3259 = vmatprep.subr.mxu0 0.0
    %3260 = vmatpush1.msra.mxu0 0.0
    %3261 = vmatprep.subr.mxu0 0.0
    %3262 = vmatpush1.msra.mxu0 0.0
    %3263 = vmatprep.subr.mxu0 0.0
    %3264 = vmatpush1.msra.mxu0 0.0
    %3265 = vmatprep.subr.mxu0 0.0
    %3266 = vmatpush1.msra.mxu0 0.0
    %3267 = vmatprep.subr.mxu0 0.0
    %3268 = vmatpush1.msra.mxu0 0.0
    %3269 = vmatprep.subr.mxu0 0.0
    %3270 = vmatpush1.msra.mxu0 0.0
    %3271 = vmatprep.subr.mxu0 0.0
    %3272 = vmatpush1.msra.mxu0 0.0
    %3273 = vmatprep.subr.mxu0 0.0
    %3274 = vmatpush1.msra.mxu0 0.0
    %3275 = vmatprep.subr.mxu0 0.0
    %3276 = vmatpush1.msra.mxu0 0.0
    %3277 = vmatprep.subr.mxu0 0.0
    %3278 = vmatpush1.msra.mxu0 0.0
    %3279 = vmatprep.subr.mxu0 0.0
    %3280 = vmatpush1.msra.mxu0 0.0
    %3281 = vmatprep.subr.mxu0 0.0
    %3282 = vmatpush1.msra.mxu0 0.0
    %3283 = vmatprep.subr.mxu0 0.0
    %3284 = vmatpush1.msra.mxu0 0.0
    %3285 = vmatprep.subr.mxu0 0.0
    %3286 = vmatpush1.msra.mxu0 0.0
    %3287 = vmatprep.subr.mxu0 0.0
    %3288 = vmatpush1.msra.mxu0 0.0
    %3289 = vmatprep.subr.mxu0 0.0
    %3290 = vmatpush1.msra.mxu0 %v45
    %3291 = vmatprep.subr.mxu0 0.0
    %3292 = vmatpush2.msra.mxu0 0.0
    %3293 = vmatprep.subr.mxu0 0.0
    %3294 = vmatpush2.msra.mxu0 0.0
    %3295 = vmatprep.subr.mxu0 0.0
    %3296 = vmatpush2.msra.mxu0 0.0
    %3297 = vmatprep.subr.mxu0 0.0
    %3298 = vmatpush2.msra.mxu0 0.0
    %3299 = vmatprep.subr.mxu0 0.0
    %3300 = vmatpush2.msra.mxu0 0.0
    %3301 = vmatprep.subr.mxu0 0.0
    %3302 = vmatpush2.msra.mxu0 0.0
    %3303 = vmatprep.subr.mxu0 0.0
    %3304 = vmatpush2.msra.mxu0 0.0
    %3305 = vmatprep.subr.mxu0 0.0
    %3306 = vmatpush2.msra.mxu0 0.0
    %3307 = vmatprep.subr.mxu0 0.0
    %3308 = vmatpush2.msra.mxu0 0.0
    %3309 = vmatprep.subr.mxu0 0.0
    %3310 = vmatpush2.msra.mxu0 0.0
    %3311 = vmatprep.subr.mxu0 0.0
    %3312 = vmatpush2.msra.mxu0 0.0
    %3313 = vmatprep.subr.mxu0 0.0
    %3314 = vmatpush2.msra.mxu0 0.0
    %3315 = vmatprep.subr.mxu0 0.0
    %3316 = vmatpush2.msra.mxu0 0.0
    %3317 = vmatprep.subr.mxu0 0.0
    %3318 = vmatpush2.msra.mxu0 0.0
    %3319 = vmatprep.subr.mxu0 0.0
    %3320 = vmatpush2.msra.mxu0 0.0
    %3321 = vmatprep.subr.mxu0 0.0
    %3322 = vmatpush2.msra.mxu0 0.0
    %3323 = vmatprep.mubr.f32.mxu0 0.0
    %3324 = vmatmul.mubr.f32.gmra.mxu0 %v3257
    %v3325 = vpop.f32.mrf.mxu0
    %v3326 = vadd.f32 %v2731, %v3325
    %v3327 = vpop.f32.mrf.mxu0
    %3328 = vdwg.mxu0
    %v3329 = vadd.f32 %v2675, %v3326
    %v3330 = vxor.u32 %v3329, 2147483648
    %v3331 = vmul.f32 %v3330, 1.442695
    %v3332 = vpow.pop %v3331
    %v3333 = vadd.f32 %v3332, 1.0
    %v3334 = vrcp.pop %v3333
    %v3335 = vmul.f32 1.0, %v3334
    %3337 = vrot.lane.b32.xlu0 %v3326, 112
    %v3338 = vpop.permute.xlu0 %3337
    %v3340 = vmul.f32 %v3335, %v3338
    %3342 = vrot.lane.b32.xlu0 %v3340, 16
    %v3343 = vpop.permute.xlu0 %3342
    %v3345 = vadd.f32 %v2675, %v3343
    %v3346 = vtanh.pop %v3345
    %v3347 = vsub.f32 1.0, %v3335
    %3349 = vrot.lane.b32.xlu0 %v3346, 120
    %v3350 = vpop.permute.xlu0 %3349
    %v3352 = vmul.f32 %v3347, %v3350
    %v3353 = vmul.f32 %v3335, %v3248
    %v3354 = vadd.f32 %v3352, %v3353
    %3356 = vrot.lane.b32.xlu0 %v3354, 32
    %v3357 = vpop.permute.xlu0 %3356
    %vm3359 = vcmask 392512
    %3360 = vst.msk [vmem:[#allocation2] sm:$0xff] %vm3359, %v3357
    %3361 = vrot.lane.b32.xlu0 %v3354, 120
    %v3362 = vpop.permute.xlu0 %3361
    %v3363 = vsel %vm1339, %v3362, 0
    %3365 = vmatprep.subr.mxu0 0.0
    %3366 = vmatpush1.msra.mxu0 0.0
    %3367 = vmatprep.subr.mxu0 0.0
    %3368 = vmatpush1.msra.mxu0 0.0
    %3369 = vmatprep.subr.mxu0 0.0
    %3370 = vmatpush1.msra.mxu0 0.0
    %3371 = vmatprep.subr.mxu0 0.0
    %3372 = vmatpush1.msra.mxu0 0.0
    %3373 = vmatprep.subr.mxu0 0.0
    %3374 = vmatpush1.msra.mxu0 0.0
    %3375 = vmatprep.subr.mxu0 0.0
    %3376 = vmatpush1.msra.mxu0 0.0
    %3377 = vmatprep.subr.mxu0 0.0
    %3378 = vmatpush1.msra.mxu0 0.0
    %3379 = vmatprep.subr.mxu0 0.0
    %3380 = vmatpush1.msra.mxu0 0.0
    %3381 = vmatprep.subr.mxu0 0.0
    %3382 = vmatpush1.msra.mxu0 0.0
    %3383 = vmatprep.subr.mxu0 0.0
    %3384 = vmatpush1.msra.mxu0 0.0
    %3385 = vmatprep.subr.mxu0 0.0
    %3386 = vmatpush1.msra.mxu0 0.0
    %3387 = vmatprep.subr.mxu0 0.0
    %3388 = vmatpush1.msra.mxu0 0.0
    %3389 = vmatprep.subr.mxu0 0.0
    %3390 = vmatpush1.msra.mxu0 0.0
    %3391 = vmatprep.subr.mxu0 0.0
    %3392 = vmatpush1.msra.mxu0 0.0
    %3393 = vmatprep.subr.mxu0 0.0
    %3394 = vmatpush1.msra.mxu0 0.0
    %3395 = vmatprep.subr.mxu0 0.0
    %3396 = vmatpush1.msra.mxu0 %v45
    %3397 = vmatprep.subr.mxu0 0.0
    %3398 = vmatpush2.msra.mxu0 0.0
    %3399 = vmatprep.subr.mxu0 0.0
    %3400 = vmatpush2.msra.mxu0 0.0
    %3401 = vmatprep.subr.mxu0 0.0
    %3402 = vmatpush2.msra.mxu0 0.0
    %3403 = vmatprep.subr.mxu0 0.0
    %3404 = vmatpush2.msra.mxu0 0.0
    %3405 = vmatprep.subr.mxu0 0.0
    %3406 = vmatpush2.msra.mxu0 0.0
    %3407 = vmatprep.subr.mxu0 0.0
    %3408 = vmatpush2.msra.mxu0 0.0
    %3409 = vmatprep.subr.mxu0 0.0
    %3410 = vmatpush2.msra.mxu0 0.0
    %3411 = vmatprep.subr.mxu0 0.0
    %3412 = vmatpush2.msra.mxu0 0.0
    %3413 = vmatprep.subr.mxu0 0.0
    %3414 = vmatpush2.msra.mxu0 0.0
    %3415 = vmatprep.subr.mxu0 0.0
    %3416 = vmatpush2.msra.mxu0 0.0
    %3417 = vmatprep.subr.mxu0 0.0
    %3418 = vmatpush2.msra.mxu0 0.0
    %3419 = vmatprep.subr.mxu0 0.0
    %3420 = vmatpush2.msra.mxu0 0.0
    %3421 = vmatprep.subr.mxu0 0.0
    %3422 = vmatpush2.msra.mxu0 0.0
    %3423 = vmatprep.subr.mxu0 0.0
    %3424 = vmatpush2.msra.mxu0 0.0
    %3425 = vmatprep.subr.mxu0 0.0
    %3426 = vmatpush2.msra.mxu0 0.0
    %3427 = vmatprep.subr.mxu0 0.0
    %3428 = vmatpush2.msra.mxu0 0.0
    %3429 = vmatprep.mubr.f32.mxu0 0.0
    %3430 = vmatmul.mubr.f32.gmra.mxu0 %v3363
    %v3431 = vpop.f32.mrf.mxu0
    %v3432 = vadd.f32 %v2731, %v3431
    %v3433 = vpop.f32.mrf.mxu0
    %3434 = vdwg.mxu0
    %v3435 = vadd.f32 %v2680, %v3432
    %v3436 = vxor.u32 %v3435, 2147483648
    %v3437 = vmul.f32 %v3436, 1.442695
    %v3438 = vpow.pop %v3437
    %v3439 = vadd.f32 %v3438, 1.0
    %v3440 = vrcp.pop %v3439
    %v3441 = vmul.f32 1.0, %v3440
    %3443 = vrot.lane.b32.xlu0 %v3432, 112
    %v3444 = vpop.permute.xlu0 %3443
    %v3446 = vmul.f32 %v3441, %v3444
    %3448 = vrot.lane.b32.xlu0 %v3446, 16
    %v3449 = vpop.permute.xlu0 %3448
    %v3451 = vadd.f32 %v2680, %v3449
    %v3452 = vtanh.pop %v3451
    %v3453 = vsub.f32 1.0, %v3441
    %3455 = vrot.lane.b32.xlu0 %v3452, 120
    %v3456 = vpop.permute.xlu0 %3455
    %v3458 = vmul.f32 %v3453, %v3456
    %v3459 = vmul.f32 %v3441, %v3354
    %v3460 = vadd.f32 %v3458, %v3459
    %3462 = vrot.lane.b32.xlu0 %v3460, 40
    %v3463 = vpop.permute.xlu0 %3462
    %vm3465 = vcmask 458112
    %3466 = vst.msk [vmem:[#allocation2] sm:$0xff] %vm3465, %v3463
    %3467 = vrot.lane.b32.xlu0 %v3460, 120
    %v3468 = vpop.permute.xlu0 %3467
    %v3469 = vsel %vm1339, %v3468, 0
    %3471 = vmatprep.subr.mxu0 0.0
    %3472 = vmatpush1.msra.mxu0 0.0
    %3473 = vmatprep.subr.mxu0 0.0
    %3474 = vmatpush1.msra.mxu0 0.0
    %3475 = vmatprep.subr.mxu0 0.0
    %3476 = vmatpush1.msra.mxu0 0.0
    %3477 = vmatprep.subr.mxu0 0.0
    %3478 = vmatpush1.msra.mxu0 0.0
    %3479 = vmatprep.subr.mxu0 0.0
    %3480 = vmatpush1.msra.mxu0 0.0
    %3481 = vmatprep.subr.mxu0 0.0
    %3482 = vmatpush1.msra.mxu0 0.0
    %3483 = vmatprep.subr.mxu0 0.0
    %3484 = vmatpush1.msra.mxu0 0.0
    %3485 = vmatprep.subr.mxu0 0.0
    %3486 = vmatpush1.msra.mxu0 0.0
    %3487 = vmatprep.subr.mxu0 0.0
    %3488 = vmatpush1.msra.mxu0 0.0
    %3489 = vmatprep.subr.mxu0 0.0
    %3490 = vmatpush1.msra.mxu0 0.0
    %3491 = vmatprep.subr.mxu0 0.0
    %3492 = vmatpush1.msra.mxu0 0.0
    %3493 = vmatprep.subr.mxu0 0.0
    %3494 = vmatpush1.msra.mxu0 0.0
    %3495 = vmatprep.subr.mxu0 0.0
    %3496 = vmatpush1.msra.mxu0 0.0
    %3497 = vmatprep.subr.mxu0 0.0
    %3498 = vmatpush1.msra.mxu0 0.0
    %3499 = vmatprep.subr.mxu0 0.0
    %3500 = vmatpush1.msra.mxu0 0.0
    %3501 = vmatprep.subr.mxu0 0.0
    %3502 = vmatpush1.msra.mxu0 %v45
    %3503 = vmatprep.subr.mxu0 0.0
    %3504 = vmatpush2.msra.mxu0 0.0
    %3505 = vmatprep.subr.mxu0 0.0
    %3506 = vmatpush2.msra.mxu0 0.0
    %3507 = vmatprep.subr.mxu0 0.0
    %3508 = vmatpush2.msra.mxu0 0.0
    %3509 = vmatprep.subr.mxu0 0.0
    %3510 = vmatpush2.msra.mxu0 0.0
    %3511 = vmatprep.subr.mxu0 0.0
    %3512 = vmatpush2.msra.mxu0 0.0
    %3513 = vmatprep.subr.mxu0 0.0
    %3514 = vmatpush2.msra.mxu0 0.0
    %3515 = vmatprep.subr.mxu0 0.0
    %3516 = vmatpush2.msra.mxu0 0.0
    %3517 = vmatprep.subr.mxu0 0.0
    %3518 = vmatpush2.msra.mxu0 0.0
    %3519 = vmatprep.subr.mxu0 0.0
    %3520 = vmatpush2.msra.mxu0 0.0
    %3521 = vmatprep.subr.mxu0 0.0
    %3522 = vmatpush2.msra.mxu0 0.0
    %3523 = vmatprep.subr.mxu0 0.0
    %3524 = vmatpush2.msra.mxu0 0.0
    %3525 = vmatprep.subr.mxu0 0.0
    %3526 = vmatpush2.msra.mxu0 0.0
    %3527 = vmatprep.subr.mxu0 0.0
    %3528 = vmatpush2.msra.mxu0 0.0
    %3529 = vmatprep.subr.mxu0 0.0
    %3530 = vmatpush2.msra.mxu0 0.0
    %3531 = vmatprep.subr.mxu0 0.0
    %3532 = vmatpush2.msra.mxu0 0.0
    %3533 = vmatprep.subr.mxu0 0.0
    %3534 = vmatpush2.msra.mxu0 0.0
    %3535 = vmatprep.mubr.f32.mxu0 0.0
    %3536 = vmatmul.mubr.f32.gmra.mxu0 %v3469
    %v3537 = vpop.f32.mrf.mxu0
    %v3538 = vadd.f32 %v2731, %v3537
    %v3539 = vpop.f32.mrf.mxu0
    %3540 = vdwg.mxu0
    %v3541 = vadd.f32 %v2685, %v3538
    %v3542 = vxor.u32 %v3541, 2147483648
    %v3543 = vmul.f32 %v3542, 1.442695
    %v3544 = vpow.pop %v3543
    %v3545 = vadd.f32 %v3544, 1.0
    %v3546 = vrcp.pop %v3545
    %v3547 = vmul.f32 1.0, %v3546
    %3549 = vrot.lane.b32.xlu0 %v3538, 112
    %v3550 = vpop.permute.xlu0 %3549
    %v3552 = vmul.f32 %v3547, %v3550
    %3554 = vrot.lane.b32.xlu0 %v3552, 16
    %v3555 = vpop.permute.xlu0 %3554
    %v3557 = vadd.f32 %v2685, %v3555
    %v3558 = vtanh.pop %v3557
    %v3559 = vsub.f32 1.0, %v3547
    %3561 = vrot.lane.b32.xlu0 %v3558, 120
    %v3562 = vpop.permute.xlu0 %3561
    %v3564 = vmul.f32 %v3559, %v3562
    %v3565 = vmul.f32 %v3547, %v3460
    %v3566 = vadd.f32 %v3564, %v3565
    %3568 = vrot.lane.b32.xlu0 %v3566, 48
    %v3569 = vpop.permute.xlu0 %3568
    %vm3571 = vcmask 523712
    %3572 = vst.msk [vmem:[#allocation2] sm:$0xff] %vm3571, %v3569
    %3573 = vrot.lane.b32.xlu0 %v3566, 120
    %v3574 = vpop.permute.xlu0 %3573
    %v3575 = vsel %vm1339, %v3574, 0
    %3577 = vmatprep.subr.mxu0 0.0
    %3578 = vmatpush1.msra.mxu0 0.0
    %3579 = vmatprep.subr.mxu0 0.0
    %3580 = vmatpush1.msra.mxu0 0.0
    %3581 = vmatprep.subr.mxu0 0.0
    %3582 = vmatpush1.msra.mxu0 0.0
    %3583 = vmatprep.subr.mxu0 0.0
    %3584 = vmatpush1.msra.mxu0 0.0
    %3585 = vmatprep.subr.mxu0 0.0
    %3586 = vmatpush1.msra.mxu0 0.0
    %3587 = vmatprep.subr.mxu0 0.0
    %3588 = vmatpush1.msra.mxu0 0.0
    %3589 = vmatprep.subr.mxu0 0.0
    %3590 = vmatpush1.msra.mxu0 0.0
    %3591 = vmatprep.subr.mxu0 0.0
    %3592 = vmatpush1.msra.mxu0 0.0
    %3593 = vmatprep.subr.mxu0 0.0
    %3594 = vmatpush1.msra.mxu0 0.0
    %3595 = vmatprep.subr.mxu0 0.0
    %3596 = vmatpush1.msra.mxu0 0.0
    %3597 = vmatprep.subr.mxu0 0.0
    %3598 = vmatpush1.msra.mxu0 0.0
    %3599 = vmatprep.subr.mxu0 0.0
    %3600 = vmatpush1.msra.mxu0 0.0
    %3601 = vmatprep.subr.mxu0 0.0
    %3602 = vmatpush1.msra.mxu0 0.0
    %3603 = vmatprep.subr.mxu0 0.0
    %3604 = vmatpush1.msra.mxu0 0.0
    %3605 = vmatprep.subr.mxu0 0.0
    %3606 = vmatpush1.msra.mxu0 0.0
    %3607 = vmatprep.subr.mxu0 0.0
    %3608 = vmatpush1.msra.mxu0 %v45
    %3609 = vmatprep.subr.mxu0 0.0
    %3610 = vmatpush2.msra.mxu0 0.0
    %3611 = vmatprep.subr.mxu0 0.0
    %3612 = vmatpush2.msra.mxu0 0.0
    %3613 = vmatprep.subr.mxu0 0.0
    %3614 = vmatpush2.msra.mxu0 0.0
    %3615 = vmatprep.subr.mxu0 0.0
    %3616 = vmatpush2.msra.mxu0 0.0
    %3617 = vmatprep.subr.mxu0 0.0
    %3618 = vmatpush2.msra.mxu0 0.0
    %3619 = vmatprep.subr.mxu0 0.0
    %3620 = vmatpush2.msra.mxu0 0.0
    %3621 = vmatprep.subr.mxu0 0.0
    %3622 = vmatpush2.msra.mxu0 0.0
    %3623 = vmatprep.subr.mxu0 0.0
    %3624 = vmatpush2.msra.mxu0 0.0
    %3625 = vmatprep.subr.mxu0 0.0
    %3626 = vmatpush2.msra.mxu0 0.0
    %3627 = vmatprep.subr.mxu0 0.0
    %3628 = vmatpush2.msra.mxu0 0.0
    %3629 = vmatprep.subr.mxu0 0.0
    %3630 = vmatpush2.msra.mxu0 0.0
    %3631 = vmatprep.subr.mxu0 0.0
    %3632 = vmatpush2.msra.mxu0 0.0
    %3633 = vmatprep.subr.mxu0 0.0
    %3634 = vmatpush2.msra.mxu0 0.0
    %3635 = vmatprep.subr.mxu0 0.0
    %3636 = vmatpush2.msra.mxu0 0.0
    %3637 = vmatprep.subr.mxu0 0.0
    %3638 = vmatpush2.msra.mxu0 0.0
    %3639 = vmatprep.subr.mxu0 0.0
    %3640 = vmatpush2.msra.mxu0 0.0
    %3641 = vmatprep.mubr.f32.mxu0 0.0
    %3642 = vmatmul.mubr.f32.gmra.mxu0 %v3575
    %v3643 = vpop.f32.mrf.mxu0
    %v3644 = vadd.f32 %v2731, %v3643
    %v3645 = vpop.f32.mrf.mxu0
    %3646 = vdwg.mxu0
    %v3647 = vadd.f32 %v2690, %v3644
    %v3648 = vxor.u32 %v3647, 2147483648
    %v3649 = vmul.f32 %v3648, 1.442695
    %v3650 = vpow.pop %v3649
    %v3651 = vadd.f32 %v3650, 1.0
    %v3652 = vrcp.pop %v3651
    %v3653 = vmul.f32 1.0, %v3652
    %3655 = vrot.lane.b32.xlu0 %v3644, 112
    %v3656 = vpop.permute.xlu0 %3655
    %v3658 = vmul.f32 %v3653, %v3656
    %3660 = vrot.lane.b32.xlu0 %v3658, 16
    %v3661 = vpop.permute.xlu0 %3660
    %v3663 = vadd.f32 %v2690, %v3661
    %v3664 = vtanh.pop %v3663
    %v3665 = vsub.f32 1.0, %v3653
    %3667 = vrot.lane.b32.xlu0 %v3664, 120
    %v3668 = vpop.permute.xlu0 %3667
    %v3670 = vmul.f32 %v3665, %v3668
    %v3671 = vmul.f32 %v3653, %v3566
    %v3672 = vadd.f32 %v3670, %v3671
    %3674 = vrot.lane.b32.xlu0 %v3672, 56
    %v3675 = vpop.permute.xlu0 %3674
    %vm3677 = vcmask 589312
    %3678 = vst.msk [vmem:[#allocation2] sm:$0xff] %vm3677, %v3675
    %3679 = vrot.lane.b32.xlu0 %v3672, 120
    %v3680 = vpop.permute.xlu0 %3679
    %v3681 = vsel %vm1339, %v3680, 0
    %3683 = vmatprep.subr.mxu0 0.0
    %3684 = vmatpush1.msra.mxu0 0.0
    %3685 = vmatprep.subr.mxu0 0.0
    %3686 = vmatpush1.msra.mxu0 0.0
    %3687 = vmatprep.subr.mxu0 0.0
    %3688 = vmatpush1.msra.mxu0 0.0
    %3689 = vmatprep.subr.mxu0 0.0
    %3690 = vmatpush1.msra.mxu0 0.0
    %3691 = vmatprep.subr.mxu0 0.0
    %3692 = vmatpush1.msra.mxu0 0.0
    %3693 = vmatprep.subr.mxu0 0.0
    %3694 = vmatpush1.msra.mxu0 0.0
    %3695 = vmatprep.subr.mxu0 0.0
    %3696 = vmatpush1.msra.mxu0 0.0
    %3697 = vmatprep.subr.mxu0 0.0
    %3698 = vmatpush1.msra.mxu0 0.0
    %3699 = vmatprep.subr.mxu0 0.0
    %3700 = vmatpush1.msra.mxu0 0.0
    %3701 = vmatprep.subr.mxu0 0.0
    %3702 = vmatpush1.msra.mxu0 0.0
    %3703 = vmatprep.subr.mxu0 0.0
    %3704 = vmatpush1.msra.mxu0 0.0
    %3705 = vmatprep.subr.mxu0 0.0
    %3706 = vmatpush1.msra.mxu0 0.0
    %3707 = vmatprep.subr.mxu0 0.0
    %3708 = vmatpush1.msra.mxu0 0.0
    %3709 = vmatprep.subr.mxu0 0.0
    %3710 = vmatpush1.msra.mxu0 0.0
    %3711 = vmatprep.subr.mxu0 0.0
    %3712 = vmatpush1.msra.mxu0 0.0
    %3713 = vmatprep.subr.mxu0 0.0
    %3714 = vmatpush1.msra.mxu0 %v45
    %3715 = vmatprep.subr.mxu0 0.0
    %3716 = vmatpush2.msra.mxu0 0.0
    %3717 = vmatprep.subr.mxu0 0.0
    %3718 = vmatpush2.msra.mxu0 0.0
    %3719 = vmatprep.subr.mxu0 0.0
    %3720 = vmatpush2.msra.mxu0 0.0
    %3721 = vmatprep.subr.mxu0 0.0
    %3722 = vmatpush2.msra.mxu0 0.0
    %3723 = vmatprep.subr.mxu0 0.0
    %3724 = vmatpush2.msra.mxu0 0.0
    %3725 = vmatprep.subr.mxu0 0.0
    %3726 = vmatpush2.msra.mxu0 0.0
    %3727 = vmatprep.subr.mxu0 0.0
    %3728 = vmatpush2.msra.mxu0 0.0
    %3729 = vmatprep.subr.mxu0 0.0
    %3730 = vmatpush2.msra.mxu0 0.0
    %3731 = vmatprep.subr.mxu0 0.0
    %3732 = vmatpush2.msra.mxu0 0.0
    %3733 = vmatprep.subr.mxu0 0.0
    %3734 = vmatpush2.msra.mxu0 0.0
    %3735 = vmatprep.subr.mxu0 0.0
    %3736 = vmatpush2.msra.mxu0 0.0
    %3737 = vmatprep.subr.mxu0 0.0
    %3738 = vmatpush2.msra.mxu0 0.0
    %3739 = vmatprep.subr.mxu0 0.0
    %3740 = vmatpush2.msra.mxu0 0.0
    %3741 = vmatprep.subr.mxu0 0.0
    %3742 = vmatpush2.msra.mxu0 0.0
    %3743 = vmatprep.subr.mxu0 0.0
    %3744 = vmatpush2.msra.mxu0 0.0
    %3745 = vmatprep.subr.mxu0 0.0
    %3746 = vmatpush2.msra.mxu0 0.0
    %3747 = vmatprep.mubr.f32.mxu0 0.0
    %3748 = vmatmul.mubr.f32.gmra.mxu0 %v3681
    %v3749 = vpop.f32.mrf.mxu0
    %v3750 = vadd.f32 %v2731, %v3749
    %v3751 = vpop.f32.mrf.mxu0
    %3752 = vdwg.mxu0
    %v3753 = vadd.f32 %v2695, %v3750
    %v3754 = vxor.u32 %v3753, 2147483648
    %v3755 = vmul.f32 %v3754, 1.442695
    %v3756 = vpow.pop %v3755
    %v3757 = vadd.f32 %v3756, 1.0
    %v3758 = vrcp.pop %v3757
    %v3759 = vmul.f32 1.0, %v3758
    %3761 = vrot.lane.b32.xlu0 %v3750, 112
    %v3762 = vpop.permute.xlu0 %3761
    %v3764 = vmul.f32 %v3759, %v3762
    %3766 = vrot.lane.b32.xlu0 %v3764, 16
    %v3767 = vpop.permute.xlu0 %3766
    %v3769 = vadd.f32 %v2695, %v3767
    %v3770 = vtanh.pop %v3769
    %v3771 = vsub.f32 1.0, %v3759
    %3773 = vrot.lane.b32.xlu0 %v3770, 120
    %v3774 = vpop.permute.xlu0 %3773
    %v3776 = vmul.f32 %v3771, %v3774
    %v3777 = vmul.f32 %v3759, %v3672
    %v3778 = vadd.f32 %v3776, %v3777
    %3780 = vrot.lane.b32.xlu0 %v3778, 64
    %v3781 = vpop.permute.xlu0 %3780
    %vm3783 = vcmask 654912
    %3784 = vst.msk [vmem:[#allocation2] sm:$0xff] %vm3783, %v3781
    %3785 = vrot.lane.b32.xlu0 %v3778, 120
    %v3786 = vpop.permute.xlu0 %3785
    %v3787 = vsel %vm1339, %v3786, 0
    %3789 = vmatprep.subr.mxu0 0.0
    %3790 = vmatpush1.msra.mxu0 0.0
    %3791 = vmatprep.subr.mxu0 0.0
    %3792 = vmatpush1.msra.mxu0 0.0
    %3793 = vmatprep.subr.mxu0 0.0
    %3794 = vmatpush1.msra.mxu0 0.0
    %3795 = vmatprep.subr.mxu0 0.0
    %3796 = vmatpush1.msra.mxu0 0.0
    %3797 = vmatprep.subr.mxu0 0.0
    %3798 = vmatpush1.msra.mxu0 0.0
    %3799 = vmatprep.subr.mxu0 0.0
    %3800 = vmatpush1.msra.mxu0 0.0
    %3801 = vmatprep.subr.mxu0 0.0
    %3802 = vmatpush1.msra.mxu0 0.0
    %3803 = vmatprep.subr.mxu0 0.0
    %3804 = vmatpush1.msra.mxu0 0.0
    %3805 = vmatprep.subr.mxu0 0.0
    %3806 = vmatpush1.msra.mxu0 0.0
    %3807 = vmatprep.subr.mxu0 0.0
    %3808 = vmatpush1.msra.mxu0 0.0
    %3809 = vmatprep.subr.mxu0 0.0
    %3810 = vmatpush1.msra.mxu0 0.0
    %3811 = vmatprep.subr.mxu0 0.0
    %3812 = vmatpush1.msra.mxu0 0.0
    %3813 = vmatprep.subr.mxu0 0.0
    %3814 = vmatpush1.msra.mxu0 0.0
    %3815 = vmatprep.subr.mxu0 0.0
    %3816 = vmatpush1.msra.mxu0 0.0
    %3817 = vmatprep.subr.mxu0 0.0
    %3818 = vmatpush1.msra.mxu0 0.0
    %3819 = vmatprep.subr.mxu0 0.0
    %3820 = vmatpush1.msra.mxu0 %v45
    %3821 = vmatprep.subr.mxu0 0.0
    %3822 = vmatpush2.msra.mxu0 0.0
    %3823 = vmatprep.subr.mxu0 0.0
    %3824 = vmatpush2.msra.mxu0 0.0
    %3825 = vmatprep.subr.mxu0 0.0
    %3826 = vmatpush2.msra.mxu0 0.0
    %3827 = vmatprep.subr.mxu0 0.0
    %3828 = vmatpush2.msra.mxu0 0.0
    %3829 = vmatprep.subr.mxu0 0.0
    %3830 = vmatpush2.msra.mxu0 0.0
    %3831 = vmatprep.subr.mxu0 0.0
    %3832 = vmatpush2.msra.mxu0 0.0
    %3833 = vmatprep.subr.mxu0 0.0
    %3834 = vmatpush2.msra.mxu0 0.0
    %3835 = vmatprep.subr.mxu0 0.0
    %3836 = vmatpush2.msra.mxu0 0.0
    %3837 = vmatprep.subr.mxu0 0.0
    %3838 = vmatpush2.msra.mxu0 0.0
    %3839 = vmatprep.subr.mxu0 0.0
    %3840 = vmatpush2.msra.mxu0 0.0
    %3841 = vmatprep.subr.mxu0 0.0
    %3842 = vmatpush2.msra.mxu0 0.0
    %3843 = vmatprep.subr.mxu0 0.0
    %3844 = vmatpush2.msra.mxu0 0.0
    %3845 = vmatprep.subr.mxu0 0.0
    %3846 = vmatpush2.msra.mxu0 0.0
    %3847 = vmatprep.subr.mxu0 0.0
    %3848 = vmatpush2.msra.mxu0 0.0
    %3849 = vmatprep.subr.mxu0 0.0
    %3850 = vmatpush2.msra.mxu0 0.0
    %3851 = vmatprep.subr.mxu0 0.0
    %3852 = vmatpush2.msra.mxu0 0.0
    %3853 = vmatprep.mubr.f32.mxu0 0.0
    %3854 = vmatmul.mubr.f32.gmra.mxu0 %v3787
    %v3855 = vpop.f32.mrf.mxu0
    %v3856 = vadd.f32 %v2731, %v3855
    %v3857 = vpop.f32.mrf.mxu0
    %3858 = vdwg.mxu0
    %v3859 = vadd.f32 %v2700, %v3856
    %v3860 = vxor.u32 %v3859, 2147483648
    %v3861 = vmul.f32 %v3860, 1.442695
    %v3862 = vpow.pop %v3861
    %v3863 = vadd.f32 %v3862, 1.0
    %v3864 = vrcp.pop %v3863
    %v3865 = vmul.f32 1.0, %v3864
    %3867 = vrot.lane.b32.xlu0 %v3856, 112
    %v3868 = vpop.permute.xlu0 %3867
    %v3870 = vmul.f32 %v3865, %v3868
    %3872 = vrot.lane.b32.xlu0 %v3870, 16
    %v3873 = vpop.permute.xlu0 %3872
    %v3875 = vadd.f32 %v2700, %v3873
    %v3876 = vtanh.pop %v3875
    %v3877 = vsub.f32 1.0, %v3865
    %3879 = vrot.lane.b32.xlu0 %v3876, 120
    %v3880 = vpop.permute.xlu0 %3879
    %v3882 = vmul.f32 %v3877, %v3880
    %v3883 = vmul.f32 %v3865, %v3778
    %v3884 = vadd.f32 %v3882, %v3883
    %3886 = vrot.lane.b32.xlu0 %v3884, 72
    %v3887 = vpop.permute.xlu0 %3886
    %vm3889 = vcmask 720512
    %3890 = vst.msk [vmem:[#allocation2] sm:$0xff] %vm3889, %v3887
    %3891 = vrot.lane.b32.xlu0 %v3884, 120
    %v3892 = vpop.permute.xlu0 %3891
    %v3893 = vsel %vm1339, %v3892, 0
    %3895 = vmatprep.subr.mxu0 0.0
    %3896 = vmatpush1.msra.mxu0 0.0
    %3897 = vmatprep.subr.mxu0 0.0
    %3898 = vmatpush1.msra.mxu0 0.0
    %3899 = vmatprep.subr.mxu0 0.0
    %3900 = vmatpush1.msra.mxu0 0.0
    %3901 = vmatprep.subr.mxu0 0.0
    %3902 = vmatpush1.msra.mxu0 0.0
    %3903 = vmatprep.subr.mxu0 0.0
    %3904 = vmatpush1.msra.mxu0 0.0
    %3905 = vmatprep.subr.mxu0 0.0
    %3906 = vmatpush1.msra.mxu0 0.0
    %3907 = vmatprep.subr.mxu0 0.0
    %3908 = vmatpush1.msra.mxu0 0.0
    %3909 = vmatprep.subr.mxu0 0.0
    %3910 = vmatpush1.msra.mxu0 0.0
    %3911 = vmatprep.subr.mxu0 0.0
    %3912 = vmatpush1.msra.mxu0 0.0
    %3913 = vmatprep.subr.mxu0 0.0
    %3914 = vmatpush1.msra.mxu0 0.0
    %3915 = vmatprep.subr.mxu0 0.0
    %3916 = vmatpush1.msra.mxu0 0.0
    %3917 = vmatprep.subr.mxu0 0.0
    %3918 = vmatpush1.msra.mxu0 0.0
    %3919 = vmatprep.subr.mxu0 0.0
    %3920 = vmatpush1.msra.mxu0 0.0
    %3921 = vmatprep.subr.mxu0 0.0
    %3922 = vmatpush1.msra.mxu0 0.0
    %3923 = vmatprep.subr.mxu0 0.0
    %3924 = vmatpush1.msra.mxu0 0.0
    %3925 = vmatprep.subr.mxu0 0.0
    %3926 = vmatpush1.msra.mxu0 %v45
    %3927 = vmatprep.subr.mxu0 0.0
    %3928 = vmatpush2.msra.mxu0 0.0
    %3929 = vmatprep.subr.mxu0 0.0
    %3930 = vmatpush2.msra.mxu0 0.0
    %3931 = vmatprep.subr.mxu0 0.0
    %3932 = vmatpush2.msra.mxu0 0.0
    %3933 = vmatprep.subr.mxu0 0.0
    %3934 = vmatpush2.msra.mxu0 0.0
    %3935 = vmatprep.subr.mxu0 0.0
    %3936 = vmatpush2.msra.mxu0 0.0
    %3937 = vmatprep.subr.mxu0 0.0
    %3938 = vmatpush2.msra.mxu0 0.0
    %3939 = vmatprep.subr.mxu0 0.0
    %3940 = vmatpush2.msra.mxu0 0.0
    %3941 = vmatprep.subr.mxu0 0.0
    %3942 = vmatpush2.msra.mxu0 0.0
    %3943 = vmatprep.subr.mxu0 0.0
    %3944 = vmatpush2.msra.mxu0 0.0
    %3945 = vmatprep.subr.mxu0 0.0
    %3946 = vmatpush2.msra.mxu0 0.0
    %3947 = vmatprep.subr.mxu0 0.0
    %3948 = vmatpush2.msra.mxu0 0.0
    %3949 = vmatprep.subr.mxu0 0.0
    %3950 = vmatpush2.msra.mxu0 0.0
    %3951 = vmatprep.subr.mxu0 0.0
    %3952 = vmatpush2.msra.mxu0 0.0
    %3953 = vmatprep.subr.mxu0 0.0
    %3954 = vmatpush2.msra.mxu0 0.0
    %3955 = vmatprep.subr.mxu0 0.0
    %3956 = vmatpush2.msra.mxu0 0.0
    %3957 = vmatprep.subr.mxu0 0.0
    %3958 = vmatpush2.msra.mxu0 0.0
    %3959 = vmatprep.mubr.f32.mxu0 0.0
    %3960 = vmatmul.mubr.f32.gmra.mxu0 %v3893
    %v3961 = vpop.f32.mrf.mxu0
    %v3962 = vadd.f32 %v2731, %v3961
    %v3963 = vpop.f32.mrf.mxu0
    %3964 = vdwg.mxu0
    %v3965 = vadd.f32 %v2705, %v3962
    %v3966 = vxor.u32 %v3965, 2147483648
    %v3967 = vmul.f32 %v3966, 1.442695
    %v3968 = vpow.pop %v3967
    %v3969 = vadd.f32 %v3968, 1.0
    %v3970 = vrcp.pop %v3969
    %v3971 = vmul.f32 1.0, %v3970
    %3973 = vrot.lane.b32.xlu0 %v3962, 112
    %v3974 = vpop.permute.xlu0 %3973
    %v3976 = vmul.f32 %v3971, %v3974
    %3978 = vrot.lane.b32.xlu0 %v3976, 16
    %v3979 = vpop.permute.xlu0 %3978
    %v3981 = vadd.f32 %v2705, %v3979
    %v3982 = vtanh.pop %v3981
    %v3983 = vsub.f32 1.0, %v3971
    %3985 = vrot.lane.b32.xlu0 %v3982, 120
    %v3986 = vpop.permute.xlu0 %3985
    %v3988 = vmul.f32 %v3983, %v3986
    %v3989 = vmul.f32 %v3971, %v3884
    %v3990 = vadd.f32 %v3988, %v3989
    %3992 = vrot.lane.b32.xlu0 %v3990, 80
    %v3993 = vpop.permute.xlu0 %3992
    %vm3995 = vcmask 786112
    %3996 = vst.msk [vmem:[#allocation2] sm:$0xff] %vm3995, %v3993
    %3997 = vrot.lane.b32.xlu0 %v3990, 120
    %v3998 = vpop.permute.xlu0 %3997
    %v3999 = vsel %vm1339, %v3998, 0
    %4001 = vmatprep.subr.mxu0 0.0
    %4002 = vmatpush1.msra.mxu0 0.0
    %4003 = vmatprep.subr.mxu0 0.0
    %4004 = vmatpush1.msra.mxu0 0.0
    %4005 = vmatprep.subr.mxu0 0.0
    %4006 = vmatpush1.msra.mxu0 0.0
    %4007 = vmatprep.subr.mxu0 0.0
    %4008 = vmatpush1.msra.mxu0 0.0
    %4009 = vmatprep.subr.mxu0 0.0
    %4010 = vmatpush1.msra.mxu0 0.0
    %4011 = vmatprep.subr.mxu0 0.0
    %4012 = vmatpush1.msra.mxu0 0.0
    %4013 = vmatprep.subr.mxu0 0.0
    %4014 = vmatpush1.msra.mxu0 0.0
    %4015 = vmatprep.subr.mxu0 0.0
    %4016 = vmatpush1.msra.mxu0 0.0
    %4017 = vmatprep.subr.mxu0 0.0
    %4018 = vmatpush1.msra.mxu0 0.0
    %4019 = vmatprep.subr.mxu0 0.0
    %4020 = vmatpush1.msra.mxu0 0.0
    %4021 = vmatprep.subr.mxu0 0.0
    %4022 = vmatpush1.msra.mxu0 0.0
    %4023 = vmatprep.subr.mxu0 0.0
    %4024 = vmatpush1.msra.mxu0 0.0
    %4025 = vmatprep.subr.mxu0 0.0
    %4026 = vmatpush1.msra.mxu0 0.0
    %4027 = vmatprep.subr.mxu0 0.0
    %4028 = vmatpush1.msra.mxu0 0.0
    %4029 = vmatprep.subr.mxu0 0.0
    %4030 = vmatpush1.msra.mxu0 0.0
    %4031 = vmatprep.subr.mxu0 0.0
    %4032 = vmatpush1.msra.mxu0 %v45
    %4033 = vmatprep.subr.mxu0 0.0
    %4034 = vmatpush2.msra.mxu0 0.0
    %4035 = vmatprep.subr.mxu0 0.0
    %4036 = vmatpush2.msra.mxu0 0.0
    %4037 = vmatprep.subr.mxu0 0.0
    %4038 = vmatpush2.msra.mxu0 0.0
    %4039 = vmatprep.subr.mxu0 0.0
    %4040 = vmatpush2.msra.mxu0 0.0
    %4041 = vmatprep.subr.mxu0 0.0
    %4042 = vmatpush2.msra.mxu0 0.0
    %4043 = vmatprep.subr.mxu0 0.0
    %4044 = vmatpush2.msra.mxu0 0.0
    %4045 = vmatprep.subr.mxu0 0.0
    %4046 = vmatpush2.msra.mxu0 0.0
    %4047 = vmatprep.subr.mxu0 0.0
    %4048 = vmatpush2.msra.mxu0 0.0
    %4049 = vmatprep.subr.mxu0 0.0
    %4050 = vmatpush2.msra.mxu0 0.0
    %4051 = vmatprep.subr.mxu0 0.0
    %4052 = vmatpush2.msra.mxu0 0.0
    %4053 = vmatprep.subr.mxu0 0.0
    %4054 = vmatpush2.msra.mxu0 0.0
    %4055 = vmatprep.subr.mxu0 0.0
    %4056 = vmatpush2.msra.mxu0 0.0
    %4057 = vmatprep.subr.mxu0 0.0
    %4058 = vmatpush2.msra.mxu0 0.0
    %4059 = vmatprep.subr.mxu0 0.0
    %4060 = vmatpush2.msra.mxu0 0.0
    %4061 = vmatprep.subr.mxu0 0.0
    %4062 = vmatpush2.msra.mxu0 0.0
    %4063 = vmatprep.subr.mxu0 0.0
    %4064 = vmatpush2.msra.mxu0 0.0
    %4065 = vmatprep.mubr.f32.mxu0 0.0
    %4066 = vmatmul.mubr.f32.gmra.mxu0 %v3999
    %v4067 = vpop.f32.mrf.mxu0
    %v4068 = vadd.f32 %v2731, %v4067
    %v4069 = vpop.f32.mrf.mxu0
    %4070 = vdwg.mxu0
    %v4071 = vadd.f32 %v2710, %v4068
    %v4072 = vxor.u32 %v4071, 2147483648
    %v4073 = vmul.f32 %v4072, 1.442695
    %v4074 = vpow.pop %v4073
    %v4075 = vadd.f32 %v4074, 1.0
    %v4076 = vrcp.pop %v4075
    %v4077 = vmul.f32 1.0, %v4076
    %4079 = vrot.lane.b32.xlu0 %v4068, 112
    %v4080 = vpop.permute.xlu0 %4079
    %v4082 = vmul.f32 %v4077, %v4080
    %4084 = vrot.lane.b32.xlu0 %v4082, 16
    %v4085 = vpop.permute.xlu0 %4084
    %v4087 = vadd.f32 %v2710, %v4085
    %v4088 = vtanh.pop %v4087
    %v4089 = vsub.f32 1.0, %v4077
    %4091 = vrot.lane.b32.xlu0 %v4088, 120
    %v4092 = vpop.permute.xlu0 %4091
    %v4094 = vmul.f32 %v4089, %v4092
    %v4095 = vmul.f32 %v4077, %v3990
    %v4096 = vadd.f32 %v4094, %v4095
    %4098 = vrot.lane.b32.xlu0 %v4096, 88
    %v4099 = vpop.permute.xlu0 %4098
    %vm4101 = vcmask 851712
    %4102 = vst.msk [vmem:[#allocation2] sm:$0xff] %vm4101, %v4099
    %4103 = vrot.lane.b32.xlu0 %v4096, 120
    %v4104 = vpop.permute.xlu0 %4103
    %v4105 = vsel %vm1339, %v4104, 0
    %4107 = vmatprep.subr.mxu0 0.0
    %4108 = vmatpush1.msra.mxu0 0.0
    %4109 = vmatprep.subr.mxu0 0.0
    %4110 = vmatpush1.msra.mxu0 0.0
    %4111 = vmatprep.subr.mxu0 0.0
    %4112 = vmatpush1.msra.mxu0 0.0
    %4113 = vmatprep.subr.mxu0 0.0
    %4114 = vmatpush1.msra.mxu0 0.0
    %4115 = vmatprep.subr.mxu0 0.0
    %4116 = vmatpush1.msra.mxu0 0.0
    %4117 = vmatprep.subr.mxu0 0.0
    %4118 = vmatpush1.msra.mxu0 0.0
    %4119 = vmatprep.subr.mxu0 0.0
    %4120 = vmatpush1.msra.mxu0 0.0
    %4121 = vmatprep.subr.mxu0 0.0
    %4122 = vmatpush1.msra.mxu0 0.0
    %4123 = vmatprep.subr.mxu0 0.0
    %4124 = vmatpush1.msra.mxu0 0.0
    %4125 = vmatprep.subr.mxu0 0.0
    %4126 = vmatpush1.msra.mxu0 0.0
    %4127 = vmatprep.subr.mxu0 0.0
    %4128 = vmatpush1.msra.mxu0 0.0
    %4129 = vmatprep.subr.mxu0 0.0
    %4130 = vmatpush1.msra.mxu0 0.0
    %4131 = vmatprep.subr.mxu0 0.0
    %4132 = vmatpush1.msra.mxu0 0.0
    %4133 = vmatprep.subr.mxu0 0.0
    %4134 = vmatpush1.msra.mxu0 0.0
    %4135 = vmatprep.subr.mxu0 0.0
    %4136 = vmatpush1.msra.mxu0 0.0
    %4137 = vmatprep.subr.mxu0 0.0
    %4138 = vmatpush1.msra.mxu0 %v45
    %4139 = vmatprep.subr.mxu0 0.0
    %4140 = vmatpush2.msra.mxu0 0.0
    %4141 = vmatprep.subr.mxu0 0.0
    %4142 = vmatpush2.msra.mxu0 0.0
    %4143 = vmatprep.subr.mxu0 0.0
    %4144 = vmatpush2.msra.mxu0 0.0
    %4145 = vmatprep.subr.mxu0 0.0
    %4146 = vmatpush2.msra.mxu0 0.0
    %4147 = vmatprep.subr.mxu0 0.0
    %4148 = vmatpush2.msra.mxu0 0.0
    %4149 = vmatprep.subr.mxu0 0.0
    %4150 = vmatpush2.msra.mxu0 0.0
    %4151 = vmatprep.subr.mxu0 0.0
    %4152 = vmatpush2.msra.mxu0 0.0
    %4153 = vmatprep.subr.mxu0 0.0
    %4154 = vmatpush2.msra.mxu0 0.0
    %4155 = vmatprep.subr.mxu0 0.0
    %4156 = vmatpush2.msra.mxu0 0.0
    %4157 = vmatprep.subr.mxu0 0.0
    %4158 = vmatpush2.msra.mxu0 0.0
    %4159 = vmatprep.subr.mxu0 0.0
    %4160 = vmatpush2.msra.mxu0 0.0
    %4161 = vmatprep.subr.mxu0 0.0
    %4162 = vmatpush2.msra.mxu0 0.0
    %4163 = vmatprep.subr.mxu0 0.0
    %4164 = vmatpush2.msra.mxu0 0.0
    %4165 = vmatprep.subr.mxu0 0.0
    %4166 = vmatpush2.msra.mxu0 0.0
    %4167 = vmatprep.subr.mxu0 0.0
    %4168 = vmatpush2.msra.mxu0 0.0
    %4169 = vmatprep.subr.mxu0 0.0
    %4170 = vmatpush2.msra.mxu0 0.0
    %4171 = vmatprep.mubr.f32.mxu0 0.0
    %4172 = vmatmul.mubr.f32.gmra.mxu0 %v4105
    %v4173 = vpop.f32.mrf.mxu0
    %v4174 = vadd.f32 %v2731, %v4173
    %v4175 = vpop.f32.mrf.mxu0
    %4176 = vdwg.mxu0
    %v4177 = vadd.f32 %v2715, %v4174
    %v4178 = vxor.u32 %v4177, 2147483648
    %v4179 = vmul.f32 %v4178, 1.442695
    %v4180 = vpow.pop %v4179
    %v4181 = vadd.f32 %v4180, 1.0
    %v4182 = vrcp.pop %v4181
    %v4183 = vmul.f32 1.0, %v4182
    %4185 = vrot.lane.b32.xlu0 %v4174, 112
    %v4186 = vpop.permute.xlu0 %4185
    %v4188 = vmul.f32 %v4183, %v4186
    %4190 = vrot.lane.b32.xlu0 %v4188, 16
    %v4191 = vpop.permute.xlu0 %4190
    %v4193 = vadd.f32 %v2715, %v4191
    %v4194 = vtanh.pop %v4193
    %v4195 = vsub.f32 1.0, %v4183
    %4197 = vrot.lane.b32.xlu0 %v4194, 120
    %v4198 = vpop.permute.xlu0 %4197
    %v4200 = vmul.f32 %v4195, %v4198
    %v4201 = vmul.f32 %v4183, %v4096
    %v4202 = vadd.f32 %v4200, %v4201
    %4204 = vrot.lane.b32.xlu0 %v4202, 96
    %v4205 = vpop.permute.xlu0 %4204
    %vm4207 = vcmask 917312
    %4208 = vst.msk [vmem:[#allocation2] sm:$0xff] %vm4207, %v4205
    %4209 = vrot.lane.b32.xlu0 %v4202, 120
    %v4210 = vpop.permute.xlu0 %4209
    %v4211 = vsel %vm1339, %v4210, 0
    %4213 = vmatprep.subr.mxu0 0.0
    %4214 = vmatpush1.msra.mxu0 0.0
    %4215 = vmatprep.subr.mxu0 0.0
    %4216 = vmatpush1.msra.mxu0 0.0
    %4217 = vmatprep.subr.mxu0 0.0
    %4218 = vmatpush1.msra.mxu0 0.0
    %4219 = vmatprep.subr.mxu0 0.0
    %4220 = vmatpush1.msra.mxu0 0.0
    %4221 = vmatprep.subr.mxu0 0.0
    %4222 = vmatpush1.msra.mxu0 0.0
    %4223 = vmatprep.subr.mxu0 0.0
    %4224 = vmatpush1.msra.mxu0 0.0
    %4225 = vmatprep.subr.mxu0 0.0
    %4226 = vmatpush1.msra.mxu0 0.0
    %4227 = vmatprep.subr.mxu0 0.0
    %4228 = vmatpush1.msra.mxu0 0.0
    %4229 = vmatprep.subr.mxu0 0.0
    %4230 = vmatpush1.msra.mxu0 0.0
    %4231 = vmatprep.subr.mxu0 0.0
    %4232 = vmatpush1.msra.mxu0 0.0
    %4233 = vmatprep.subr.mxu0 0.0
    %4234 = vmatpush1.msra.mxu0 0.0
    %4235 = vmatprep.subr.mxu0 0.0
    %4236 = vmatpush1.msra.mxu0 0.0
    %4237 = vmatprep.subr.mxu0 0.0
    %4238 = vmatpush1.msra.mxu0 0.0
    %4239 = vmatprep.subr.mxu0 0.0
    %4240 = vmatpush1.msra.mxu0 0.0
    %4241 = vmatprep.subr.mxu0 0.0
    %4242 = vmatpush1.msra.mxu0 0.0
    %4243 = vmatprep.subr.mxu0 0.0
    %4244 = vmatpush1.msra.mxu0 %v45
    %4245 = vmatprep.subr.mxu0 0.0
    %4246 = vmatpush2.msra.mxu0 0.0
    %4247 = vmatprep.subr.mxu0 0.0
    %4248 = vmatpush2.msra.mxu0 0.0
    %4249 = vmatprep.subr.mxu0 0.0
    %4250 = vmatpush2.msra.mxu0 0.0
    %4251 = vmatprep.subr.mxu0 0.0
    %4252 = vmatpush2.msra.mxu0 0.0
    %4253 = vmatprep.subr.mxu0 0.0
    %4254 = vmatpush2.msra.mxu0 0.0
    %4255 = vmatprep.subr.mxu0 0.0
    %4256 = vmatpush2.msra.mxu0 0.0
    %4257 = vmatprep.subr.mxu0 0.0
    %4258 = vmatpush2.msra.mxu0 0.0
    %4259 = vmatprep.subr.mxu0 0.0
    %4260 = vmatpush2.msra.mxu0 0.0
    %4261 = vmatprep.subr.mxu0 0.0
    %4262 = vmatpush2.msra.mxu0 0.0
    %4263 = vmatprep.subr.mxu0 0.0
    %4264 = vmatpush2.msra.mxu0 0.0
    %4265 = vmatprep.subr.mxu0 0.0
    %4266 = vmatpush2.msra.mxu0 0.0
    %4267 = vmatprep.subr.mxu0 0.0
    %4268 = vmatpush2.msra.mxu0 0.0
    %4269 = vmatprep.subr.mxu0 0.0
    %4270 = vmatpush2.msra.mxu0 0.0
    %4271 = vmatprep.subr.mxu0 0.0
    %4272 = vmatpush2.msra.mxu0 0.0
    %4273 = vmatprep.subr.mxu0 0.0
    %4274 = vmatpush2.msra.mxu0 0.0
    %4275 = vmatprep.subr.mxu0 0.0
    %4276 = vmatpush2.msra.mxu0 0.0
    %4277 = vmatprep.mubr.f32.mxu0 0.0
    %4278 = vmatmul.mubr.f32.gmra.mxu0 %v4211
    %v4279 = vpop.f32.mrf.mxu0
    %v4280 = vadd.f32 %v2731, %v4279
    %v4281 = vpop.f32.mrf.mxu0
    %4282 = vdwg.mxu0
    %v4283 = vadd.f32 %v2720, %v4280
    %v4284 = vxor.u32 %v4283, 2147483648
    %v4285 = vmul.f32 %v4284, 1.442695
    %v4286 = vpow.pop %v4285
    %v4287 = vadd.f32 %v4286, 1.0
    %v4288 = vrcp.pop %v4287
    %v4289 = vmul.f32 1.0, %v4288
    %4291 = vrot.lane.b32.xlu0 %v4280, 112
    %v4292 = vpop.permute.xlu0 %4291
    %v4294 = vmul.f32 %v4289, %v4292
    %4296 = vrot.lane.b32.xlu0 %v4294, 16
    %v4297 = vpop.permute.xlu0 %4296
    %v4299 = vadd.f32 %v2720, %v4297
    %v4300 = vtanh.pop %v4299
    %v4301 = vsub.f32 1.0, %v4289
    %4303 = vrot.lane.b32.xlu0 %v4300, 120
    %v4304 = vpop.permute.xlu0 %4303
    %v4306 = vmul.f32 %v4301, %v4304
    %v4307 = vmul.f32 %v4289, %v4202
    %v4308 = vadd.f32 %v4306, %v4307
    %4310 = vrot.lane.b32.xlu0 %v4308, 104
    %v4311 = vpop.permute.xlu0 %4310
    %vm4313 = vcmask 982912
    %4314 = vst.msk [vmem:[#allocation2] sm:$0xff] %vm4313, %v4311
    %4315 = vrot.lane.b32.xlu0 %v4308, 120
    %v4316 = vpop.permute.xlu0 %4315
    %v4317 = vsel %vm1339, %v4316, 0
    %4319 = vmatprep.subr.mxu0 0.0
    %4320 = vmatpush1.msra.mxu0 0.0
    %4321 = vmatprep.subr.mxu0 0.0
    %4322 = vmatpush1.msra.mxu0 0.0
    %4323 = vmatprep.subr.mxu0 0.0
    %4324 = vmatpush1.msra.mxu0 0.0
    %4325 = vmatprep.subr.mxu0 0.0
    %4326 = vmatpush1.msra.mxu0 0.0
    %4327 = vmatprep.subr.mxu0 0.0
    %4328 = vmatpush1.msra.mxu0 0.0
    %4329 = vmatprep.subr.mxu0 0.0
    %4330 = vmatpush1.msra.mxu0 0.0
    %4331 = vmatprep.subr.mxu0 0.0
    %4332 = vmatpush1.msra.mxu0 0.0
    %4333 = vmatprep.subr.mxu0 0.0
    %4334 = vmatpush1.msra.mxu0 0.0
    %4335 = vmatprep.subr.mxu0 0.0
    %4336 = vmatpush1.msra.mxu0 0.0
    %4337 = vmatprep.subr.mxu0 0.0
    %4338 = vmatpush1.msra.mxu0 0.0
    %4339 = vmatprep.subr.mxu0 0.0
    %4340 = vmatpush1.msra.mxu0 0.0
    %4341 = vmatprep.subr.mxu0 0.0
    %4342 = vmatpush1.msra.mxu0 0.0
    %4343 = vmatprep.subr.mxu0 0.0
    %4344 = vmatpush1.msra.mxu0 0.0
    %4345 = vmatprep.subr.mxu0 0.0
    %4346 = vmatpush1.msra.mxu0 0.0
    %4347 = vmatprep.subr.mxu0 0.0
    %4348 = vmatpush1.msra.mxu0 0.0
    %4349 = vmatprep.subr.mxu0 0.0
    %4350 = vmatpush1.msra.mxu0 %v45
    %4351 = vmatprep.subr.mxu0 0.0
    %4352 = vmatpush2.msra.mxu0 0.0
    %4353 = vmatprep.subr.mxu0 0.0
    %4354 = vmatpush2.msra.mxu0 0.0
    %4355 = vmatprep.subr.mxu0 0.0
    %4356 = vmatpush2.msra.mxu0 0.0
    %4357 = vmatprep.subr.mxu0 0.0
    %4358 = vmatpush2.msra.mxu0 0.0
    %4359 = vmatprep.subr.mxu0 0.0
    %4360 = vmatpush2.msra.mxu0 0.0
    %4361 = vmatprep.subr.mxu0 0.0
    %4362 = vmatpush2.msra.mxu0 0.0
    %4363 = vmatprep.subr.mxu0 0.0
    %4364 = vmatpush2.msra.mxu0 0.0
    %4365 = vmatprep.subr.mxu0 0.0
    %4366 = vmatpush2.msra.mxu0 0.0
    %4367 = vmatprep.subr.mxu0 0.0
    %4368 = vmatpush2.msra.mxu0 0.0
    %4369 = vmatprep.subr.mxu0 0.0
    %4370 = vmatpush2.msra.mxu0 0.0
    %4371 = vmatprep.subr.mxu0 0.0
    %4372 = vmatpush2.msra.mxu0 0.0
    %4373 = vmatprep.subr.mxu0 0.0
    %4374 = vmatpush2.msra.mxu0 0.0
    %4375 = vmatprep.subr.mxu0 0.0
    %4376 = vmatpush2.msra.mxu0 0.0
    %4377 = vmatprep.subr.mxu0 0.0
    %4378 = vmatpush2.msra.mxu0 0.0
    %4379 = vmatprep.subr.mxu0 0.0
    %4380 = vmatpush2.msra.mxu0 0.0
    %4381 = vmatprep.subr.mxu0 0.0
    %4382 = vmatpush2.msra.mxu0 0.0
    %4383 = vmatprep.mubr.f32.mxu0 0.0
    %4384 = vmatmul.mubr.f32.gmra.mxu0 %v4317
    %v4385 = vpop.f32.mrf.mxu0
    %v4386 = vadd.f32 %v2731, %v4385
    %v4387 = vpop.f32.mrf.mxu0
    %4388 = vdwg.mxu0
    %v4389 = vadd.f32 %v2725, %v4386
    %v4390 = vxor.u32 %v4389, 2147483648
    %v4391 = vmul.f32 %v4390, 1.442695
    %v4392 = vpow.pop %v4391
    %v4393 = vadd.f32 %v4392, 1.0
    %v4394 = vrcp.pop %v4393
    %v4395 = vmul.f32 1.0, %v4394
    %4397 = vrot.lane.b32.xlu0 %v4386, 112
    %v4398 = vpop.permute.xlu0 %4397
    %v4400 = vmul.f32 %v4395, %v4398
    %4402 = vrot.lane.b32.xlu0 %v4400, 16
    %v4403 = vpop.permute.xlu0 %4402
    %v4405 = vadd.f32 %v2725, %v4403
    %v4406 = vtanh.pop %v4405
    %v4407 = vsub.f32 1.0, %v4395
    %4409 = vrot.lane.b32.xlu0 %v4406, 120
    %v4410 = vpop.permute.xlu0 %4409
    %v4412 = vmul.f32 %v4407, %v4410
    %v4413 = vmul.f32 %v4395, %v4308
    %v4414 = vadd.f32 %v4412, %v4413
    %4416 = vrot.lane.b32.xlu0 %v4414, 112
    %v4417 = vpop.permute.xlu0 %4416
    %vm4419 = vcmask 1048512
    %4420 = vst.msk [vmem:[#allocation2] sm:$0xff] %vm4419, %v4417
    %v4421 = vld [vmem:[#allocation3] sm:$0xff]
    %v4422 = vld [vmem:[#allocation3 + $0x8] sm:$0xff]
    %v4423 = vld [vmem:[#allocation3 + $0x10] sm:$0xff]
    %v4424 = vld [vmem:[#allocation3 + $0x18] sm:$0xff]
    %v4425 = vld [vmem:[#allocation3 + $0x20] sm:$0xff]
    %v4426 = vld [vmem:[#allocation3 + $0x28] sm:$0xff]
    %v4427 = vld [vmem:[#allocation3 + $0x30] sm:$0xff]
    %v4428 = vld [vmem:[#allocation3 + $0x38] sm:$0xff]
    %v4429 = vld [vmem:[#allocation3 + $0x40] sm:$0xff]
    %v4430 = vld [vmem:[#allocation3 + $0x48] sm:$0xff]
    %v4431 = vld [vmem:[#allocation3 + $0x50] sm:$0xff]
    %v4432 = vld [vmem:[#allocation3 + $0x58] sm:$0xff]
    %v4433 = vld [vmem:[#allocation3 + $0x60] sm:$0xff]
    %v4434 = vld [vmem:[#allocation3 + $0x68] sm:$0xff]
    %v4435 = vld [vmem:[#allocation3 + $0x70] sm:$0xff]
    %v4436 = vld [vmem:[#allocation3 + $0x78] sm:$0xff]
    %v4437 = vld [vmem:[#allocation3 + $0x80] sm:$0x1]
    %v4438 = vld [vmem:[#allocation2] sm:$0xff]
    %v4439 = vlaneseq
    %v4440 = vshrl.u32 %v4439, 7
    %v4441 = vsub.s32 0, %v4440
    %v4442 = vrot.slane %v4437, %v4441
    %4443 = vmatprep.subr.mxu0 0.0
    %4444 = vmatpush1.msra.mxu0 %v4436
    %4445 = vmatprep.subr.mxu0 0.0
    %4446 = vmatpush1.msra.mxu0 %v4435
    %4447 = vmatprep.subr.mxu0 0.0
    %4448 = vmatpush1.msra.mxu0 %v4434
    %4449 = vmatprep.subr.mxu0 0.0
    %4450 = vmatpush1.msra.mxu0 %v4433
    %4451 = vmatprep.subr.mxu0 0.0
    %4452 = vmatpush1.msra.mxu0 %v4432
    %4453 = vmatprep.subr.mxu0 0.0
    %4454 = vmatpush1.msra.mxu0 %v4431
    %4455 = vmatprep.subr.mxu0 0.0
    %4456 = vmatpush1.msra.mxu0 %v4430
    %4457 = vmatprep.subr.mxu0 0.0
    %4458 = vmatpush1.msra.mxu0 %v4429
    %4459 = vmatprep.subr.mxu0 0.0
    %4460 = vmatpush1.msra.mxu0 %v4428
    %4461 = vmatprep.subr.mxu0 0.0
    %4462 = vmatpush1.msra.mxu0 %v4427
    %4463 = vmatprep.subr.mxu0 0.0
    %4464 = vmatpush1.msra.mxu0 %v4426
    %4465 = vmatprep.subr.mxu0 0.0
    %4466 = vmatpush1.msra.mxu0 %v4425
    %4467 = vmatprep.subr.mxu0 0.0
    %4468 = vmatpush1.msra.mxu0 %v4424
    %4469 = vmatprep.subr.mxu0 0.0
    %4470 = vmatpush1.msra.mxu0 %v4423
    %4471 = vmatprep.subr.mxu0 0.0
    %4472 = vmatpush1.msra.mxu0 %v4422
    %4473 = vmatprep.subr.mxu0 0.0
    %4474 = vmatpush1.msra.mxu0 %v4421
    %4475 = vmatprep.subr.mxu0 0.0
    %4476 = vmatpush2.msra.mxu0 0.0
    %4477 = vmatprep.subr.mxu0 0.0
    %4478 = vmatpush2.msra.mxu0 0.0
    %4479 = vmatprep.subr.mxu0 0.0
    %4480 = vmatpush2.msra.mxu0 0.0
    %4481 = vmatprep.subr.mxu0 0.0
    %4482 = vmatpush2.msra.mxu0 0.0
    %4483 = vmatprep.subr.mxu0 0.0
    %4484 = vmatpush2.msra.mxu0 0.0
    %4485 = vmatprep.subr.mxu0 0.0
    %4486 = vmatpush2.msra.mxu0 0.0
    %4487 = vmatprep.subr.mxu0 0.0
    %4488 = vmatpush2.msra.mxu0 0.0
    %4489 = vmatprep.subr.mxu0 0.0
    %4490 = vmatpush2.msra.mxu0 0.0
    %4491 = vmatprep.subr.mxu0 0.0
    %4492 = vmatpush2.msra.mxu0 0.0
    %4493 = vmatprep.subr.mxu0 0.0
    %4494 = vmatpush2.msra.mxu0 0.0
    %4495 = vmatprep.subr.mxu0 0.0
    %4496 = vmatpush2.msra.mxu0 0.0
    %4497 = vmatprep.subr.mxu0 0.0
    %4498 = vmatpush2.msra.mxu0 0.0
    %4499 = vmatprep.subr.mxu0 0.0
    %4500 = vmatpush2.msra.mxu0 0.0
    %4501 = vmatprep.subr.mxu0 0.0
    %4502 = vmatpush2.msra.mxu0 0.0
    %4503 = vmatprep.subr.mxu0 0.0
    %4504 = vmatpush2.msra.mxu0 0.0
    %4505 = vmatprep.subr.mxu0 0.0
    %4506 = vmatpush2.msra.mxu0 0.0
    %4507 = vmatprep.mubr.f32.mxu0 0.0
    %4508 = vmatmul.mubr.f32.gmra.mxu0 %v4438
    %v4509 = vpop.f32.mrf.mxu0
    %v4510 = vadd.f32 %v4442, %v4509
    %v4511 = vpop.f32.mrf.mxu0
    %4512 = vdwg.mxu0
    %4513 = vst [vmem:[%s5] sm:$0x7] %v4510
    // Predicated region
    $region26: #{argus_forward.1} parent=1 // pred_check
      _
    $region27: #{argus_forward.1} parent=1 // pred_check_branch
      %4515 = sbr.rel (0) target = $region29
    $region28: #{argus_forward.1} parent=1 // pred_region
      _
    $region29: #{argus_forward.1} parent=1 // pred_fallthru
      _
    // Predicated region
    $region30: #{argus_forward.1} parent=1 // pred_check
      _
    $region31: #{argus_forward.1} parent=1 // pred_check_branch
      %4517 = sbr.rel (0) target = $region33
    $region32: #{argus_forward.1} parent=1 // pred_region
      _
    $region33: #{argus_forward.1} parent=1 // pred_fallthru
      _
    %4518 = vsyncpa [#allocation4], 1

</llo_original>
